<compile_context>
chip_gen: v5e
topology: v5e:2x2
jax: 0.10.0
libtpu: 0.0.40
codegen_flags: <defaults>
</compile_context>

<pallas_src>
import functools
import math

import jax
import jax.numpy as jnp
from jax.experimental import pallas as pl
from jax.experimental.pallas import tpu as pltpu

_MXU_DTYPE = jnp.bfloat16      # MXU operand dtype (f32 accumulation everywhere)
_ACT_DTYPE = jnp.bfloat16      # storage dtype of non-residual intermediates
_ROW_TILE_CANDIDATES = (1024, 512, 256, 128, 64, 32, 16, 8)


# ---------------------------------------------------------------------------
# Tiling / VMEM helpers
# ---------------------------------------------------------------------------
def _vmem_physical_bytes():
    try:
        return int(pltpu.get_tpu_info().vmem_capacity_bytes)
    except Exception:
        return 64 * 1024 * 1024     # conservative fallback = v7x per-TC VMEM


def _pick_row_tile(rows, bytes_per_row):
    """Largest row tile (multiple of 8, capped at 1024) that fits ~40% of VMEM."""
    rows = int(rows)
    if rows <= 8:
        return rows                 # full-extent block (legal: equals array dim)
    budget = int(_vmem_physical_bytes() * 0.4)
    cap = max(8, budget // max(1, int(bytes_per_row)))
    for cand in _ROW_TILE_CANDIDATES:
        if cand <= cap and cand <= rows:
            return cand
    return 8


def _pick_lane_tile(n):
    """Lane (output-N) tile: prefer 512/256-wide tiles to fill the 2x256 MXU."""
    n = int(n)
    if n % 128 != 0:
        return n                    # small / odd dims: full extent (legal)
    for cand in (512, 256, 384, 128):
        if n % cand == 0:
            return cand
    return 128


def _compiler_params(semantics, working_set_bytes):
    # vmem_limit sized to ~2x the tile working set (32 MiB floor), capped at
    # 5/8 of physical VMEM: 80 MiB on v5e/v6e (128 MiB), 40 MiB on v7x (64 MiB).
    phys = _vmem_physical_bytes()
    cap = phys * 5 // 8
    limit = int(min(cap, max(32 * 1024 * 1024, int(working_set_bytes) * 2)))
    return pltpu.CompilerParams(dimension_semantics=semantics,
                                vmem_limit_bytes=limit)


def _fast_recip(x):
    # EUP approximate reciprocal (own VLIW slot) + one Newton-Raphson step.
    inv = pl.reciprocal(x, approx=True)
    return inv * (2.0 - x * inv)


# ---------------------------------------------------------------------------
# Fused LayerNorm + Linear kernel:  o = LN(x) @ W + b   (optional ReLU)
# LN semantics: unbiased std (N-1), eps added to std.
# ---------------------------------------------------------------------------
def _ln_linear_kernel(x_ref, g_ref, bb_ref, w_ref, bias_ref, o_ref, *,
                      eps, features, relu):
    x = x_ref[...].astype(jnp.float32)                     # (tm, K) full K
    mean = jnp.mean(x, axis=-1, keepdims=True)
    diff = x - mean
    var = jnp.sum(diff * diff, axis=-1, keepdims=True) * (1.0 / max(features - 1, 1))
    inv = _fast_recip(jnp.sqrt(var) + eps)
    h = g_ref[...].astype(jnp.float32) * diff * inv + bb_ref[...].astype(jnp.float32)
    y = jnp.dot(h.astype(_MXU_DTYPE), w_ref[...].astype(_MXU_DTYPE),
                preferred_element_type=jnp.float32)
    y = y + bias_ref[...].astype(jnp.float32)
    if relu:
        y = jnp.maximum(y, 0.0)
    o_ref[...] = y.astype(o_ref.dtype)


def ln_linear(x2, gamma, beta, w, bias, *, eps=1e-6, relu=False, out_dtype=None):
    """x2: (M, K); gamma/beta: (K,); w: (K, N); bias: (N,). Returns (M, N)."""
    M, K = x2.shape
    N = w.shape[1]
    out_dtype = out_dtype or x2.dtype
    x_isz = jnp.dtype(x2.dtype).itemsize
    o_isz = jnp.dtype(out_dtype).itemsize
    w_isz = jnp.dtype(w.dtype).itemsize
    tn = _pick_lane_tile(N)
    row_bytes = 2 * (K * x_isz + tn * o_isz) + 8 * K
    tm = _pick_row_tile(M, row_bytes)
    working = (2 * (tm * K * x_isz + K * tn * w_isz + tm * tn * o_isz)
               + 8 * tm * K + 4 * tm * tn + 4 * (2 * K + 2 * tn))
    return pl.pallas_call(
        functools.partial(_ln_linear_kernel, eps=eps, features=K, relu=relu),
        out_shape=jax.ShapeDtypeStruct((M, N), out_dtype),
        grid_spec=pltpu.PrefetchScalarGridSpec(
            num_scalar_prefetch=0,
            grid=(pl.cdiv(M, tm), pl.cdiv(N, tn)),
            in_specs=[
                pl.BlockSpec((tm, K), lambda i, j: (i, 0)),
                pl.BlockSpec((1, K), lambda i, j: (0, 0)),
                pl.BlockSpec((1, K), lambda i, j: (0, 0)),
                pl.BlockSpec((K, tn), lambda i, j: (0, j)),
                pl.BlockSpec((1, tn), lambda i, j: (0, j)),
            ],
            out_specs=pl.BlockSpec((tm, tn), lambda i, j: (i, j)),
        ),
        compiler_params=_compiler_params(("parallel", "parallel"), working),
    )(x2, gamma.reshape(1, K), beta.reshape(1, K), w, bias.reshape(1, N))


# ---------------------------------------------------------------------------
# Plain Linear kernel:  o = x @ W + b   (optional fused ReLU / residual add)
# ---------------------------------------------------------------------------
def _linear_kernel(x_ref, w_ref, bias_ref, *rest, relu, has_res):
    if has_res:
        r_ref, o_ref = rest
    else:
        (o_ref,) = rest
    y = jnp.dot(x_ref[...].astype(_MXU_DTYPE), w_ref[...].astype(_MXU_DTYPE),
                preferred_element_type=jnp.float32)
    y = y + bias_ref[...].astype(jnp.float32)
    if relu:
        y = jnp.maximum(y, 0.0)
    if has_res:
        y = y + r_ref[...].astype(jnp.float32)
    o_ref[...] = y.astype(o_ref.dtype)


def linear(x2, w, b, *, residual=None, relu=False, out_dtype=None):
    """x2: (M, K); w: (K, N); b: (N,); residual: optional (M, N)."""
    M, K = x2.shape
    N = w.shape[1]
    if out_dtype is None:
        out_dtype = residual.dtype if residual is not None else x2.dtype
    x_isz = jnp.dtype(x2.dtype).itemsize
    o_isz = jnp.dtype(out_dtype).itemsize
    w_isz = jnp.dtype(w.dtype).itemsize
    tn = _pick_lane_tile(N)
    n_tiles_per_row = 2 if residual is not None else 1
    row_bytes = 2 * (K * x_isz + n_tiles_per_row * tn * 4) + 4 * K
    tm = _pick_row_tile(M, row_bytes)
    working = (2 * (tm * K * x_isz + K * tn * w_isz
                    + n_tiles_per_row * tm * tn * o_isz)
               + 4 * tm * tn + 8 * tn)

    in_specs = [
        pl.BlockSpec((tm, K), lambda i, j: (i, 0)),
        pl.BlockSpec((K, tn), lambda i, j: (0, j)),
        pl.BlockSpec((1, tn), lambda i, j: (0, j)),
    ]
    args = [x2, w, b.reshape(1, N)]
    if residual is not None:
        in_specs.append(pl.BlockSpec((tm, tn), lambda i, j: (i, j)))
        args.append(residual)

    return pl.pallas_call(
        functools.partial(_linear_kernel, relu=relu, has_res=residual is not None),
        out_shape=jax.ShapeDtypeStruct((M, N), out_dtype),
        grid_spec=pltpu.PrefetchScalarGridSpec(
            num_scalar_prefetch=0,
            grid=(pl.cdiv(M, tm), pl.cdiv(N, tn)),
            in_specs=in_specs,
            out_specs=pl.BlockSpec((tm, tn), lambda i, j: (i, j)),
        ),
        compiler_params=_compiler_params(("parallel", "parallel"), working),
    )(*args)


# ---------------------------------------------------------------------------
# Multi-head attention kernels (softmax(QK^T/sqrt(d), masked_fill==-0.0001) @ V)
# Heads are sliced from the fused projection tensors inside the kernel; the
# context is written back directly in (B, S, Hd) layout (no HBM transposes).
# ---------------------------------------------------------------------------
def _attend_heads(q, k, v, mask, *, n_heads, dh, scale):
    # q: (Sq, Hd); k, v: (Sk, Hd); mask: (mq, Sk) with mq in {1, Sq}, 1=keep.
    contract_last = (((1,), (1,)), ((), ()))
    outs = []
    for h in range(n_heads):                      # static unrolled loop
        sl = slice(h * dh, (h + 1) * dh)
        qh = q[:, sl].astype(_MXU_DTYPE)
        kh = k[:, sl].astype(_MXU_DTYPE)
        vh = v[:, sl].astype(_MXU_DTYPE)
        s = jax.lax.dot_general(qh, kh, contract_last,
                                preferred_element_type=jnp.float32) * scale
        # Module semantics: masked positions get -0.0001 (NOT -inf).
        s = jnp.where(mask == 0, jnp.float32(-0.0001), s)
        m = jnp.max(s, axis=-1, keepdims=True)
        p = jnp.exp(s - m)
        p = p * _fast_recip(jnp.sum(p, axis=-1, keepdims=True))
        outs.append(jnp.dot(p.astype(_MXU_DTYPE), vh,
                            preferred_element_type=jnp.float32))
    return jnp.concatenate(outs, axis=-1)         # (Sq, Hd)


def _self_attn_kernel(qkv_ref, m_ref, o_ref, *, n_heads, dh, scale):
    hd = n_heads * dh
    qkv = qkv_ref[0]                              # (S, 3*Hd)
    ctx = _attend_heads(qkv[:, :hd], qkv[:, hd:2 * hd], qkv[:, 2 * hd:],
                        m_ref[0], n_heads=n_heads, dh=dh, scale=scale)
    o_ref[0] = ctx.astype(o_ref.dtype)


def _cross_attn_kernel(q_ref, kv_ref, m_ref, o_ref, *, n_heads, dh, scale):
    hd = n_heads * dh
    kv = kv_ref[0]                                # (Sk, 2*Hd)
    ctx = _attend_heads(q_ref[0], kv[:, :hd], kv[:, hd:], m_ref[0],
                        n_heads=n_heads, dh=dh, scale=scale)
    o_ref[0] = ctx.astype(o_ref.dtype)


def self_attention(qkv, mask, n_heads, *, out_dtype=None):
    """qkv: (B, S, 3*Hd) fused Q|K|V; mask: (B, mq, S). Returns (B, S, Hd)."""
    B, S, three_hd = qkv.shape
    hd = three_hd // 3
    dh = hd // n_heads
    out_dtype = out_dtype or qkv.dtype
    mq, Sk = mask.shape[1], mask.shape[2]
    scale = 1.0 / math.sqrt(dh)
    working = (2 * (S * three_hd + S * hd + mq * Sk) * 4
               + (S * Sk + S * hd) * 8)
    return pl.pallas_call(
        functools.partial(_self_attn_kernel, n_heads=n_heads, dh=dh, scale=scale),
        out_shape=jax.ShapeDtypeStruct((B, S, hd), out_dtype),
        grid_spec=pltpu.PrefetchScalarGridSpec(
            num_scalar_prefetch=0,
            grid=(B,),
            in_specs=[pl.BlockSpec((1, S, three_hd), lambda b: (b, 0, 0)),
                      pl.BlockSpec((1, mq, Sk), lambda b: (b, 0, 0))],
            out_specs=pl.BlockSpec((1, S, hd), lambda b: (b, 0, 0)),
        ),
        compiler_params=_compiler_params(("parallel",), working),
    )(qkv, mask)


def cross_attention(q, kv, mask, n_heads, *, out_dtype=None):
    """q: (B, Sq, Hd); kv: (B, Sk, 2*Hd) fused K|V; mask: (B, mq, Sk)."""
    B, Sq, hd = q.shape
    Sk = kv.shape[1]
    dh = hd // n_heads
    out_dtype = out_dtype or q.dtype
    mq = mask.shape[1]
    scale = 1.0 / math.sqrt(dh)
    working = (2 * (Sq * hd * 2 + Sk * 2 * hd + mq * Sk) * 4
               + (Sq * Sk + Sq * hd) * 8)
    return pl.pallas_call(
        functools.partial(_cross_attn_kernel, n_heads=n_heads, dh=dh, scale=scale),
        out_shape=jax.ShapeDtypeStruct((B, Sq, hd), out_dtype),
        grid_spec=pltpu.PrefetchScalarGridSpec(
            num_scalar_prefetch=0,
            grid=(B,),
            in_specs=[pl.BlockSpec((1, Sq, hd), lambda b: (b, 0, 0)),
                      pl.BlockSpec((1, Sk, 2 * hd), lambda b: (b, 0, 0)),
                      pl.BlockSpec((1, mq, Sk), lambda b: (b, 0, 0))],
            out_specs=pl.BlockSpec((1, Sq, hd), lambda b: (b, 0, 0)),
        ),
        compiler_params=_compiler_params(("parallel",), working),
    )(q, kv, mask)


# ---------------------------------------------------------------------------
# Parameter fusion (done ONCE, outside jit): concatenate QKV / KV projection
# weights and cast weight matrices to the MXU dtype; biases/LN params stay f32.
# Weight convention: (in_features, out_features), i.e. PyTorch weight.T.
# ---------------------------------------------------------------------------
def fuse_decoder_params(params, mxu_dtype=_MXU_DTYPE):
    f32 = jnp.float32
    sa, ca, ff = params["self_attn"], params["src_attn"], params["ffn"]
    fused = {
        "self_attn": {
            "wqkv": jnp.concatenate([sa["wq"], sa["wk"], sa["wv"]], axis=1).astype(mxu_dtype),
            "bqkv": jnp.concatenate([sa["bq"], sa["bk"], sa["bv"]]).astype(f32),
            "wo": sa["wo"].astype(mxu_dtype), "bo": sa["bo"].astype(f32),
        },
        "src_attn": {
            "wq": ca["wq"].astype(mxu_dtype), "bq": ca["bq"].astype(f32),
            "wkv": jnp.concatenate([ca["wk"], ca["wv"]], axis=1).astype(mxu_dtype),
            "bkv": jnp.concatenate([ca["bk"], ca["bv"]]).astype(f32),
            "wo": ca["wo"].astype(mxu_dtype), "bo": ca["bo"].astype(f32),
        },
        "ffn": {
            "w1": ff["w1"].astype(mxu_dtype), "b1": ff["b1"].astype(f32),
            "w2": ff["w2"].astype(mxu_dtype), "b2": ff["b2"].astype(f32),
        },
    }
    for i in range(3):
        fused[f"ln{i}_a"] = params[f"ln{i}_a"].astype(f32)
        fused[f"ln{i}_b"] = params[f"ln{i}_b"].astype(f32)
    return fused


# ---------------------------------------------------------------------------
# DecoderLayer forward (inference)
# ---------------------------------------------------------------------------
def decoder_layer(x, memory, e_mask, d_mask, fparams, n_heads):
    B, S, Hd = x.shape
    Sm = memory.shape[1]
    xf = x.reshape(B * S, Hd)                          # residual stream (f32)
    memf = memory.reshape(B * Sm, Hd)

    # Drop the broadcast head dim of the masks (no broadcast materialization).
    d_m = d_mask.reshape(d_mask.shape[0], -1, d_mask.shape[-1])
    e_m = e_mask.reshape(e_mask.shape[0], -1, e_mask.shape[-1])
    if d_m.dtype == jnp.bool_:
        d_m = d_m.astype(jnp.float32)
    if e_m.dtype == jnp.bool_:
        e_m = e_m.astype(jnp.float32)

    # ---- sublayer 0: self-attention (LN fused into the QKV projection) ----
    sa = fparams["self_attn"]
    qkv = ln_linear(xf, fparams["ln0_a"], fparams["ln0_b"], sa["wqkv"], sa["bqkv"],
                    out_dtype=_ACT_DTYPE)
    ctx = self_attention(qkv.reshape(B, S, 3 * Hd), d_m, n_heads,
                         out_dtype=_ACT_DTYPE)
    xf = linear(ctx.reshape(B * S, Hd), sa["wo"], sa["bo"], residual=xf)

    # ---- sublayer 1: source attention ----
    ca = fparams["src_attn"]
    q = ln_linear(xf, fparams["ln1_a"], fparams["ln1_b"], ca["wq"], ca["bq"],
                  out_dtype=_ACT_DTYPE)
    kv = linear(memf, ca["wkv"], ca["bkv"], out_dtype=_ACT_DTYPE)
    ctx = cross_attention(q.reshape(B, S, Hd), kv.reshape(B, Sm, 2 * Hd), e_m,
                          n_heads, out_dtype=_ACT_DTYPE)
    xf = linear(ctx.reshape(B * S, Hd), ca["wo"], ca["bo"], residual=xf)

    # ---- sublayer 2: feed-forward (LN fused into w_1, ReLU fused, res fused) ----
    ff = fparams["ffn"]
    h = ln_linear(xf, fparams["ln2_a"], fparams["ln2_b"], ff["w1"], ff["b1"],
                  relu=True, out_dtype=_ACT_DTYPE)
    xf = linear(h, ff["w2"], ff["b2"], residual=xf)
    return xf.reshape(B, S, Hd)


# ---------------------------------------------------------------------------
# Pure-JAX reference (mirrors the PyTorch module math, f32 HIGHEST precision)
# ---------------------------------------------------------------------------
def decoder_layer_ref(x, memory, e_mask, d_mask, params, n_heads):
    hp = jax.lax.Precision.HIGHEST

    def ln(t, a, b, eps=1e-6):
        tf = t.astype(jnp.float32)
        mean = jnp.mean(tf, axis=-1, keepdims=True)
        std = jnp.std(tf, axis=-1, keepdims=True, ddof=1)     # unbiased, like torch
        return a * (tf - mean) / (std + eps) + b

    def lin(t, w, b):
        return jnp.matmul(t, w, precision=hp) + b

    def mha(q_in, k_in, v_in, mask, p):
        B, Sq, Hd = q_in.shape
        Sk = k_in.shape[1]
        dh = Hd // n_heads
        q = lin(q_in, p["wq"], p["bq"]).reshape(B, Sq, n_heads, dh).transpose(0, 2, 1, 3)
        k = lin(k_in, p["wk"], p["bk"]).reshape(B, Sk, n_heads, dh).transpose(0, 2, 1, 3)
        v = lin(v_in, p["wv"], p["bv"]).reshape(B, Sk, n_heads, dh).transpose(0, 2, 1, 3)
        s = jnp.matmul(q, jnp.swapaxes(k, -1, -2), precision=hp) / math.sqrt(dh)
        s = jnp.where(mask == 0, -0.0001, s)
        a = jax.nn.softmax(s, axis=-1)
        ctx = jnp.matmul(a, v, precision=hp).transpose(0, 2, 1, 3).reshape(B, Sq, Hd)
        return lin(ctx, p["wo"], p["bo"])

    def ffn(t, p):
        return lin(jnp.maximum(lin(t, p["w1"], p["b1"]), 0.0), p["w2"], p["b2"])

    h = ln(x, params["ln0_a"], params["ln0_b"])
    x = x + mha(h, h, h, d_mask, params["self_attn"])
    h = ln(x, params["ln1_a"], params["ln1_b"])
    x = x + mha(h, memory, memory, e_mask, params["src_attn"])
    h = ln(x, params["ln2_a"], params["ln2_b"])
    x = x + ffn(h, params["ffn"])
    return x


# ---------------------------------------------------------------------------
# Demo / self-test
# ---------------------------------------------------------------------------
if __name__ == "__main__":
    key = jax.random.PRNGKey(0)
    batch, seq, src_seq = 2, 8, 8
    hidden, n_heads, pff_dim = 32, 4, 64

    def lin_params(kin, fan_in, fan_out):
        kw, kb = jax.random.split(kin)
        s = 1.0 / math.sqrt(fan_in)
        w = jax.random.uniform(kw, (fan_in, fan_out), jnp.float32, -s, s)  # (in,out)
        b = jax.random.uniform(kb, (fan_out,), jnp.float32, -s, s)
        return w, b

    def mha_params(kin):
        ks = jax.random.split(kin, 4)
        wq, bq = lin_params(ks[0], hidden, hidden)
        wk, bk = lin_params(ks[1], hidden, hidden)
        wv, bv = lin_params(ks[2], hidden, hidden)
        wo, bo = lin_params(ks[3], hidden, hidden)
        return dict(wq=wq, bq=bq, wk=wk, bk=bk, wv=wv, bv=bv, wo=wo, bo=bo)

    k_x, k_m, k_sa, k_ca, k_f1, k_f2 = jax.random.split(key, 6)
    x = jax.random.normal(k_x, (batch, seq, hidden), jnp.float32)
    memory = jax.random.normal(k_m, (batch, src_seq, hidden), jnp.float32)

    w1, b1 = lin_params(k_f1, hidden, pff_dim)
    w2, b2 = lin_params(k_f2, pff_dim, hidden)
    params = {
        "self_attn": mha_params(k_sa),
        "src_attn": mha_params(k_ca),
        "ffn": dict(w1=w1, b1=b1, w2=w2, b2=b2),
    }
    for i in range(3):                      # LayerNorm params: ones / zeros
        params[f"ln{i}_a"] = jnp.ones((hidden,), jnp.float32)
        params[f"ln{i}_b"] = jnp.zeros((hidden,), jnp.float32)

    # Causal decoder mask (B,1,S,S); encoder mask (B,1,1,S) with last src pos padded.
    d_mask = jnp.broadcast_to(jnp.tril(jnp.ones((seq, seq), jnp.float32))[None, None],
                              (batch, 1, seq, seq))
    e_mask = jnp.ones((batch, 1, 1, src_seq), jnp.float32).at[:, :, :, -1].set(0.0)

    fparams = fuse_decoder_params(params)   # one-time weight fusion / bf16 cast
    fwd = jax.jit(functools.partial(decoder_layer, n_heads=n_heads))
    out = jax.block_until_ready(fwd(x, memory, e_mask, d_mask, fparams))

    ref = decoder_layer_ref(x, memory, e_mask, d_mask, params, n_heads)
    assert out.shape == x.shape and out.dtype == x.dtype
    # Tolerance accounts for bf16 MXU inputs / bf16 intermediate activations
    # (f32 accumulation) vs the f32 HIGHEST-precision reference.
    err = jnp.max(jnp.abs(out - ref))
    assert jnp.allclose(out, ref, atol=2.5e-2, rtol=2.5e-2), f"max abs err {err}"
    print("KERNEL_OK")
</pallas_src>

<mosaic_0001>
module attributes {stable_mosaic.version = 11 : i64} {
  func.func @_linear_kernel(%arg0: i32, %arg1: i32, %arg2: memref<16x32xbf16, #tpu.memory_space<vmem>>, %arg3: memref<32x32xbf16, #tpu.memory_space<vmem>>, %arg4: memref<1x32xf32, #tpu.memory_space<vmem>>, %arg5: memref<16x32xf32, #tpu.memory_space<vmem>>, %arg6: memref<16x32xf32, #tpu.memory_space<vmem>>) attributes {dimension_semantics = [#tpu.dimension_semantics<parallel>, #tpu.dimension_semantics<parallel>], iteration_bounds = array<i64: 1, 1>, scalar_prefetch = 0 : i64, scratch_operands = 0 : i64, tpu.core_type = #tpu.core_type<tc>, window_params = [{transform_indices = @transform_0, window_bounds = array<i64: 16, 32>}, {transform_indices = @transform_1, window_bounds = array<i64: 32, 32>}, {transform_indices = @transform_2, window_bounds = array<i64: 1, 32>}, {transform_indices = @transform_3, window_bounds = array<i64: 16, 32>}, {transform_indices = @transform_4, window_bounds = array<i64: 16, 32>}]} {
    %c0 = arith.constant 0 : index
    %c0_0 = arith.constant 0 : index
    %0 = vector.load %arg2[%c0, %c0_0] : memref<16x32xbf16, #tpu.memory_space<vmem>>, vector<16x32xbf16>
    %c0_1 = arith.constant 0 : index
    %c0_2 = arith.constant 0 : index
    %1 = vector.load %arg3[%c0_1, %c0_2] : memref<32x32xbf16, #tpu.memory_space<vmem>>, vector<32x32xbf16>
    %cst = arith.constant dense<0.000000e+00> : vector<16x32xf32>
    %2 = tpu.matmul %0, %1, %cst {dimension_numbers = #tpu.dot_dimension_numbers<[1], [0], [0], [1], [0, 0, 1, 1], [], []>} : vector<16x32xbf16>, vector<32x32xbf16>, vector<16x32xf32> -> vector<16x32xf32>
    %c0_3 = arith.constant 0 : index
    %c0_4 = arith.constant 0 : index
    %3 = vector.load %arg4[%c0_3, %c0_4] : memref<1x32xf32, #tpu.memory_space<vmem>>, vector<1x32xf32>
    %4 = vector.broadcast %3 : vector<1x32xf32> to vector<16x32xf32>
    %5 = arith.addf %2, %4 : vector<16x32xf32>
    %c0_5 = arith.constant 0 : index
    %c0_6 = arith.constant 0 : index
    %6 = vector.load %arg5[%c0_5, %c0_6] : memref<16x32xf32, #tpu.memory_space<vmem>>, vector<16x32xf32>
    %7 = arith.addf %5, %6 : vector<16x32xf32>
    %c0_7 = arith.constant 0 : index
    %c0_8 = arith.constant 0 : index
    %8 = vector.load %arg6[%c0_7, %c0_8] : memref<16x32xf32, #tpu.memory_space<vmem>>, vector<16x32xf32>
    tpu.vector_store %arg6[%c0_7, %c0_8], %7 {strides = array<i32>} : memref<16x32xf32, #tpu.memory_space<vmem>>, vector<16x32xf32>,
    return
  }
  func.func @transform_0(%arg0: i32, %arg1: i32) -> (i32, i32) {
    %c0_i32 = arith.constant 0 : i32
    %c0_i32_0 = arith.constant 0 : i32
    return %arg0, %c0_i32 : i32, i32
  }
  func.func @transform_1(%arg0: i32, %arg1: i32) -> (i32, i32) {
    %c0_i32 = arith.constant 0 : i32
    %c0_i32_0 = arith.constant 0 : i32
    return %c0_i32, %arg1 : i32, i32
  }
  func.func @transform_2(%arg0: i32, %arg1: i32) -> (i32, i32) {
    %c0_i32 = arith.constant 0 : i32
    %c0_i32_0 = arith.constant 0 : i32
    return %c0_i32, %arg1 : i32, i32
  }
  func.func @transform_3(%arg0: i32, %arg1: i32) -> (i32, i32) {
    %c0_i32 = arith.constant 0 : i32
    return %arg0, %arg1 : i32, i32
  }
  func.func @transform_4(%arg0: i32, %arg1: i32) -> (i32, i32) {
    %c0_i32 = arith.constant 0 : i32
    return %arg0, %arg1 : i32, i32
  }
}

module attributes {stable_mosaic.version = 11 : i64} {
  func.func @_ln_linear_kernel(%arg0: i32, %arg1: i32, %arg2: memref<16x32xf32, #tpu.memory_space<vmem>>, %arg3: memref<1x32xf32, #tpu.memory_space<vmem>>, %arg4: memref<1x32xf32, #tpu.memory_space<vmem>>, %arg5: memref<32x96xbf16, #tpu.memory_space<vmem>>, %arg6: memref<1x96xf32, #tpu.memory_space<vmem>>, %arg7: memref<16x96xbf16, #tpu.memory_space<vmem>>) attributes {dimension_semantics = [#tpu.dimension_semantics<parallel>, #tpu.dimension_semantics<parallel>], iteration_bounds = array<i64: 1, 1>, scalar_prefetch = 0 : i64, scratch_operands = 0 : i64, tpu.core_type = #tpu.core_type<tc>, window_params = [{transform_indices = @transform_0, window_bounds = array<i64: 16, 32>}, {pipeline_mode = #tpu.pipeline_mode<synchronous>, transform_indices = @transform_1, window_bounds = array<i64: 1, 32>}, {pipeline_mode = #tpu.pipeline_mode<synchronous>, transform_indices = @transform_2, window_bounds = array<i64: 1, 32>}, {transform_indices = @transform_3, window_bounds = array<i64: 32, 96>}, {transform_indices = @transform_4, window_bounds = array<i64: 1, 96>}, {transform_indices = @transform_5, window_bounds = array<i64: 16, 96>}]} {
    %c0 = arith.constant 0 : index
    %c0_0 = arith.constant 0 : index
    %0 = vector.load %arg2[%c0, %c0_0] : memref<16x32xf32, #tpu.memory_space<vmem>>, vector<16x32xf32>
    %cst = arith.constant dense<0.000000e+00> : vector<16xf32>
    %1 = vector.multi_reduction <add>, %0, %cst [1] : vector<16x32xf32> to vector<16xf32>
    %2 = vector.shape_cast %1 : vector<16xf32> to vector<16x1xf32>
    %cst_1 = arith.constant 3.200000e+01 : f32
    %3 = vector.broadcast %cst_1 : f32 to vector<16x1xf32>
    %4 = arith.divf %2, %3 : vector<16x1xf32>
    %5 = vector.broadcast %4 : vector<16x1xf32> to vector<16x32xf32>
    %6 = arith.subf %0, %5 : vector<16x32xf32>
    %7 = arith.mulf %6, %6 : vector<16x32xf32>
    %cst_2 = arith.constant dense<0.000000e+00> : vector<16xf32>
    %8 = vector.multi_reduction <add>, %7, %cst_2 [1] : vector<16x32xf32> to vector<16xf32>
    %9 = vector.shape_cast %8 : vector<16xf32> to vector<16x1xf32>
    %cst_3 = arith.constant 0.0322580636 : f32
    %10 = vector.broadcast %cst_3 : f32 to vector<16x1xf32>
    %11 = arith.mulf %9, %10 : vector<16x1xf32>
    %12 = math.sqrt %11 : vector<16x1xf32>
    %cst_4 = arith.constant 9.99999997E-7 : f32
    %13 = vector.broadcast %cst_4 : f32 to vector<16x1xf32>
    %14 = arith.addf %12, %13 : vector<16x1xf32>
    %15 = tpu.reciprocal %14 {approx = true} : vector<16x1xf32> -> vector<16x1xf32>
    %16 = arith.mulf %14, %15 : vector<16x1xf32>
    %cst_5 = arith.constant 2.000000e+00 : f32
    %17 = vector.broadcast %cst_5 : f32 to vector<16x1xf32>
    %18 = arith.subf %17, %16 : vector<16x1xf32>
    %19 = arith.mulf %15, %18 : vector<16x1xf32>
    %c0_6 = arith.constant 0 : index
    %c0_7 = arith.constant 0 : index
    %20 = vector.load %arg3[%c0_6, %c0_7] : memref<1x32xf32, #tpu.memory_space<vmem>>, vector<1x32xf32>
    %21 = vector.broadcast %20 : vector<1x32xf32> to vector<16x32xf32>
    %22 = arith.mulf %21, %6 : vector<16x32xf32>
    %23 = vector.broadcast %19 : vector<16x1xf32> to vector<16x32xf32>
    %24 = arith.mulf %22, %23 : vector<16x32xf32>
    %c0_8 = arith.constant 0 : index
    %c0_9 = arith.constant 0 : index
    %25 = vector.load %arg4[%c0_8, %c0_9] : memref<1x32xf32, #tpu.memory_space<vmem>>, vector<1x32xf32>
    %26 = vector.broadcast %25 : vector<1x32xf32> to vector<16x32xf32>
    %27 = arith.addf %24, %26 : vector<16x32xf32>
    %28 = arith.truncf %27 : vector<16x32xf32> to vector<16x32xbf16>
    %c0_10 = arith.constant 0 : index
    %c0_11 = arith.constant 0 : index
    %29 = vector.load %arg5[%c0_10, %c0_11] : memref<32x96xbf16, #tpu.memory_space<vmem>>, vector<32x96xbf16>
    %cst_12 = arith.constant dense<0.000000e+00> : vector<16x96xf32>
    %30 = tpu.matmul %28, %29, %cst_12 {dimension_numbers = #tpu.dot_dimension_numbers<[1], [0], [0], [1], [0, 0, 1, 1], [], []>} : vector<16x32xbf16>, vector<32x96xbf16>, vector<16x96xf32> -> vector<16x96xf32>
    %c0_13 = arith.constant 0 : index
    %c0_14 = arith.constant 0 : index
    %31 = vector.load %arg6[%c0_13, %c0_14] : memref<1x96xf32, #tpu.memory_space<vmem>>, vector<1x96xf32>
    %32 = vector.broadcast %31 : vector<1x96xf32> to vector<16x96xf32>
    %33 = arith.addf %30, %32 : vector<16x96xf32>
    %34 = arith.truncf %33 : vector<16x96xf32> to vector<16x96xbf16>
    %c0_15 = arith.constant 0 : index
    %c0_16 = arith.constant 0 : index
    %35 = vector.load %arg7[%c0_15, %c0_16] : memref<16x96xbf16, #tpu.memory_space<vmem>>, vector<16x96xbf16>
    tpu.vector_store %arg7[%c0_15, %c0_16], %34 {strides = array<i32>} : memref<16x96xbf16, #tpu.memory_space<vmem>>, vector<16x96xbf16>,
    return
  }
  func.func @transform_0(%arg0: i32, %arg1: i32) -> (i32, i32) {
    %c0_i32 = arith.constant 0 : i32
    %c0_i32_0 = arith.constant 0 : i32
    return %arg0, %c0_i32 : i32, i32
  }
  func.func @transform_1(%arg0: i32, %arg1: i32) -> (i32, i32) {
    %c0_i32 = arith.constant 0 : i32
    %c0_i32_0 = arith.constant 0 : i32
    %c0_i32_1 = arith.constant 0 : i32
    return %c0_i32, %c0_i32_0 : i32, i32
  }
  func.func @transform_2(%arg0: i32, %arg1: i32) -> (i32, i32) {
    %c0_i32 = arith.constant 0 : i32
    %c0_i32_0 = arith.constant 0 : i32
    %c0_i32_1 = arith.constant 0 : i32
    return %c0_i32, %c0_i32_0 : i32, i32
  }
  func.func @transform_3(%arg0: i32, %arg1: i32) -> (i32, i32) {
    %c0_i32 = arith.constant 0 : i32
    %c0_i32_0 = arith.constant 0 : i32
    return %c0_i32, %arg1 : i32, i32
  }
  func.func @transform_4(%arg0: i32, %arg1: i32) -> (i32, i32) {
    %c0_i32 = arith.constant 0 : i32
    %c0_i32_0 = arith.constant 0 : i32
    return %c0_i32, %arg1 : i32, i32
  }
  func.func @transform_5(%arg0: i32, %arg1: i32) -> (i32, i32) {
    %c0_i32 = arith.constant 0 : i32
    return %arg0, %arg1 : i32, i32
  }
}

module attributes {stable_mosaic.version = 11 : i64} {
  func.func @_ln_linear_kernel(%arg0: i32, %arg1: i32, %arg2: memref<16x32xf32, #tpu.memory_space<vmem>>, %arg3: memref<1x32xf32, #tpu.memory_space<vmem>>, %arg4: memref<1x32xf32, #tpu.memory_space<vmem>>, %arg5: memref<32x32xbf16, #tpu.memory_space<vmem>>, %arg6: memref<1x32xf32, #tpu.memory_space<vmem>>, %arg7: memref<16x32xbf16, #tpu.memory_space<vmem>>) attributes {dimension_semantics = [#tpu.dimension_semantics<parallel>, #tpu.dimension_semantics<parallel>], iteration_bounds = array<i64: 1, 1>, scalar_prefetch = 0 : i64, scratch_operands = 0 : i64, tpu.core_type = #tpu.core_type<tc>, window_params = [{transform_indices = @transform_0, window_bounds = array<i64: 16, 32>}, {pipeline_mode = #tpu.pipeline_mode<synchronous>, transform_indices = @transform_1, window_bounds = array<i64: 1, 32>}, {pipeline_mode = #tpu.pipeline_mode<synchronous>, transform_indices = @transform_2, window_bounds = array<i64: 1, 32>}, {transform_indices = @transform_3, window_bounds = array<i64: 32, 32>}, {transform_indices = @transform_4, window_bounds = array<i64: 1, 32>}, {transform_indices = @transform_5, window_bounds = array<i64: 16, 32>}]} {
    %c0 = arith.constant 0 : index
    %c0_0 = arith.constant 0 : index
    %0 = vector.load %arg2[%c0, %c0_0] : memref<16x32xf32, #tpu.memory_space<vmem>>, vector<16x32xf32>
    %cst = arith.constant dense<0.000000e+00> : vector<16xf32>
    %1 = vector.multi_reduction <add>, %0, %cst [1] : vector<16x32xf32> to vector<16xf32>
    %2 = vector.shape_cast %1 : vector<16xf32> to vector<16x1xf32>
    %cst_1 = arith.constant 3.200000e+01 : f32
    %3 = vector.broadcast %cst_1 : f32 to vector<16x1xf32>
    %4 = arith.divf %2, %3 : vector<16x1xf32>
    %5 = vector.broadcast %4 : vector<16x1xf32> to vector<16x32xf32>
    %6 = arith.subf %0, %5 : vector<16x32xf32>
    %7 = arith.mulf %6, %6 : vector<16x32xf32>
    %cst_2 = arith.constant dense<0.000000e+00> : vector<16xf32>
    %8 = vector.multi_reduction <add>, %7, %cst_2 [1] : vector<16x32xf32> to vector<16xf32>
    %9 = vector.shape_cast %8 : vector<16xf32> to vector<16x1xf32>
    %cst_3 = arith.constant 0.0322580636 : f32
    %10 = vector.broadcast %cst_3 : f32 to vector<16x1xf32>
    %11 = arith.mulf %9, %10 : vector<16x1xf32>
    %12 = math.sqrt %11 : vector<16x1xf32>
    %cst_4 = arith.constant 9.99999997E-7 : f32
    %13 = vector.broadcast %cst_4 : f32 to vector<16x1xf32>
    %14 = arith.addf %12, %13 : vector<16x1xf32>
    %15 = tpu.reciprocal %14 {approx = true} : vector<16x1xf32> -> vector<16x1xf32>
    %16 = arith.mulf %14, %15 : vector<16x1xf32>
    %cst_5 = arith.constant 2.000000e+00 : f32
    %17 = vector.broadcast %cst_5 : f32 to vector<16x1xf32>
    %18 = arith.subf %17, %16 : vector<16x1xf32>
    %19 = arith.mulf %15, %18 : vector<16x1xf32>
    %c0_6 = arith.constant 0 : index
    %c0_7 = arith.constant 0 : index
    %20 = vector.load %arg3[%c0_6, %c0_7] : memref<1x32xf32, #tpu.memory_space<vmem>>, vector<1x32xf32>
    %21 = vector.broadcast %20 : vector<1x32xf32> to vector<16x32xf32>
    %22 = arith.mulf %21, %6 : vector<16x32xf32>
    %23 = vector.broadcast %19 : vector<16x1xf32> to vector<16x32xf32>
    %24 = arith.mulf %22, %23 : vector<16x32xf32>
    %c0_8 = arith.constant 0 : index
    %c0_9 = arith.constant 0 : index
    %25 = vector.load %arg4[%c0_8, %c0_9] : memref<1x32xf32, #tpu.memory_space<vmem>>, vector<1x32xf32>
    %26 = vector.broadcast %25 : vector<1x32xf32> to vector<16x32xf32>
    %27 = arith.addf %24, %26 : vector<16x32xf32>
    %28 = arith.truncf %27 : vector<16x32xf32> to vector<16x32xbf16>
    %c0_10 = arith.constant 0 : index
    %c0_11 = arith.constant 0 : index
    %29 = vector.load %arg5[%c0_10, %c0_11] : memref<32x32xbf16, #tpu.memory_space<vmem>>, vector<32x32xbf16>
    %cst_12 = arith.constant dense<0.000000e+00> : vector<16x32xf32>
    %30 = tpu.matmul %28, %29, %cst_12 {dimension_numbers = #tpu.dot_dimension_numbers<[1], [0], [0], [1], [0, 0, 1, 1], [], []>} : vector<16x32xbf16>, vector<32x32xbf16>, vector<16x32xf32> -> vector<16x32xf32>
    %c0_13 = arith.constant 0 : index
    %c0_14 = arith.constant 0 : index
    %31 = vector.load %arg6[%c0_13, %c0_14] : memref<1x32xf32, #tpu.memory_space<vmem>>, vector<1x32xf32>
    %32 = vector.broadcast %31 : vector<1x32xf32> to vector<16x32xf32>
    %33 = arith.addf %30, %32 : vector<16x32xf32>
    %34 = arith.truncf %33 : vector<16x32xf32> to vector<16x32xbf16>
    %c0_15 = arith.constant 0 : index
    %c0_16 = arith.constant 0 : index
    %35 = vector.load %arg7[%c0_15, %c0_16] : memref<16x32xbf16, #tpu.memory_space<vmem>>, vector<16x32xbf16>
    tpu.vector_store %arg7[%c0_15, %c0_16], %34 {strides = array<i32>} : memref<16x32xbf16, #tpu.memory_space<vmem>>, vector<16x32xbf16>,
    return
  }
  func.func @transform_0(%arg0: i32, %arg1: i32) -> (i32, i32) {
    %c0_i32 = arith.constant 0 : i32
    %c0_i32_0 = arith.constant 0 : i32
    return %arg0, %c0_i32 : i32, i32
  }
  func.func @transform_1(%arg0: i32, %arg1: i32) -> (i32, i32) {
    %c0_i32 = arith.constant 0 : i32
    %c0_i32_0 = arith.constant 0 : i32
    %c0_i32_1 = arith.constant 0 : i32
    return %c0_i32, %c0_i32_0 : i32, i32
  }
  func.func @transform_2(%arg0: i32, %arg1: i32) -> (i32, i32) {
    %c0_i32 = arith.constant 0 : i32
    %c0_i32_0 = arith.constant 0 : i32
    %c0_i32_1 = arith.constant 0 : i32
    return %c0_i32, %c0_i32_0 : i32, i32
  }
  func.func @transform_3(%arg0: i32, %arg1: i32) -> (i32, i32) {
    %c0_i32 = arith.constant 0 : i32
    %c0_i32_0 = arith.constant 0 : i32
    return %c0_i32, %arg1 : i32, i32
  }
  func.func @transform_4(%arg0: i32, %arg1: i32) -> (i32, i32) {
    %c0_i32 = arith.constant 0 : i32
    %c0_i32_0 = arith.constant 0 : i32
    return %c0_i32, %arg1 : i32, i32
  }
  func.func @transform_5(%arg0: i32, %arg1: i32) -> (i32, i32) {
    %c0_i32 = arith.constant 0 : i32
    return %arg0, %arg1 : i32, i32
  }
}

module attributes {stable_mosaic.version = 11 : i64} {
  func.func @_self_attn_kernel(%arg0: i32, %arg1: memref<1x8x96xbf16, #tpu.memory_space<vmem>>, %arg2: memref<1x8x8xf32, #tpu.memory_space<vmem>>, %arg3: memref<1x8x32xbf16, #tpu.memory_space<vmem>>) attributes {dimension_semantics = [#tpu.dimension_semantics<parallel>], iteration_bounds = array<i64: 2>, scalar_prefetch = 0 : i64, scratch_operands = 0 : i64, tpu.core_type = #tpu.core_type<tc>, window_params = [{transform_indices = @transform_0, window_bounds = array<i64: 1, 8, 96>}, {transform_indices = @transform_1, window_bounds = array<i64: 1, 8, 8>}, {transform_indices = @transform_2, window_bounds = array<i64: 1, 8, 32>}]} {
    %c0 = arith.constant 0 : index
    %c0_0 = arith.constant 0 : index
    %c0_1 = arith.constant 0 : index
    %0 = vector.load %arg1[%c0, %c0_0, %c0_1] : memref<1x8x96xbf16, #tpu.memory_space<vmem>>, vector<1x8x96xbf16>
    %1 = vector.shape_cast %0 : vector<1x8x96xbf16> to vector<8x96xbf16>
    %2 = vector.extract_strided_slice %1 {offsets = [0, 0], sizes = [8, 32], strides = [1, 1]} : vector<8x96xbf16> to vector<8x32xbf16>
    %3 = vector.extract_strided_slice %1 {offsets = [0, 32], sizes = [8, 32], strides = [1, 1]} : vector<8x96xbf16> to vector<8x32xbf16>
    %4 = vector.extract_strided_slice %1 {offsets = [0, 64], sizes = [8, 32], strides = [1, 1]} : vector<8x96xbf16> to vector<8x32xbf16>
    %c0_2 = arith.constant 0 : index
    %c0_3 = arith.constant 0 : index
    %c0_4 = arith.constant 0 : index
    %5 = vector.load %arg2[%c0_2, %c0_3, %c0_4] : memref<1x8x8xf32, #tpu.memory_space<vmem>>, vector<1x8x8xf32>
    %6 = vector.shape_cast %5 : vector<1x8x8xf32> to vector<8x8xf32>
    %7 = vector.extract_strided_slice %2 {offsets = [0, 0], sizes = [8, 8], strides = [1, 1]} : vector<8x32xbf16> to vector<8x8xbf16>
    %8 = vector.extract_strided_slice %3 {offsets = [0, 0], sizes = [8, 8], strides = [1, 1]} : vector<8x32xbf16> to vector<8x8xbf16>
    %9 = vector.extract_strided_slice %4 {offsets = [0, 0], sizes = [8, 8], strides = [1, 1]} : vector<8x32xbf16> to vector<8x8xbf16>
    %cst = arith.constant dense<0.000000e+00> : vector<8x8xf32>
    %10 = tpu.matmul %7, %8, %cst {dimension_numbers = #tpu.dot_dimension_numbers<[1], [1], [0], [0], [0, 0, 1, 0], [], []>} : vector<8x8xbf16>, vector<8x8xbf16>, vector<8x8xf32> -> vector<8x8xf32>
    %cst_5 = arith.constant 0.353553385 : f32
    %11 = vector.broadcast %cst_5 : f32 to vector<8x8xf32>
    %12 = arith.mulf %10, %11 : vector<8x8xf32>
    %cst_6 = arith.constant 0.000000e+00 : f32
    %13 = vector.broadcast %cst_6 : f32 to vector<8x8xf32>
    %14 = arith.cmpf oeq, %6, %13 : vector<8x8xf32>
    %cst_7 = arith.constant -9.99999974E-5 : f32
    %15 = vector.broadcast %cst_7 : f32 to vector<8x8xf32>
    %16 = arith.select %14, %15, %12 : vector<8x8xi1>, vector<8x8xf32>
    %cst_8 = arith.constant dense<0xFF800000> : vector<8xf32>
    %17 = vector.multi_reduction <maximumf>, %16, %cst_8 [1] : vector<8x8xf32> to vector<8xf32>
    %18 = vector.shape_cast %17 : vector<8xf32> to vector<8x1xf32>
    %19 = vector.broadcast %18 : vector<8x1xf32> to vector<8x8xf32>
    %20 = arith.subf %16, %19 : vector<8x8xf32>
    %21 = math.exp %20 : vector<8x8xf32>
    %cst_9 = arith.constant dense<0.000000e+00> : vector<8xf32>
    %22 = vector.multi_reduction <add>, %21, %cst_9 [1] : vector<8x8xf32> to vector<8xf32>
    %23 = vector.shape_cast %22 : vector<8xf32> to vector<8x1xf32>
    %24 = tpu.reciprocal %23 {approx = true} : vector<8x1xf32> -> vector<8x1xf32>
    %25 = arith.mulf %23, %24 : vector<8x1xf32>
    %cst_10 = arith.constant 2.000000e+00 : f32
    %26 = vector.broadcast %cst_10 : f32 to vector<8x1xf32>
    %27 = arith.subf %26, %25 : vector<8x1xf32>
    %28 = arith.mulf %24, %27 : vector<8x1xf32>
    %29 = vector.broadcast %28 : vector<8x1xf32> to vector<8x8xf32>
    %30 = arith.mulf %21, %29 : vector<8x8xf32>
    %31 = arith.truncf %30 : vector<8x8xf32> to vector<8x8xbf16>
    %cst_11 = arith.constant dense<0.000000e+00> : vector<8x8xf32>
    %32 = tpu.matmul %31, %9, %cst_11 {dimension_numbers = #tpu.dot_dimension_numbers<[1], [0], [0], [1], [0, 0, 1, 1], [], []>} : vector<8x8xbf16>, vector<8x8xbf16>, vector<8x8xf32> -> vector<8x8xf32>
    %33 = vector.extract_strided_slice %2 {offsets = [0, 8], sizes = [8, 8], strides = [1, 1]} : vector<8x32xbf16> to vector<8x8xbf16>
    %34 = vector.extract_strided_slice %3 {offsets = [0, 8], sizes = [8, 8], strides = [1, 1]} : vector<8x32xbf16> to vector<8x8xbf16>
    %35 = vector.extract_strided_slice %4 {offsets = [0, 8], sizes = [8, 8], strides = [1, 1]} : vector<8x32xbf16> to vector<8x8xbf16>
    %cst_12 = arith.constant dense<0.000000e+00> : vector<8x8xf32>
    %36 = tpu.matmul %33, %34, %cst_12 {dimension_numbers = #tpu.dot_dimension_numbers<[1], [1], [0], [0], [0, 0, 1, 0], [], []>} : vector<8x8xbf16>, vector<8x8xbf16>, vector<8x8xf32> -> vector<8x8xf32>
    %cst_13 = arith.constant 0.353553385 : f32
    %37 = vector.broadcast %cst_13 : f32 to vector<8x8xf32>
    %38 = arith.mulf %36, %37 : vector<8x8xf32>
    %cst_14 = arith.constant 0.000000e+00 : f32
    %39 = vector.broadcast %cst_14 : f32 to vector<8x8xf32>
    %40 = arith.cmpf oeq, %6, %39 : vector<8x8xf32>
    %cst_15 = arith.constant -9.99999974E-5 : f32
    %41 = vector.broadcast %cst_15 : f32 to vector<8x8xf32>
    %42 = arith.select %40, %41, %38 : vector<8x8xi1>, vector<8x8xf32>
    %cst_16 = arith.constant dense<0xFF800000> : vector<8xf32>
    %43 = vector.multi_reduction <maximumf>, %42, %cst_16 [1] : vector<8x8xf32> to vector<8xf32>
    %44 = vector.shape_cast %43 : vector<8xf32> to vector<8x1xf32>
    %45 = vector.broadcast %44 : vector<8x1xf32> to vector<8x8xf32>
    %46 = arith.subf %42, %45 : vector<8x8xf32>
    %47 = math.exp %46 : vector<8x8xf32>
    %cst_17 = arith.constant dense<0.000000e+00> : vector<8xf32>
    %48 = vector.multi_reduction <add>, %47, %cst_17 [1] : vector<8x8xf32> to vector<8xf32>
    %49 = vector.shape_cast %48 : vector<8xf32> to vector<8x1xf32>
    %50 = tpu.reciprocal %49 {approx = true} : vector<8x1xf32> -> vector<8x1xf32>
    %51 = arith.mulf %49, %50 : vector<8x1xf32>
    %cst_18 = arith.constant 2.000000e+00 : f32
    %52 = vector.broadcast %cst_18 : f32 to vector<8x1xf32>
    %53 = arith.subf %52, %51 : vector<8x1xf32>
    %54 = arith.mulf %50, %53 : vector<8x1xf32>
    %55 = vector.broadcast %54 : vector<8x1xf32> to vector<8x8xf32>
    %56 = arith.mulf %47, %55 : vector<8x8xf32>
    %57 = arith.truncf %56 : vector<8x8xf32> to vector<8x8xbf16>
    %cst_19 = arith.constant dense<0.000000e+00> : vector<8x8xf32>
    %58 = tpu.matmul %57, %35, %cst_19 {dimension_numbers = #tpu.dot_dimension_numbers<[1], [0], [0], [1], [0, 0, 1, 1], [], []>} : vector<8x8xbf16>, vector<8x8xbf16>, vector<8x8xf32> -> vector<8x8xf32>
    %59 = vector.extract_strided_slice %2 {offsets = [0, 16], sizes = [8, 8], strides = [1, 1]} : vector<8x32xbf16> to vector<8x8xbf16>
    %60 = vector.extract_strided_slice %3 {offsets = [0, 16], sizes = [8, 8], strides = [1, 1]} : vector<8x32xbf16> to vector<8x8xbf16>
    %61 = vector.extract_strided_slice %4 {offsets = [0, 16], sizes = [8, 8], strides = [1, 1]} : vector<8x32xbf16> to vector<8x8xbf16>
    %cst_20 = arith.constant dense<0.000000e+00> : vector<8x8xf32>
    %62 = tpu.matmul %59, %60, %cst_20 {dimension_numbers = #tpu.dot_dimension_numbers<[1], [1], [0], [0], [0, 0, 1, 0], [], []>} : vector<8x8xbf16>, vector<8x8xbf16>, vector<8x8xf32> -> vector<8x8xf32>
    %cst_21 = arith.constant 0.353553385 : f32
    %63 = vector.broadcast %cst_21 : f32 to vector<8x8xf32>
    %64 = arith.mulf %62, %63 : vector<8x8xf32>
    %cst_22 = arith.constant 0.000000e+00 : f32
    %65 = vector.broadcast %cst_22 : f32 to vector<8x8xf32>
    %66 = arith.cmpf oeq, %6, %65 : vector<8x8xf32>
    %cst_23 = arith.constant -9.99999974E-5 : f32
    %67 = vector.broadcast %cst_23 : f32 to vector<8x8xf32>
    %68 = arith.select %66, %67, %64 : vector<8x8xi1>, vector<8x8xf32>
    %cst_24 = arith.constant dense<0xFF800000> : vector<8xf32>
    %69 = vector.multi_reduction <maximumf>, %68, %cst_24 [1] : vector<8x8xf32> to vector<8xf32>
    %70 = vector.shape_cast %69 : vector<8xf32> to vector<8x1xf32>
    %71 = vector.broadcast %70 : vector<8x1xf32> to vector<8x8xf32>
    %72 = arith.subf %68, %71 : vector<8x8xf32>
    %73 = math.exp %72 : vector<8x8xf32>
    %cst_25 = arith.constant dense<0.000000e+00> : vector<8xf32>
    %74 = vector.multi_reduction <add>, %73, %cst_25 [1] : vector<8x8xf32> to vector<8xf32>
    %75 = vector.shape_cast %74 : vector<8xf32> to vector<8x1xf32>
    %76 = tpu.reciprocal %75 {approx = true} : vector<8x1xf32> -> vector<8x1xf32>
    %77 = arith.mulf %75, %76 : vector<8x1xf32>
    %cst_26 = arith.constant 2.000000e+00 : f32
    %78 = vector.broadcast %cst_26 : f32 to vector<8x1xf32>
    %79 = arith.subf %78, %77 : vector<8x1xf32>
    %80 = arith.mulf %76, %79 : vector<8x1xf32>
    %81 = vector.broadcast %80 : vector<8x1xf32> to vector<8x8xf32>
    %82 = arith.mulf %73, %81 : vector<8x8xf32>
    %83 = arith.truncf %82 : vector<8x8xf32> to vector<8x8xbf16>
    %cst_27 = arith.constant dense<0.000000e+00> : vector<8x8xf32>
    %84 = tpu.matmul %83, %61, %cst_27 {dimension_numbers = #tpu.dot_dimension_numbers<[1], [0], [0], [1], [0, 0, 1, 1], [], []>} : vector<8x8xbf16>, vector<8x8xbf16>, vector<8x8xf32> -> vector<8x8xf32>
    %85 = vector.extract_strided_slice %2 {offsets = [0, 24], sizes = [8, 8], strides = [1, 1]} : vector<8x32xbf16> to vector<8x8xbf16>
    %86 = vector.extract_strided_slice %3 {offsets = [0, 24], sizes = [8, 8], strides = [1, 1]} : vector<8x32xbf16> to vector<8x8xbf16>
    %87 = vector.extract_strided_slice %4 {offsets = [0, 24], sizes = [8, 8], strides = [1, 1]} : vector<8x32xbf16> to vector<8x8xbf16>
    %cst_28 = arith.constant dense<0.000000e+00> : vector<8x8xf32>
    %88 = tpu.matmul %85, %86, %cst_28 {dimension_numbers = #tpu.dot_dimension_numbers<[1], [1], [0], [0], [0, 0, 1, 0], [], []>} : vector<8x8xbf16>, vector<8x8xbf16>, vector<8x8xf32> -> vector<8x8xf32>
    %cst_29 = arith.constant 0.353553385 : f32
    %89 = vector.broadcast %cst_29 : f32 to vector<8x8xf32>
    %90 = arith.mulf %88, %89 : vector<8x8xf32>
    %cst_30 = arith.constant 0.000000e+00 : f32
    %91 = vector.broadcast %cst_30 : f32 to vector<8x8xf32>
    %92 = arith.cmpf oeq, %6, %91 : vector<8x8xf32>
    %cst_31 = arith.constant -9.99999974E-5 : f32
    %93 = vector.broadcast %cst_31 : f32 to vector<8x8xf32>
    %94 = arith.select %92, %93, %90 : vector<8x8xi1>, vector<8x8xf32>
    %cst_32 = arith.constant dense<0xFF800000> : vector<8xf32>
    %95 = vector.multi_reduction <maximumf>, %94, %cst_32 [1] : vector<8x8xf32> to vector<8xf32>
    %96 = vector.shape_cast %95 : vector<8xf32> to vector<8x1xf32>
    %97 = vector.broadcast %96 : vector<8x1xf32> to vector<8x8xf32>
    %98 = arith.subf %94, %97 : vector<8x8xf32>
    %99 = math.exp %98 : vector<8x8xf32>
    %cst_33 = arith.constant dense<0.000000e+00> : vector<8xf32>
    %100 = vector.multi_reduction <add>, %99, %cst_33 [1] : vector<8x8xf32> to vector<8xf32>
    %101 = vector.shape_cast %100 : vector<8xf32> to vector<8x1xf32>
    %102 = tpu.reciprocal %101 {approx = true} : vector<8x1xf32> -> vector<8x1xf32>
    %103 = arith.mulf %101, %102 : vector<8x1xf32>
    %cst_34 = arith.constant 2.000000e+00 : f32
    %104 = vector.broadcast %cst_34 : f32 to vector<8x1xf32>
    %105 = arith.subf %104, %103 : vector<8x1xf32>
    %106 = arith.mulf %102, %105 : vector<8x1xf32>
    %107 = vector.broadcast %106 : vector<8x1xf32> to vector<8x8xf32>
    %108 = arith.mulf %99, %107 : vector<8x8xf32>
    %109 = arith.truncf %108 : vector<8x8xf32> to vector<8x8xbf16>
    %cst_35 = arith.constant dense<0.000000e+00> : vector<8x8xf32>
    %110 = tpu.matmul %109, %87, %cst_35 {dimension_numbers = #tpu.dot_dimension_numbers<[1], [0], [0], [1], [0, 0, 1, 1], [], []>} : vector<8x8xbf16>, vector<8x8xbf16>, vector<8x8xf32> -> vector<8x8xf32>
    %111 = tpu.concatenate %32, %58, %84, %110 in 1 : vector<8x8xf32>, vector<8x8xf32>, vector<8x8xf32>, vector<8x8xf32> -> vector<8x32xf32>
    %112 = arith.truncf %111 : vector<8x32xf32> to vector<8x32xbf16>
    %c0_36 = arith.constant 0 : index
    %c0_37 = arith.constant 0 : index
    %c0_38 = arith.constant 0 : index
    %113 = vector.load %arg3[%c0_36, %c0_37, %c0_38] : memref<1x8x32xbf16, #tpu.memory_space<vmem>>, vector<1x8x32xbf16>
    %114 = vector.shape_cast %113 : vector<1x8x32xbf16> to vector<8x32xbf16>
    %115 = vector.shape_cast %112 : vector<8x32xbf16> to vector<1x8x32xbf16>
    tpu.vector_store %arg3[%c0_36, %c0_37, %c0_38], %115 {strides = array<i32>} : memref<1x8x32xbf16, #tpu.memory_space<vmem>>, vector<1x8x32xbf16>,
    return
  }
  func.func @transform_0(%arg0: i32) -> (i32, i32, i32) {
    %c0_i32 = arith.constant 0 : i32
    %c0_i32_0 = arith.constant 0 : i32
    %c0_i32_1 = arith.constant 0 : i32
    return %arg0, %c0_i32, %c0_i32_0 : i32, i32, i32
  }
  func.func @transform_1(%arg0: i32) -> (i32, i32, i32) {
    %c0_i32 = arith.constant 0 : i32
    %c0_i32_0 = arith.constant 0 : i32
    %c0_i32_1 = arith.constant 0 : i32
    return %arg0, %c0_i32, %c0_i32_0 : i32, i32, i32
  }
  func.func @transform_2(%arg0: i32) -> (i32, i32, i32) {
    %c0_i32 = arith.constant 0 : i32
    %c0_i32_0 = arith.constant 0 : i32
    %c0_i32_1 = arith.constant 0 : i32
    return %arg0, %c0_i32, %c0_i32_0 : i32, i32, i32
  }
}

module attributes {stable_mosaic.version = 11 : i64} {
  func.func @_linear_kernel(%arg0: i32, %arg1: i32, %arg2: memref<16x32xbf16, #tpu.memory_space<vmem>>, %arg3: memref<32x32xbf16, #tpu.memory_space<vmem>>, %arg4: memref<1x32xf32, #tpu.memory_space<vmem>>, %arg5: memref<16x32xf32, #tpu.memory_space<vmem>>, %arg6: memref<16x32xf32, #tpu.memory_space<vmem>>) attributes {dimension_semantics = [#tpu.dimension_semantics<parallel>, #tpu.dimension_semantics<parallel>], iteration_bounds = array<i64: 1, 1>, scalar_prefetch = 0 : i64, scratch_operands = 0 : i64, tpu.core_type = #tpu.core_type<tc>, window_params = [{transform_indices = @transform_0, window_bounds = array<i64: 16, 32>}, {transform_indices = @transform_1, window_bounds = array<i64: 32, 32>}, {transform_indices = @transform_2, window_bounds = array<i64: 1, 32>}, {transform_indices = @transform_3, window_bounds = array<i64: 16, 32>}, {transform_indices = @transform_4, window_bounds = array<i64: 16, 32>}]} {
    %c0 = arith.constant 0 : index
    %c0_0 = arith.constant 0 : index
    %0 = vector.load %arg2[%c0, %c0_0] : memref<16x32xbf16, #tpu.memory_space<vmem>>, vector<16x32xbf16>
    %c0_1 = arith.constant 0 : index
    %c0_2 = arith.constant 0 : index
    %1 = vector.load %arg3[%c0_1, %c0_2] : memref<32x32xbf16, #tpu.memory_space<vmem>>, vector<32x32xbf16>
    %cst = arith.constant dense<0.000000e+00> : vector<16x32xf32>
    %2 = tpu.matmul %0, %1, %cst {dimension_numbers = #tpu.dot_dimension_numbers<[1], [0], [0], [1], [0, 0, 1, 1], [], []>} : vector<16x32xbf16>, vector<32x32xbf16>, vector<16x32xf32> -> vector<16x32xf32>
    %c0_3 = arith.constant 0 : index
    %c0_4 = arith.constant 0 : index
    %3 = vector.load %arg4[%c0_3, %c0_4] : memref<1x32xf32, #tpu.memory_space<vmem>>, vector<1x32xf32>
    %4 = vector.broadcast %3 : vector<1x32xf32> to vector<16x32xf32>
    %5 = arith.addf %2, %4 : vector<16x32xf32>
    %c0_5 = arith.constant 0 : index
    %c0_6 = arith.constant 0 : index
    %6 = vector.load %arg5[%c0_5, %c0_6] : memref<16x32xf32, #tpu.memory_space<vmem>>, vector<16x32xf32>
    %7 = arith.addf %5, %6 : vector<16x32xf32>
    %c0_7 = arith.constant 0 : index
    %c0_8 = arith.constant 0 : index
    %8 = vector.load %arg6[%c0_7, %c0_8] : memref<16x32xf32, #tpu.memory_space<vmem>>, vector<16x32xf32>
    tpu.vector_store %arg6[%c0_7, %c0_8], %7 {strides = array<i32>} : memref<16x32xf32, #tpu.memory_space<vmem>>, vector<16x32xf32>,
    return
  }
  func.func @transform_0(%arg0: i32, %arg1: i32) -> (i32, i32) {
    %c0_i32 = arith.constant 0 : i32
    %c0_i32_0 = arith.constant 0 : i32
    return %arg0, %c0_i32 : i32, i32
  }
  func.func @transform_1(%arg0: i32, %arg1: i32) -> (i32, i32) {
    %c0_i32 = arith.constant 0 : i32
    %c0_i32_0 = arith.constant 0 : i32
    return %c0_i32, %arg1 : i32, i32
  }
  func.func @transform_2(%arg0: i32, %arg1: i32) -> (i32, i32) {
    %c0_i32 = arith.constant 0 : i32
    %c0_i32_0 = arith.constant 0 : i32
    return %c0_i32, %arg1 : i32, i32
  }
  func.func @transform_3(%arg0: i32, %arg1: i32) -> (i32, i32) {
    %c0_i32 = arith.constant 0 : i32
    return %arg0, %arg1 : i32, i32
  }
  func.func @transform_4(%arg0: i32, %arg1: i32) -> (i32, i32) {
    %c0_i32 = arith.constant 0 : i32
    return %arg0, %arg1 : i32, i32
  }
}

module attributes {stable_mosaic.version = 11 : i64} {
  func.func @_linear_kernel(%arg0: i32, %arg1: i32, %arg2: memref<16x32xf32, #tpu.memory_space<vmem>>, %arg3: memref<32x64xbf16, #tpu.memory_space<vmem>>, %arg4: memref<1x64xf32, #tpu.memory_space<vmem>>, %arg5: memref<16x64xbf16, #tpu.memory_space<vmem>>) attributes {dimension_semantics = [#tpu.dimension_semantics<parallel>, #tpu.dimension_semantics<parallel>], iteration_bounds = array<i64: 1, 1>, scalar_prefetch = 0 : i64, scratch_operands = 0 : i64, tpu.core_type = #tpu.core_type<tc>, window_params = [{transform_indices = @transform_0, window_bounds = array<i64: 16, 32>}, {transform_indices = @transform_1, window_bounds = array<i64: 32, 64>}, {transform_indices = @transform_2, window_bounds = array<i64: 1, 64>}, {transform_indices = @transform_3, window_bounds = array<i64: 16, 64>}]} {
    %c0 = arith.constant 0 : index
    %c0_0 = arith.constant 0 : index
    %0 = vector.load %arg2[%c0, %c0_0] : memref<16x32xf32, #tpu.memory_space<vmem>>, vector<16x32xf32>
    %1 = arith.truncf %0 : vector<16x32xf32> to vector<16x32xbf16>
    %c0_1 = arith.constant 0 : index
    %c0_2 = arith.constant 0 : index
    %2 = vector.load %arg3[%c0_1, %c0_2] : memref<32x64xbf16, #tpu.memory_space<vmem>>, vector<32x64xbf16>
    %cst = arith.constant dense<0.000000e+00> : vector<16x64xf32>
    %3 = tpu.matmul %1, %2, %cst {dimension_numbers = #tpu.dot_dimension_numbers<[1], [0], [0], [1], [0, 0, 1, 1], [], []>} : vector<16x32xbf16>, vector<32x64xbf16>, vector<16x64xf32> -> vector<16x64xf32>
    %c0_3 = arith.constant 0 : index
    %c0_4 = arith.constant 0 : index
    %4 = vector.load %arg4[%c0_3, %c0_4] : memref<1x64xf32, #tpu.memory_space<vmem>>, vector<1x64xf32>
    %5 = vector.broadcast %4 : vector<1x64xf32> to vector<16x64xf32>
    %6 = arith.addf %3, %5 : vector<16x64xf32>
    %7 = arith.truncf %6 : vector<16x64xf32> to vector<16x64xbf16>
    %c0_5 = arith.constant 0 : index
    %c0_6 = arith.constant 0 : index
    %8 = vector.load %arg5[%c0_5, %c0_6] : memref<16x64xbf16, #tpu.memory_space<vmem>>, vector<16x64xbf16>
    tpu.vector_store %arg5[%c0_5, %c0_6], %7 {strides = array<i32>} : memref<16x64xbf16, #tpu.memory_space<vmem>>, vector<16x64xbf16>,
    return
  }
  func.func @transform_0(%arg0: i32, %arg1: i32) -> (i32, i32) {
    %c0_i32 = arith.constant 0 : i32
    %c0_i32_0 = arith.constant 0 : i32
    return %arg0, %c0_i32 : i32, i32
  }
  func.func @transform_1(%arg0: i32, %arg1: i32) -> (i32, i32) {
    %c0_i32 = arith.constant 0 : i32
    %c0_i32_0 = arith.constant 0 : i32
    return %c0_i32, %arg1 : i32, i32
  }
  func.func @transform_2(%arg0: i32, %arg1: i32) -> (i32, i32) {
    %c0_i32 = arith.constant 0 : i32
    %c0_i32_0 = arith.constant 0 : i32
    return %c0_i32, %arg1 : i32, i32
  }
  func.func @transform_3(%arg0: i32, %arg1: i32) -> (i32, i32) {
    %c0_i32 = arith.constant 0 : i32
    return %arg0, %arg1 : i32, i32
  }
}

module attributes {stable_mosaic.version = 11 : i64} {
  func.func @_cross_attn_kernel(%arg0: i32, %arg1: memref<1x8x32xbf16, #tpu.memory_space<vmem>>, %arg2: memref<1x8x64xbf16, #tpu.memory_space<vmem>>, %arg3: memref<1x1x8xf32, #tpu.memory_space<vmem>>, %arg4: memref<1x8x32xbf16, #tpu.memory_space<vmem>>) attributes {dimension_semantics = [#tpu.dimension_semantics<parallel>], iteration_bounds = array<i64: 2>, scalar_prefetch = 0 : i64, scratch_operands = 0 : i64, tpu.core_type = #tpu.core_type<tc>, window_params = [{transform_indices = @transform_0, window_bounds = array<i64: 1, 8, 32>}, {transform_indices = @transform_1, window_bounds = array<i64: 1, 8, 64>}, {transform_indices = @transform_2, window_bounds = array<i64: 1, 1, 8>}, {transform_indices = @transform_3, window_bounds = array<i64: 1, 8, 32>}]} {
    %c0 = arith.constant 0 : index
    %c0_0 = arith.constant 0 : index
    %c0_1 = arith.constant 0 : index
    %0 = vector.load %arg2[%c0, %c0_0, %c0_1] : memref<1x8x64xbf16, #tpu.memory_space<vmem>>, vector<1x8x64xbf16>
    %1 = vector.shape_cast %0 : vector<1x8x64xbf16> to vector<8x64xbf16>
    %c0_2 = arith.constant 0 : index
    %c0_3 = arith.constant 0 : index
    %c0_4 = arith.constant 0 : index
    %2 = vector.load %arg1[%c0_2, %c0_3, %c0_4] : memref<1x8x32xbf16, #tpu.memory_space<vmem>>, vector<1x8x32xbf16>
    %3 = vector.shape_cast %2 : vector<1x8x32xbf16> to vector<8x32xbf16>
    %4 = vector.extract_strided_slice %1 {offsets = [0, 0], sizes = [8, 32], strides = [1, 1]} : vector<8x64xbf16> to vector<8x32xbf16>
    %5 = vector.extract_strided_slice %1 {offsets = [0, 32], sizes = [8, 32], strides = [1, 1]} : vector<8x64xbf16> to vector<8x32xbf16>
    %c0_5 = arith.constant 0 : index
    %c0_6 = arith.constant 0 : index
    %c0_7 = arith.constant 0 : index
    %6 = vector.load %arg3[%c0_5, %c0_6, %c0_7] : memref<1x1x8xf32, #tpu.memory_space<vmem>>, vector<1x1x8xf32>
    %7 = vector.shape_cast %6 : vector<1x1x8xf32> to vector<1x8xf32>
    %8 = vector.extract_strided_slice %3 {offsets = [0, 0], sizes = [8, 8], strides = [1, 1]} : vector<8x32xbf16> to vector<8x8xbf16>
    %9 = vector.extract_strided_slice %4 {offsets = [0, 0], sizes = [8, 8], strides = [1, 1]} : vector<8x32xbf16> to vector<8x8xbf16>
    %10 = vector.extract_strided_slice %5 {offsets = [0, 0], sizes = [8, 8], strides = [1, 1]} : vector<8x32xbf16> to vector<8x8xbf16>
    %cst = arith.constant dense<0.000000e+00> : vector<8x8xf32>
    %11 = tpu.matmul %8, %9, %cst {dimension_numbers = #tpu.dot_dimension_numbers<[1], [1], [0], [0], [0, 0, 1, 0], [], []>} : vector<8x8xbf16>, vector<8x8xbf16>, vector<8x8xf32> -> vector<8x8xf32>
    %cst_8 = arith.constant 0.353553385 : f32
    %12 = vector.broadcast %cst_8 : f32 to vector<8x8xf32>
    %13 = arith.mulf %11, %12 : vector<8x8xf32>
    %cst_9 = arith.constant 0.000000e+00 : f32
    %14 = vector.broadcast %cst_9 : f32 to vector<1x8xf32>
    %15 = arith.cmpf oeq, %7, %14 : vector<1x8xf32>
    %cst_10 = arith.constant -9.99999974E-5 : f32
    %16 = vector.shape_cast %15 : vector<1x8xi1> to vector<1x8xi1>
    %17 = vector.broadcast %16 : vector<1x8xi1> to vector<8x8xi1>
    %18 = vector.broadcast %cst_10 : f32 to vector<8x8xf32>
    %19 = arith.select %17, %18, %13 : vector<8x8xi1>, vector<8x8xf32>
    %cst_11 = arith.constant dense<0xFF800000> : vector<8xf32>
    %20 = vector.multi_reduction <maximumf>, %19, %cst_11 [1] : vector<8x8xf32> to vector<8xf32>
    %21 = vector.shape_cast %20 : vector<8xf32> to vector<8x1xf32>
    %22 = vector.broadcast %21 : vector<8x1xf32> to vector<8x8xf32>
    %23 = arith.subf %19, %22 : vector<8x8xf32>
    %24 = math.exp %23 : vector<8x8xf32>
    %cst_12 = arith.constant dense<0.000000e+00> : vector<8xf32>
    %25 = vector.multi_reduction <add>, %24, %cst_12 [1] : vector<8x8xf32> to vector<8xf32>
    %26 = vector.shape_cast %25 : vector<8xf32> to vector<8x1xf32>
    %27 = tpu.reciprocal %26 {approx = true} : vector<8x1xf32> -> vector<8x1xf32>
    %28 = arith.mulf %26, %27 : vector<8x1xf32>
    %cst_13 = arith.constant 2.000000e+00 : f32
    %29 = vector.broadcast %cst_13 : f32 to vector<8x1xf32>
    %30 = arith.subf %29, %28 : vector<8x1xf32>
    %31 = arith.mulf %27, %30 : vector<8x1xf32>
    %32 = vector.broadcast %31 : vector<8x1xf32> to vector<8x8xf32>
    %33 = arith.mulf %24, %32 : vector<8x8xf32>
    %34 = arith.truncf %33 : vector<8x8xf32> to vector<8x8xbf16>
    %cst_14 = arith.constant dense<0.000000e+00> : vector<8x8xf32>
    %35 = tpu.matmul %34, %10, %cst_14 {dimension_numbers = #tpu.dot_dimension_numbers<[1], [0], [0], [1], [0, 0, 1, 1], [], []>} : vector<8x8xbf16>, vector<8x8xbf16>, vector<8x8xf32> -> vector<8x8xf32>
    %36 = vector.extract_strided_slice %3 {offsets = [0, 8], sizes = [8, 8], strides = [1, 1]} : vector<8x32xbf16> to vector<8x8xbf16>
    %37 = vector.extract_strided_slice %4 {offsets = [0, 8], sizes = [8, 8], strides = [1, 1]} : vector<8x32xbf16> to vector<8x8xbf16>
    %38 = vector.extract_strided_slice %5 {offsets = [0, 8], sizes = [8, 8], strides = [1, 1]} : vector<8x32xbf16> to vector<8x8xbf16>
    %cst_15 = arith.constant dense<0.000000e+00> : vector<8x8xf32>
    %39 = tpu.matmul %36, %37, %cst_15 {dimension_numbers = #tpu.dot_dimension_numbers<[1], [1], [0], [0], [0, 0, 1, 0], [], []>} : vector<8x8xbf16>, vector<8x8xbf16>, vector<8x8xf32> -> vector<8x8xf32>
    %cst_16 = arith.constant 0.353553385 : f32
    %40 = vector.broadcast %cst_16 : f32 to vector<8x8xf32>
    %41 = arith.mulf %39, %40 : vector<8x8xf32>
    %cst_17 = arith.constant 0.000000e+00 : f32
    %42 = vector.broadcast %cst_17 : f32 to vector<1x8xf32>
    %43 = arith.cmpf oeq, %7, %42 : vector<1x8xf32>
    %cst_18 = arith.constant -9.99999974E-5 : f32
    %44 = vector.shape_cast %43 : vector<1x8xi1> to vector<1x8xi1>
    %45 = vector.broadcast %44 : vector<1x8xi1> to vector<8x8xi1>
    %46 = vector.broadcast %cst_18 : f32 to vector<8x8xf32>
    %47 = arith.select %45, %46, %41 : vector<8x8xi1>, vector<8x8xf32>
    %cst_19 = arith.constant dense<0xFF800000> : vector<8xf32>
    %48 = vector.multi_reduction <maximumf>, %47, %cst_19 [1] : vector<8x8xf32> to vector<8xf32>
    %49 = vector.shape_cast %48 : vector<8xf32> to vector<8x1xf32>
    %50 = vector.broadcast %49 : vector<8x1xf32> to vector<8x8xf32>
    %51 = arith.subf %47, %50 : vector<8x8xf32>
    %52 = math.exp %51 : vector<8x8xf32>
    %cst_20 = arith.constant dense<0.000000e+00> : vector<8xf32>
    %53 = vector.multi_reduction <add>, %52, %cst_20 [1] : vector<8x8xf32> to vector<8xf32>
    %54 = vector.shape_cast %53 : vector<8xf32> to vector<8x1xf32>
    %55 = tpu.reciprocal %54 {approx = true} : vector<8x1xf32> -> vector<8x1xf32>
    %56 = arith.mulf %54, %55 : vector<8x1xf32>
    %cst_21 = arith.constant 2.000000e+00 : f32
    %57 = vector.broadcast %cst_21 : f32 to vector<8x1xf32>
    %58 = arith.subf %57, %56 : vector<8x1xf32>
    %59 = arith.mulf %55, %58 : vector<8x1xf32>
    %60 = vector.broadcast %59 : vector<8x1xf32> to vector<8x8xf32>
    %61 = arith.mulf %52, %60 : vector<8x8xf32>
    %62 = arith.truncf %61 : vector<8x8xf32> to vector<8x8xbf16>
    %cst_22 = arith.constant dense<0.000000e+00> : vector<8x8xf32>
    %63 = tpu.matmul %62, %38, %cst_22 {dimension_numbers = #tpu.dot_dimension_numbers<[1], [0], [0], [1], [0, 0, 1, 1], [], []>} : vector<8x8xbf16>, vector<8x8xbf16>, vector<8x8xf32> -> vector<8x8xf32>
    %64 = vector.extract_strided_slice %3 {offsets = [0, 16], sizes = [8, 8], strides = [1, 1]} : vector<8x32xbf16> to vector<8x8xbf16>
    %65 = vector.extract_strided_slice %4 {offsets = [0, 16], sizes = [8, 8], strides = [1, 1]} : vector<8x32xbf16> to vector<8x8xbf16>
    %66 = vector.extract_strided_slice %5 {offsets = [0, 16], sizes = [8, 8], strides = [1, 1]} : vector<8x32xbf16> to vector<8x8xbf16>
    %cst_23 = arith.constant dense<0.000000e+00> : vector<8x8xf32>
    %67 = tpu.matmul %64, %65, %cst_23 {dimension_numbers = #tpu.dot_dimension_numbers<[1], [1], [0], [0], [0, 0, 1, 0], [], []>} : vector<8x8xbf16>, vector<8x8xbf16>, vector<8x8xf32> -> vector<8x8xf32>
    %cst_24 = arith.constant 0.353553385 : f32
    %68 = vector.broadcast %cst_24 : f32 to vector<8x8xf32>
    %69 = arith.mulf %67, %68 : vector<8x8xf32>
    %cst_25 = arith.constant 0.000000e+00 : f32
    %70 = vector.broadcast %cst_25 : f32 to vector<1x8xf32>
    %71 = arith.cmpf oeq, %7, %70 : vector<1x8xf32>
    %cst_26 = arith.constant -9.99999974E-5 : f32
    %72 = vector.shape_cast %71 : vector<1x8xi1> to vector<1x8xi1>
    %73 = vector.broadcast %72 : vector<1x8xi1> to vector<8x8xi1>
    %74 = vector.broadcast %cst_26 : f32 to vector<8x8xf32>
    %75 = arith.select %73, %74, %69 : vector<8x8xi1>, vector<8x8xf32>
    %cst_27 = arith.constant dense<0xFF800000> : vector<8xf32>
    %76 = vector.multi_reduction <maximumf>, %75, %cst_27 [1] : vector<8x8xf32> to vector<8xf32>
    %77 = vector.shape_cast %76 : vector<8xf32> to vector<8x1xf32>
    %78 = vector.broadcast %77 : vector<8x1xf32> to vector<8x8xf32>
    %79 = arith.subf %75, %78 : vector<8x8xf32>
    %80 = math.exp %79 : vector<8x8xf32>
    %cst_28 = arith.constant dense<0.000000e+00> : vector<8xf32>
    %81 = vector.multi_reduction <add>, %80, %cst_28 [1] : vector<8x8xf32> to vector<8xf32>
    %82 = vector.shape_cast %81 : vector<8xf32> to vector<8x1xf32>
    %83 = tpu.reciprocal %82 {approx = true} : vector<8x1xf32> -> vector<8x1xf32>
    %84 = arith.mulf %82, %83 : vector<8x1xf32>
    %cst_29 = arith.constant 2.000000e+00 : f32
    %85 = vector.broadcast %cst_29 : f32 to vector<8x1xf32>
    %86 = arith.subf %85, %84 : vector<8x1xf32>
    %87 = arith.mulf %83, %86 : vector<8x1xf32>
    %88 = vector.broadcast %87 : vector<8x1xf32> to vector<8x8xf32>
    %89 = arith.mulf %80, %88 : vector<8x8xf32>
    %90 = arith.truncf %89 : vector<8x8xf32> to vector<8x8xbf16>
    %cst_30 = arith.constant dense<0.000000e+00> : vector<8x8xf32>
    %91 = tpu.matmul %90, %66, %cst_30 {dimension_numbers = #tpu.dot_dimension_numbers<[1], [0], [0], [1], [0, 0, 1, 1], [], []>} : vector<8x8xbf16>, vector<8x8xbf16>, vector<8x8xf32> -> vector<8x8xf32>
    %92 = vector.extract_strided_slice %3 {offsets = [0, 24], sizes = [8, 8], strides = [1, 1]} : vector<8x32xbf16> to vector<8x8xbf16>
    %93 = vector.extract_strided_slice %4 {offsets = [0, 24], sizes = [8, 8], strides = [1, 1]} : vector<8x32xbf16> to vector<8x8xbf16>
    %94 = vector.extract_strided_slice %5 {offsets = [0, 24], sizes = [8, 8], strides = [1, 1]} : vector<8x32xbf16> to vector<8x8xbf16>
    %cst_31 = arith.constant dense<0.000000e+00> : vector<8x8xf32>
    %95 = tpu.matmul %92, %93, %cst_31 {dimension_numbers = #tpu.dot_dimension_numbers<[1], [1], [0], [0], [0, 0, 1, 0], [], []>} : vector<8x8xbf16>, vector<8x8xbf16>, vector<8x8xf32> -> vector<8x8xf32>
    %cst_32 = arith.constant 0.353553385 : f32
    %96 = vector.broadcast %cst_32 : f32 to vector<8x8xf32>
    %97 = arith.mulf %95, %96 : vector<8x8xf32>
    %cst_33 = arith.constant 0.000000e+00 : f32
    %98 = vector.broadcast %cst_33 : f32 to vector<1x8xf32>
    %99 = arith.cmpf oeq, %7, %98 : vector<1x8xf32>
    %cst_34 = arith.constant -9.99999974E-5 : f32
    %100 = vector.shape_cast %99 : vector<1x8xi1> to vector<1x8xi1>
    %101 = vector.broadcast %100 : vector<1x8xi1> to vector<8x8xi1>
    %102 = vector.broadcast %cst_34 : f32 to vector<8x8xf32>
    %103 = arith.select %101, %102, %97 : vector<8x8xi1>, vector<8x8xf32>
    %cst_35 = arith.constant dense<0xFF800000> : vector<8xf32>
    %104 = vector.multi_reduction <maximumf>, %103, %cst_35 [1] : vector<8x8xf32> to vector<8xf32>
    %105 = vector.shape_cast %104 : vector<8xf32> to vector<8x1xf32>
    %106 = vector.broadcast %105 : vector<8x1xf32> to vector<8x8xf32>
    %107 = arith.subf %103, %106 : vector<8x8xf32>
    %108 = math.exp %107 : vector<8x8xf32>
    %cst_36 = arith.constant dense<0.000000e+00> : vector<8xf32>
    %109 = vector.multi_reduction <add>, %108, %cst_36 [1] : vector<8x8xf32> to vector<8xf32>
    %110 = vector.shape_cast %109 : vector<8xf32> to vector<8x1xf32>
    %111 = tpu.reciprocal %110 {approx = true} : vector<8x1xf32> -> vector<8x1xf32>
    %112 = arith.mulf %110, %111 : vector<8x1xf32>
    %cst_37 = arith.constant 2.000000e+00 : f32
    %113 = vector.broadcast %cst_37 : f32 to vector<8x1xf32>
    %114 = arith.subf %113, %112 : vector<8x1xf32>
    %115 = arith.mulf %111, %114 : vector<8x1xf32>
    %116 = vector.broadcast %115 : vector<8x1xf32> to vector<8x8xf32>
    %117 = arith.mulf %108, %116 : vector<8x8xf32>
    %118 = arith.truncf %117 : vector<8x8xf32> to vector<8x8xbf16>
    %cst_38 = arith.constant dense<0.000000e+00> : vector<8x8xf32>
    %119 = tpu.matmul %118, %94, %cst_38 {dimension_numbers = #tpu.dot_dimension_numbers<[1], [0], [0], [1], [0, 0, 1, 1], [], []>} : vector<8x8xbf16>, vector<8x8xbf16>, vector<8x8xf32> -> vector<8x8xf32>
    %120 = tpu.concatenate %35, %63, %91, %119 in 1 : vector<8x8xf32>, vector<8x8xf32>, vector<8x8xf32>, vector<8x8xf32> -> vector<8x32xf32>
    %121 = arith.truncf %120 : vector<8x32xf32> to vector<8x32xbf16>
    %c0_39 = arith.constant 0 : index
    %c0_40 = arith.constant 0 : index
    %c0_41 = arith.constant 0 : index
    %122 = vector.load %arg4[%c0_39, %c0_40, %c0_41] : memref<1x8x32xbf16, #tpu.memory_space<vmem>>, vector<1x8x32xbf16>
    %123 = vector.shape_cast %122 : vector<1x8x32xbf16> to vector<8x32xbf16>
    %124 = vector.shape_cast %121 : vector<8x32xbf16> to vector<1x8x32xbf16>
    tpu.vector_store %arg4[%c0_39, %c0_40, %c0_41], %124 {strides = array<i32>} : memref<1x8x32xbf16, #tpu.memory_space<vmem>>, vector<1x8x32xbf16>,
    return
  }
  func.func @transform_0(%arg0: i32) -> (i32, i32, i32) {
    %c0_i32 = arith.constant 0 : i32
    %c0_i32_0 = arith.constant 0 : i32
    %c0_i32_1 = arith.constant 0 : i32
    return %arg0, %c0_i32, %c0_i32_0 : i32, i32, i32
  }
  func.func @transform_1(%arg0: i32) -> (i32, i32, i32) {
    %c0_i32 = arith.constant 0 : i32
    %c0_i32_0 = arith.constant 0 : i32
    %c0_i32_1 = arith.constant 0 : i32
    return %arg0, %c0_i32, %c0_i32_0 : i32, i32, i32
  }
  func.func @transform_2(%arg0: i32) -> (i32, i32, i32) {
    %c0_i32 = arith.constant 0 : i32
    %c0_i32_0 = arith.constant 0 : i32
    %c0_i32_1 = arith.constant 0 : i32
    return %arg0, %c0_i32, %c0_i32_0 : i32, i32, i32
  }
  func.func @transform_3(%arg0: i32) -> (i32, i32, i32) {
    %c0_i32 = arith.constant 0 : i32
    %c0_i32_0 = arith.constant 0 : i32
    %c0_i32_1 = arith.constant 0 : i32
    return %arg0, %c0_i32, %c0_i32_0 : i32, i32, i32
  }
}

module attributes {stable_mosaic.version = 11 : i64} {
  func.func @_ln_linear_kernel(%arg0: i32, %arg1: i32, %arg2: memref<16x32xf32, #tpu.memory_space<vmem>>, %arg3: memref<1x32xf32, #tpu.memory_space<vmem>>, %arg4: memref<1x32xf32, #tpu.memory_space<vmem>>, %arg5: memref<32x64xbf16, #tpu.memory_space<vmem>>, %arg6: memref<1x64xf32, #tpu.memory_space<vmem>>, %arg7: memref<16x64xbf16, #tpu.memory_space<vmem>>) attributes {dimension_semantics = [#tpu.dimension_semantics<parallel>, #tpu.dimension_semantics<parallel>], iteration_bounds = array<i64: 1, 1>, scalar_prefetch = 0 : i64, scratch_operands = 0 : i64, tpu.core_type = #tpu.core_type<tc>, window_params = [{transform_indices = @transform_0, window_bounds = array<i64: 16, 32>}, {pipeline_mode = #tpu.pipeline_mode<synchronous>, transform_indices = @transform_1, window_bounds = array<i64: 1, 32>}, {pipeline_mode = #tpu.pipeline_mode<synchronous>, transform_indices = @transform_2, window_bounds = array<i64: 1, 32>}, {transform_indices = @transform_3, window_bounds = array<i64: 32, 64>}, {transform_indices = @transform_4, window_bounds = array<i64: 1, 64>}, {transform_indices = @transform_5, window_bounds = array<i64: 16, 64>}]} {
    %c0 = arith.constant 0 : index
    %c0_0 = arith.constant 0 : index
    %0 = vector.load %arg2[%c0, %c0_0] : memref<16x32xf32, #tpu.memory_space<vmem>>, vector<16x32xf32>
    %cst = arith.constant dense<0.000000e+00> : vector<16xf32>
    %1 = vector.multi_reduction <add>, %0, %cst [1] : vector<16x32xf32> to vector<16xf32>
    %2 = vector.shape_cast %1 : vector<16xf32> to vector<16x1xf32>
    %cst_1 = arith.constant 3.200000e+01 : f32
    %3 = vector.broadcast %cst_1 : f32 to vector<16x1xf32>
    %4 = arith.divf %2, %3 : vector<16x1xf32>
    %5 = vector.broadcast %4 : vector<16x1xf32> to vector<16x32xf32>
    %6 = arith.subf %0, %5 : vector<16x32xf32>
    %7 = arith.mulf %6, %6 : vector<16x32xf32>
    %cst_2 = arith.constant dense<0.000000e+00> : vector<16xf32>
    %8 = vector.multi_reduction <add>, %7, %cst_2 [1] : vector<16x32xf32> to vector<16xf32>
    %9 = vector.shape_cast %8 : vector<16xf32> to vector<16x1xf32>
    %cst_3 = arith.constant 0.0322580636 : f32
    %10 = vector.broadcast %cst_3 : f32 to vector<16x1xf32>
    %11 = arith.mulf %9, %10 : vector<16x1xf32>
    %12 = math.sqrt %11 : vector<16x1xf32>
    %cst_4 = arith.constant 9.99999997E-7 : f32
    %13 = vector.broadcast %cst_4 : f32 to vector<16x1xf32>
    %14 = arith.addf %12, %13 : vector<16x1xf32>
    %15 = tpu.reciprocal %14 {approx = true} : vector<16x1xf32> -> vector<16x1xf32>
    %16 = arith.mulf %14, %15 : vector<16x1xf32>
    %cst_5 = arith.constant 2.000000e+00 : f32
    %17 = vector.broadcast %cst_5 : f32 to vector<16x1xf32>
    %18 = arith.subf %17, %16 : vector<16x1xf32>
    %19 = arith.mulf %15, %18 : vector<16x1xf32>
    %c0_6 = arith.constant 0 : index
    %c0_7 = arith.constant 0 : index
    %20 = vector.load %arg3[%c0_6, %c0_7] : memref<1x32xf32, #tpu.memory_space<vmem>>, vector<1x32xf32>
    %21 = vector.broadcast %20 : vector<1x32xf32> to vector<16x32xf32>
    %22 = arith.mulf %21, %6 : vector<16x32xf32>
    %23 = vector.broadcast %19 : vector<16x1xf32> to vector<16x32xf32>
    %24 = arith.mulf %22, %23 : vector<16x32xf32>
    %c0_8 = arith.constant 0 : index
    %c0_9 = arith.constant 0 : index
    %25 = vector.load %arg4[%c0_8, %c0_9] : memref<1x32xf32, #tpu.memory_space<vmem>>, vector<1x32xf32>
    %26 = vector.broadcast %25 : vector<1x32xf32> to vector<16x32xf32>
    %27 = arith.addf %24, %26 : vector<16x32xf32>
    %28 = arith.truncf %27 : vector<16x32xf32> to vector<16x32xbf16>
    %c0_10 = arith.constant 0 : index
    %c0_11 = arith.constant 0 : index
    %29 = vector.load %arg5[%c0_10, %c0_11] : memref<32x64xbf16, #tpu.memory_space<vmem>>, vector<32x64xbf16>
    %cst_12 = arith.constant dense<0.000000e+00> : vector<16x64xf32>
    %30 = tpu.matmul %28, %29, %cst_12 {dimension_numbers = #tpu.dot_dimension_numbers<[1], [0], [0], [1], [0, 0, 1, 1], [], []>} : vector<16x32xbf16>, vector<32x64xbf16>, vector<16x64xf32> -> vector<16x64xf32>
    %c0_13 = arith.constant 0 : index
    %c0_14 = arith.constant 0 : index
    %31 = vector.load %arg6[%c0_13, %c0_14] : memref<1x64xf32, #tpu.memory_space<vmem>>, vector<1x64xf32>
    %32 = vector.broadcast %31 : vector<1x64xf32> to vector<16x64xf32>
    %33 = arith.addf %30, %32 : vector<16x64xf32>
    %cst_15 = arith.constant 0.000000e+00 : f32
    %34 = vector.broadcast %cst_15 : f32 to vector<16x64xf32>
    %35 = arith.maximumf %33, %34 : vector<16x64xf32>
    %36 = arith.truncf %35 : vector<16x64xf32> to vector<16x64xbf16>
    %c0_16 = arith.constant 0 : index
    %c0_17 = arith.constant 0 : index
    %37 = vector.load %arg7[%c0_16, %c0_17] : memref<16x64xbf16, #tpu.memory_space<vmem>>, vector<16x64xbf16>
    tpu.vector_store %arg7[%c0_16, %c0_17], %36 {strides = array<i32>} : memref<16x64xbf16, #tpu.memory_space<vmem>>, vector<16x64xbf16>,
    return
  }
  func.func @transform_0(%arg0: i32, %arg1: i32) -> (i32, i32) {
    %c0_i32 = arith.constant 0 : i32
    %c0_i32_0 = arith.constant 0 : i32
    return %arg0, %c0_i32 : i32, i32
  }
  func.func @transform_1(%arg0: i32, %arg1: i32) -> (i32, i32) {
    %c0_i32 = arith.constant 0 : i32
    %c0_i32_0 = arith.constant 0 : i32
    %c0_i32_1 = arith.constant 0 : i32
    return %c0_i32, %c0_i32_0 : i32, i32
  }
  func.func @transform_2(%arg0: i32, %arg1: i32) -> (i32, i32) {
    %c0_i32 = arith.constant 0 : i32
    %c0_i32_0 = arith.constant 0 : i32
    %c0_i32_1 = arith.constant 0 : i32
    return %c0_i32, %c0_i32_0 : i32, i32
  }
  func.func @transform_3(%arg0: i32, %arg1: i32) -> (i32, i32) {
    %c0_i32 = arith.constant 0 : i32
    %c0_i32_0 = arith.constant 0 : i32
    return %c0_i32, %arg1 : i32, i32
  }
  func.func @transform_4(%arg0: i32, %arg1: i32) -> (i32, i32) {
    %c0_i32 = arith.constant 0 : i32
    %c0_i32_0 = arith.constant 0 : i32
    return %c0_i32, %arg1 : i32, i32
  }
  func.func @transform_5(%arg0: i32, %arg1: i32) -> (i32, i32) {
    %c0_i32 = arith.constant 0 : i32
    return %arg0, %arg1 : i32, i32
  }
}

module attributes {stable_mosaic.version = 11 : i64} {
  func.func @_linear_kernel(%arg0: i32, %arg1: i32, %arg2: memref<16x64xbf16, #tpu.memory_space<vmem>>, %arg3: memref<64x32xbf16, #tpu.memory_space<vmem>>, %arg4: memref<1x32xf32, #tpu.memory_space<vmem>>, %arg5: memref<16x32xf32, #tpu.memory_space<vmem>>, %arg6: memref<16x32xf32, #tpu.memory_space<vmem>>) attributes {dimension_semantics = [#tpu.dimension_semantics<parallel>, #tpu.dimension_semantics<parallel>], iteration_bounds = array<i64: 1, 1>, scalar_prefetch = 0 : i64, scratch_operands = 0 : i64, tpu.core_type = #tpu.core_type<tc>, window_params = [{transform_indices = @transform_0, window_bounds = array<i64: 16, 64>}, {transform_indices = @transform_1, window_bounds = array<i64: 64, 32>}, {transform_indices = @transform_2, window_bounds = array<i64: 1, 32>}, {transform_indices = @transform_3, window_bounds = array<i64: 16, 32>}, {transform_indices = @transform_4, window_bounds = array<i64: 16, 32>}]} {
    %c0 = arith.constant 0 : index
    %c0_0 = arith.constant 0 : index
    %0 = vector.load %arg2[%c0, %c0_0] : memref<16x64xbf16, #tpu.memory_space<vmem>>, vector<16x64xbf16>
    %c0_1 = arith.constant 0 : index
    %c0_2 = arith.constant 0 : index
    %1 = vector.load %arg3[%c0_1, %c0_2] : memref<64x32xbf16, #tpu.memory_space<vmem>>, vector<64x32xbf16>
    %cst = arith.constant dense<0.000000e+00> : vector<16x32xf32>
    %2 = tpu.matmul %0, %1, %cst {dimension_numbers = #tpu.dot_dimension_numbers<[1], [0], [0], [1], [0, 0, 1, 1], [], []>} : vector<16x64xbf16>, vector<64x32xbf16>, vector<16x32xf32> -> vector<16x32xf32>
    %c0_3 = arith.constant 0 : index
    %c0_4 = arith.constant 0 : index
    %3 = vector.load %arg4[%c0_3, %c0_4] : memref<1x32xf32, #tpu.memory_space<vmem>>, vector<1x32xf32>
    %4 = vector.broadcast %3 : vector<1x32xf32> to vector<16x32xf32>
    %5 = arith.addf %2, %4 : vector<16x32xf32>
    %c0_5 = arith.constant 0 : index
    %c0_6 = arith.constant 0 : index
    %6 = vector.load %arg5[%c0_5, %c0_6] : memref<16x32xf32, #tpu.memory_space<vmem>>, vector<16x32xf32>
    %7 = arith.addf %5, %6 : vector<16x32xf32>
    %c0_7 = arith.constant 0 : index
    %c0_8 = arith.constant 0 : index
    %8 = vector.load %arg6[%c0_7, %c0_8] : memref<16x32xf32, #tpu.memory_space<vmem>>, vector<16x32xf32>
    tpu.vector_store %arg6[%c0_7, %c0_8], %7 {strides = array<i32>} : memref<16x32xf32, #tpu.memory_space<vmem>>, vector<16x32xf32>,
    return
  }
  func.func @transform_0(%arg0: i32, %arg1: i32) -> (i32, i32) {
    %c0_i32 = arith.constant 0 : i32
    %c0_i32_0 = arith.constant 0 : i32
    return %arg0, %c0_i32 : i32, i32
  }
  func.func @transform_1(%arg0: i32, %arg1: i32) -> (i32, i32) {
    %c0_i32 = arith.constant 0 : i32
    %c0_i32_0 = arith.constant 0 : i32
    return %c0_i32, %arg1 : i32, i32
  }
  func.func @transform_2(%arg0: i32, %arg1: i32) -> (i32, i32) {
    %c0_i32 = arith.constant 0 : i32
    %c0_i32_0 = arith.constant 0 : i32
    return %c0_i32, %arg1 : i32, i32
  }
  func.func @transform_3(%arg0: i32, %arg1: i32) -> (i32, i32) {
    %c0_i32 = arith.constant 0 : i32
    return %arg0, %arg1 : i32, i32
  }
  func.func @transform_4(%arg0: i32, %arg1: i32) -> (i32, i32) {
    %c0_i32 = arith.constant 0 : i32
    return %arg0, %arg1 : i32, i32
  }
}

</mosaic_0001>

<llo_original>
// kernel: decoder_layer.9
$region0: #{decoder_layer.9}
  #allocation0 [shape = 'u32[]', space=smem, size = 0x4, offset = 0x4, fixed_abs, tag = 'smem constant byte address 0x4 - core index']
  #allocation1 [shape = 'u32[72,128]{1,0:T(1,128)}', space=vmem, size = 0x9000, scoped, tag = 'internal scratch']
  %s0 = inlined_call_operand.hbm [shape: f32[16,32], index: 0, kind: input, shape index: {}]
  %s1 = inlined_call_operand.hbm [shape: f32[1,32], index: 1, kind: input, shape index: {}]
  %s2 = inlined_call_operand.hbm [shape: f32[1,32], index: 2, kind: input, shape index: {}]
  %s3 = inlined_call_operand.vmem [shape: bf16[32,96], index: 3, kind: input, shape index: {}]
  %s4 = inlined_call_operand.hbm [shape: f32[1,96], index: 4, kind: input, shape index: {}]
  %s5 = inlined_call_operand.vmem [shape: bf16[16,96], index: 5, kind: output, shape index: {}]
  %s6 = sld [smem:[#allocation0]]
  $region46: #{decoder_layer.9} parent=0
    _
  %s8 = ssub.s32 1, %s6
  %s9 = scalar_select 0, %s8, %s6
  $region1: #{decoder_layer.9} parent=0
    #allocation2 [shape = 'u8[8192]{0}', space=vmem, size = 0x2000, scoped, tag = 'input window, operand 0, single buffered']
    #allocation3 [shape = 's32[1]{0}', space=sflag, size = 0x4, scoped, tag = 'scoped memory for decoder_layer.9']
    #allocation4 [shape = 'u8[512]{0}', space=vmem, size = 0x400, scoped, tag = 'input window, operand 1, single buffered']
    #allocation5 [shape = 's32[1]{0}', space=sflag, size = 0x4, scoped, tag = 'scoped memory for decoder_layer.9']
    #allocation6 [shape = 'u8[512]{0}', space=vmem, size = 0x400, scoped, tag = 'input window, operand 2, single buffered']
    #allocation7 [shape = 'u8[512]{0}', space=vmem, size = 0x400, scoped, tag = 'input window, operand 4, single buffered']
    #allocation8 [shape = 's32[1]{0}', space=sflag, size = 0x4, scoped, tag = 'scoped memory for decoder_layer.9']
    %10 = vsyncpa [#allocation3], 0
    %11 = vsyncpa [#allocation5], 0
    %12 = vsyncpa [#allocation8], 0
    // Predicated region
    $region2: #{decoder_layer.9} parent=1 // pred_check
      _
    $region3: #{decoder_layer.9} parent=1 // pred_check_branch
      %14 = sbr.rel (0) target = $region5
    $region4: #{decoder_layer.9} parent=1 // pred_region
      %16 = vsyncadd [#allocation3], 0
      %s17 = sshll.u32 %s0, 4
      %s18 = int_to_ptr.hbm [resolvable:$true] %s17
      %s19 = sshll.u32 [#allocation2], 4
      %s20 = int_to_ptr.vmem [resolvable:$true] %s19
      %25 = dma.hbm_to_vmem [thread:$0]  %s18, 256, %s20, [#allocation3], 128, 128, 8
    $region5: #{decoder_layer.9} parent=1 // pred_fallthru
      _
    // Predicated region
    $region6: #{decoder_layer.9} parent=1 // pred_check
      _
    $region7: #{decoder_layer.9} parent=1 // pred_check_branch
      %27 = sbr.rel (0) target = $region9
    $region8: #{decoder_layer.9} parent=1 // pred_region
      %29 = vsyncadd [#allocation5], 0
      %s31 = sshll.u32 %s1, 4
      %s32 = int_to_ptr.hbm [resolvable:$true] %s31
      %s33 = sshll.u32 [#allocation4], 4
      %s34 = int_to_ptr.vmem [resolvable:$true] %s33
      %36 = dma.hbm_to_vmem [thread:$0]  %s32, 16, %s34, [#allocation5]
    $region9: #{decoder_layer.9} parent=1 // pred_fallthru
      _
    // Predicated region
    $region10: #{decoder_layer.9} parent=1 // pred_check
      _
    $region11: #{decoder_layer.9} parent=1 // pred_check_branch
      %38 = sbr.rel (0) target = $region13
    $region12: #{decoder_layer.9} parent=1 // pred_region
      %40 = vsyncadd [#allocation5], 0
      %s42 = sshll.u32 %s2, 4
      %s43 = int_to_ptr.hbm [resolvable:$true] %s42
      %s44 = sshll.u32 [#allocation6], 4
      %s45 = int_to_ptr.vmem [resolvable:$true] %s44
      %47 = dma.hbm_to_vmem [thread:$0]  %s43, 16, %s45, [#allocation5]
    $region13: #{decoder_layer.9} parent=1 // pred_fallthru
      _
    // Predicated region
    $region14: #{decoder_layer.9} parent=1 // pred_check
      _
    $region15: #{decoder_layer.9} parent=1 // pred_check_branch
      %49 = sbr.rel (0) target = $region17
    $region16: #{decoder_layer.9} parent=1 // pred_region
      _
    $region17: #{decoder_layer.9} parent=1 // pred_fallthru
      _
    // Predicated region
    $region18: #{decoder_layer.9} parent=1 // pred_check
      _
    $region19: #{decoder_layer.9} parent=1 // pred_check_branch
      %51 = sbr.rel (0) target = $region21
    $region20: #{decoder_layer.9} parent=1 // pred_region
      %53 = vsyncadd [#allocation8], 0
      %s55 = sshll.u32 %s4, 4
      %s56 = int_to_ptr.hbm [resolvable:$true] %s55
      %s57 = sshll.u32 [#allocation7], 4
      %s58 = int_to_ptr.vmem [resolvable:$true] %s57
      %60 = dma.hbm_to_vmem [thread:$0]  %s56, 16, %s58, [#allocation8]
    $region21: #{decoder_layer.9} parent=1 // pred_fallthru
      _
    // Predicated region
    $region22: #{decoder_layer.9} parent=1 // pred_check
      _
    $region23: #{decoder_layer.9} parent=1 // pred_check_branch
      %62 = sbr.rel (0) target = $region25
    $region24: #{decoder_layer.9} parent=1 // pred_region
      %64 = dma.done [#allocation3], 256
    $region25: #{decoder_layer.9} parent=1 // pred_fallthru
      _
    // Predicated region
    $region26: #{decoder_layer.9} parent=1 // pred_check
      _
    $region27: #{decoder_layer.9} parent=1 // pred_check_branch
      %66 = sbr.rel (0) target = $region29
    $region28: #{decoder_layer.9} parent=1 // pred_region
      %68 = dma.done [#allocation5], 16
    $region29: #{decoder_layer.9} parent=1 // pred_fallthru
      _
    // Predicated region
    $region30: #{decoder_layer.9} parent=1 // pred_check
      _
    $region31: #{decoder_layer.9} parent=1 // pred_check_branch
      %70 = sbr.rel (0) target = $region33
    $region32: #{decoder_layer.9} parent=1 // pred_region
      %72 = dma.done [#allocation5], 16
    $region33: #{decoder_layer.9} parent=1 // pred_fallthru
      _
    // Predicated region
    $region34: #{decoder_layer.9} parent=1 // pred_check
      _
    $region35: #{decoder_layer.9} parent=1 // pred_check_branch
      %74 = sbr.rel (0) target = $region37
    $region36: #{decoder_layer.9} parent=1 // pred_region
      %76 = dma.done [#allocation8], 16
    $region37: #{decoder_layer.9} parent=1 // pred_fallthru
      _
    %v78 = vld [vmem:[#allocation2] sm:$0xff]
    %v79 = vld [vmem:[#allocation2 + $0x8] sm:$0xff]
    %vm80 = vcmask 261120
    %v81 = vsel %vm80, %v78, 0.0
    %82 = vadd.xlane.f32.xlu0 %v81
    %v83 = vpop.xlane.xlu0 %82
    %v84 = vsel %vm80, %v79, 0.0
    %85 = vadd.xlane.f32.xlu0 %v84
    %v86 = vpop.xlane.xlu0 %85
    %v87 = vrcp.pop 32.0
    %v88 = vmul.f32 32.0, %v87
    %v89 = vsub.f32 1.0, %v88
    %v90 = vmul.f32 %v87, %v89
    %v91 = vadd.f32 %v87, %v90
    %vm92 = vweird.f32 %v87
    %v93 = vsel %vm92, %v87, %v91
    %v94 = vmul.f32 %v83, %v93
    %v95 = vmul.f32 %v86, %v93
    %v96 = vsub.f32 %v78, %v94
    %v97 = vsub.f32 %v79, %v95
    %v98 = vmul.f32 %v96, %v96
    %v99 = vmul.f32 %v97, %v97
    %v100 = vsel %vm80, %v98, 0.0
    %101 = vadd.xlane.f32.xlu0 %v100
    %v102 = vpop.xlane.xlu0 %101
    %v103 = vsel %vm80, %v99, 0.0
    %104 = vadd.xlane.f32.xlu0 %v103
    %v105 = vpop.xlane.xlu0 %104
    %v106 = vmul.f32 %v102, 0.032258064
    %v107 = vmul.f32 %v105, 0.032258064
    %v108 = vrsqrt.pop %v106
    %v109 = vmul.f32 %v108, %v106
    %v110 = vmul.f32 %v109, %v108
    %v111 = vmul.f32 0.5, %v110
    %v112 = vsub.f32 1.5, %v111
    %v113 = vmul.f32 %v108, %v112
    %v114 = vmul.f32 %v106, %v113
    %vm115 = vcmp.eq.f32.partialorder %v106, inf
    %v116 = vsel %vm115, %v106, %v114
    %vm117 = vcmp.eq.f32.partialorder %v106, 0.0
    %v118 = vand.u32 %v106, 2147483648
    %v119 = vsel %vm117, %v118, %v116
    %v120 = vrsqrt.pop %v107
    %v121 = vmul.f32 %v120, %v107
    %v122 = vmul.f32 %v121, %v120
    %v123 = vmul.f32 0.5, %v122
    %v124 = vsub.f32 1.5, %v123
    %v125 = vmul.f32 %v120, %v124
    %v126 = vmul.f32 %v107, %v125
    %vm127 = vcmp.eq.f32.partialorder %v107, inf
    %v128 = vsel %vm127, %v107, %v126
    %vm129 = vcmp.eq.f32.partialorder %v107, 0.0
    %v130 = vand.u32 %v107, 2147483648
    %v131 = vsel %vm129, %v130, %v128
    %v132 = vadd.f32 %v119, 1e-06
    %v133 = vadd.f32 %v131, 1e-06
    %v134 = vrcp.pop %v132
    %v135 = vrcp.pop %v133
    %v136 = vmul.f32 %v132, %v134
    %v137 = vmul.f32 %v133, %v135
    %v138 = vsub.f32 2.0, %v136
    %v139 = vsub.f32 2.0, %v137
    %v140 = vmul.f32 %v134, %v138
    %v141 = vmul.f32 %v135, %v139
    %v142 = vld [vmem:[#allocation4] sm:$0x1]
    %v144 = vperm.slane %v142, 0
    %v146 = vmul.f32 %v144, %v96
    %v147 = vmul.f32 %v144, %v97
    %v148 = vmul.f32 %v146, %v140
    %v149 = vmul.f32 %v147, %v141
    %v150 = vld [vmem:[#allocation6] sm:$0x1]
    %v152 = vperm.slane %v150, 0
    %v154 = vadd.f32 %v148, %v152
    %v155 = vadd.f32 %v149, %v152
    %v156 = vpack.c.bf16 %v155, %v154
    %v157 = vld [vmem:[%s3] sm:$0xf]
    %v158 = vld [vmem:[%s3 + $0x4] sm:$0xf]
    %v159 = vld [vmem:[%s3 + $0x8] sm:$0xf]
    %v160 = vld [vmem:[%s3 + $0xc] sm:$0xf]
    %v161 = vld [vmem:[#allocation7] sm:$0x1]
    %v163 = vperm.slane %v161, 0
    %v169 = vunpack.c.l.b16 %v157
    %v170 = vunpack.c.l.b16 %v158
    %v171 = vunpack.c.l.b16 %v159
    %v172 = vunpack.c.l.b16 %v160
    %v173 = vpack.c.b16 %v170, %v169
    %v174 = vpack.c.b16 %v172, %v171
    %v178 = vsel %vm80, %v156, 0
    %180 = vmatpush.bf16.msra.mxu0 0
    %181 = vmatpush.bf16.msra.mxu0 0
    %182 = vmatpush.bf16.msra.mxu0 0
    %183 = vmatpush.bf16.msra.mxu0 0
    %184 = vmatpush.bf16.msra.mxu0 0
    %185 = vmatpush.bf16.msra.mxu0 0
    %186 = vmatpush.bf16.msra.mxu0 %v174
    %187 = vmatpush.bf16.msra.mxu0 %v173
    %188 = vmatmul.bf16.gmra.mxu0 %v178
    %v189 = vpop.f32.mrf.mxu0
    %v190 = vadd.f32 %v163, %v189
    %v191 = vpop.f32.mrf.mxu0
    %v192 = vadd.f32 %v163, %v191
    %193 = vdwg.mxu0
    %v194 = vpack.c.bf16 %v190, %v190
    %v195 = vpack.c.bf16 %v192, %v192
    %vm196 = vcmask 781312
    %197 = vst.msk [vmem:[%s5] sm:$0xf] %vm196, %v194
    %198 = vst.msk [vmem:[%s5 + $0x4] sm:$0xf] %vm196, %v195
    // Predicated region
    $region38: #{decoder_layer.9} parent=1 // pred_check
      _
    $region39: #{decoder_layer.9} parent=1 // pred_check_branch
      %200 = sbr.rel (0) target = $region41
    $region40: #{decoder_layer.9} parent=1 // pred_region
      _
    $region41: #{decoder_layer.9} parent=1 // pred_fallthru
      _
    // Predicated region
    $region42: #{decoder_layer.9} parent=1 // pred_check
      _
    $region43: #{decoder_layer.9} parent=1 // pred_check_branch
      %202 = sbr.rel (0) target = $region45
    $region44: #{decoder_layer.9} parent=1 // pred_region
      _
    $region45: #{decoder_layer.9} parent=1 // pred_fallthru
      _
    %203 = vsyncpa [#allocation3], 1
    %204 = vsyncpa [#allocation5], 1
    %205 = vsyncpa [#allocation8], 1

// kernel: decoder_layer.11
$region0: #{decoder_layer.11}
  #allocation0 [shape = 'u32[]', space=smem, size = 0x4, offset = 0x4, fixed_abs, tag = 'smem constant byte address 0x4 - core index']
  #allocation1 [shape = 'u32[72,128]{1,0:T(1,128)}', space=vmem, size = 0x9000, scoped, tag = 'internal scratch']
  %s0 = inlined_call_operand.vmem [shape: bf16[16,32], index: 0, kind: input, shape index: {}]
  %s1 = inlined_call_operand.hbm [shape: bf16[32,32], index: 1, kind: input, shape index: {}]
  %s2 = inlined_call_operand.hbm [shape: f32[1,32], index: 2, kind: input, shape index: {}]
  %s3 = inlined_call_operand.hbm [shape: f32[16,32], index: 3, kind: input, shape index: {}]
  %s4 = inlined_call_operand.vmem [shape: f32[16,32], index: 4, kind: output, shape index: {}]
  %s5 = sld [smem:[#allocation0]]
  $region38: #{decoder_layer.11} parent=0
    _
  %s7 = ssub.s32 1, %s5
  %s8 = scalar_select 0, %s7, %s5
  $region1: #{decoder_layer.11} parent=0
    #allocation2 [shape = 'u8[8192]{0}', space=vmem, size = 0x2000, scoped, tag = 'input window, operand 1, single buffered']
    #allocation3 [shape = 's32[1]{0}', space=sflag, size = 0x4, scoped, tag = 'scoped memory for decoder_layer.11']
    #allocation4 [shape = 'u8[512]{0}', space=vmem, size = 0x400, scoped, tag = 'input window, operand 2, single buffered']
    #allocation5 [shape = 's32[1]{0}', space=sflag, size = 0x4, scoped, tag = 'scoped memory for decoder_layer.11']
    #allocation6 [shape = 'u8[8192]{0}', space=vmem, size = 0x2000, scoped, tag = 'input window, operand 3, single buffered']
    %9 = vsyncpa [#allocation3], 0
    %10 = vsyncpa [#allocation5], 0
    // Predicated region
    $region2: #{decoder_layer.11} parent=1 // pred_check
      _
    $region3: #{decoder_layer.11} parent=1 // pred_check_branch
      %12 = sbr.rel (0) target = $region5
    $region4: #{decoder_layer.11} parent=1 // pred_region
      _
    $region5: #{decoder_layer.11} parent=1 // pred_fallthru
      _
    // Predicated region
    $region6: #{decoder_layer.11} parent=1 // pred_check
      _
    $region7: #{decoder_layer.11} parent=1 // pred_check_branch
      %14 = sbr.rel (0) target = $region9
    $region8: #{decoder_layer.11} parent=1 // pred_region
      %16 = vsyncadd [#allocation3], 0
      %s17 = sshll.u32 %s1, 4
      %s18 = int_to_ptr.hbm [resolvable:$true] %s17
      %s19 = sshll.u32 [#allocation2], 4
      %s20 = int_to_ptr.vmem [resolvable:$true] %s19
      %25 = dma.hbm_to_vmem [thread:$0]  %s18, 256, %s20, [#allocation3], 64, 64, 4
    $region9: #{decoder_layer.11} parent=1 // pred_fallthru
      _
    // Predicated region
    $region10: #{decoder_layer.11} parent=1 // pred_check
      _
    $region11: #{decoder_layer.11} parent=1 // pred_check_branch
      %27 = sbr.rel (0) target = $region13
    $region12: #{decoder_layer.11} parent=1 // pred_region
      %29 = vsyncadd [#allocation5], 0
      %s31 = sshll.u32 %s2, 4
      %s32 = int_to_ptr.hbm [resolvable:$true] %s31
      %s33 = sshll.u32 [#allocation4], 4
      %s34 = int_to_ptr.vmem [resolvable:$true] %s33
      %36 = dma.hbm_to_vmem [thread:$0]  %s32, 16, %s34, [#allocation5]
    $region13: #{decoder_layer.11} parent=1 // pred_fallthru
      _
    // Predicated region
    $region14: #{decoder_layer.11} parent=1 // pred_check
      _
    $region15: #{decoder_layer.11} parent=1 // pred_check_branch
      %38 = sbr.rel (0) target = $region17
    $region16: #{decoder_layer.11} parent=1 // pred_region
      %40 = vsyncadd [#allocation5], 0
      %s41 = sshll.u32 %s3, 4
      %s42 = int_to_ptr.hbm [resolvable:$true] %s41
      %s43 = sshll.u32 [#allocation6], 4
      %s44 = int_to_ptr.vmem [resolvable:$true] %s43
      %49 = dma.hbm_to_vmem [thread:$0]  %s42, 256, %s44, [#allocation5], 128, 128, 8
    $region17: #{decoder_layer.11} parent=1 // pred_fallthru
      _
    // Predicated region
    $region18: #{decoder_layer.11} parent=1 // pred_check
      _
    $region19: #{decoder_layer.11} parent=1 // pred_check_branch
      %51 = sbr.rel (0) target = $region21
    $region20: #{decoder_layer.11} parent=1 // pred_region
      %53 = dma.done [#allocation3], 256
    $region21: #{decoder_layer.11} parent=1 // pred_fallthru
      _
    // Predicated region
    $region22: #{decoder_layer.11} parent=1 // pred_check
      _
    $region23: #{decoder_layer.11} parent=1 // pred_check_branch
      %55 = sbr.rel (0) target = $region25
    $region24: #{decoder_layer.11} parent=1 // pred_region
      %57 = dma.done [#allocation5], 16
    $region25: #{decoder_layer.11} parent=1 // pred_fallthru
      _
    // Predicated region
    $region26: #{decoder_layer.11} parent=1 // pred_check
      _
    $region27: #{decoder_layer.11} parent=1 // pred_check_branch
      %59 = sbr.rel (0) target = $region29
    $region28: #{decoder_layer.11} parent=1 // pred_region
      %61 = dma.done [#allocation5], 256
    $region29: #{decoder_layer.11} parent=1 // pred_fallthru
      _
    %v63 = vld [vmem:[%s0] sm:$0xf]
    %v64 = vld [vmem:[%s0 + $0x4] sm:$0xf]
    %v65 = vld [vmem:[#allocation2] sm:$0xf]
    %v66 = vld [vmem:[#allocation2 + $0x4] sm:$0xf]
    %v67 = vld [vmem:[#allocation2 + $0x8] sm:$0xf]
    %v68 = vld [vmem:[#allocation2 + $0xc] sm:$0xf]
    %v69 = vld [vmem:[#allocation4] sm:$0x1]
    %v71 = vperm.slane %v69, 0
    %v75 = vunpack.c.l.b16 %v63
    %v76 = vunpack.c.l.b16 %v64
    %v77 = vpack.c.b16 %v76, %v75
    %v82 = vunpack.c.l.b16 %v65
    %v83 = vunpack.c.l.b16 %v66
    %v84 = vunpack.c.l.b16 %v67
    %v85 = vunpack.c.l.b16 %v68
    %v86 = vpack.c.b16 %v83, %v82
    %v87 = vpack.c.b16 %v85, %v84
    %vm90 = vcmask 261120
    %v92 = vsel %vm90, %v77, 0
    %94 = vmatpush.bf16.msra.mxu0 0
    %95 = vmatpush.bf16.msra.mxu0 0
    %96 = vmatpush.bf16.msra.mxu0 0
    %97 = vmatpush.bf16.msra.mxu0 0
    %98 = vmatpush.bf16.msra.mxu0 0
    %99 = vmatpush.bf16.msra.mxu0 0
    %100 = vmatpush.bf16.msra.mxu0 %v87
    %101 = vmatpush.bf16.msra.mxu0 %v86
    %102 = vmatmul.bf16.gmra.mxu0 %v92
    %v103 = vpop.f32.mrf.mxu0
    %v104 = vadd.f32 %v71, %v103
    %v105 = vpop.f32.mrf.mxu0
    %v106 = vadd.f32 %v71, %v105
    %107 = vdwg.mxu0
    %v108 = vld [vmem:[#allocation6] sm:$0xff]
    %v109 = vld [vmem:[#allocation6 + $0x8] sm:$0xff]
    %v110 = vadd.f32 %v104, %v108
    %v111 = vadd.f32 %v106, %v109
    %112 = vst.msk [vmem:[%s4] sm:$0xff] %vm90, %v110
    %113 = vst.msk [vmem:[%s4 + $0x8] sm:$0xff] %vm90, %v111
    // Predicated region
    $region30: #{decoder_layer.11} parent=1 // pred_check
      _
    $region31: #{decoder_layer.11} parent=1 // pred_check_branch
      %115 = sbr.rel (0) target = $region33
    $region32: #{decoder_layer.11} parent=1 // pred_region
      _
    $region33: #{decoder_layer.11} parent=1 // pred_fallthru
      _
    // Predicated region
    $region34: #{decoder_layer.11} parent=1 // pred_check
      _
    $region35: #{decoder_layer.11} parent=1 // pred_check_branch
      %117 = sbr.rel (0) target = $region37
    $region36: #{decoder_layer.11} parent=1 // pred_region
      _
    $region37: #{decoder_layer.11} parent=1 // pred_fallthru
      _
    %118 = vsyncpa [#allocation3], 1
    %119 = vsyncpa [#allocation5], 1

// kernel: decoder_layer.12
$region0: #{decoder_layer.12}
  #allocation0 [shape = 'u32[]', space=smem, size = 0x4, offset = 0x4, fixed_abs, tag = 'smem constant byte address 0x4 - core index']
  #allocation1 [shape = 'u32[72,128]{1,0:T(1,128)}', space=vmem, size = 0x9000, scoped, tag = 'internal scratch']
  %s0 = inlined_call_operand.vmem [shape: f32[16,32], index: 0, kind: input, shape index: {}]
  %s1 = inlined_call_operand.hbm [shape: f32[1,32], index: 1, kind: input, shape index: {}]
  %s2 = inlined_call_operand.hbm [shape: f32[1,32], index: 2, kind: input, shape index: {}]
  %s3 = inlined_call_operand.vmem [shape: bf16[32,32], index: 3, kind: input, shape index: {}]
  %s4 = inlined_call_operand.hbm [shape: f32[1,32], index: 4, kind: input, shape index: {}]
  %s5 = inlined_call_operand.vmem [shape: bf16[16,32], index: 5, kind: output, shape index: {}]
  %s6 = sld [smem:[#allocation0]]
  $region42: #{decoder_layer.12} parent=0
    _
  %s8 = ssub.s32 1, %s6
  %s9 = scalar_select 0, %s8, %s6
  $region1: #{decoder_layer.12} parent=0
    #allocation2 [shape = 'u8[512]{0}', space=vmem, size = 0x400, scoped, tag = 'input window, operand 1, single buffered']
    #allocation3 [shape = 's32[1]{0}', space=sflag, size = 0x4, scoped, tag = 'scoped memory for decoder_layer.12']
    #allocation4 [shape = 'u8[512]{0}', space=vmem, size = 0x400, scoped, tag = 'input window, operand 2, single buffered']
    #allocation5 [shape = 's32[1]{0}', space=sflag, size = 0x4, scoped, tag = 'scoped memory for decoder_layer.12']
    #allocation6 [shape = 'u8[512]{0}', space=vmem, size = 0x400, scoped, tag = 'input window, operand 4, single buffered']
    %10 = vsyncpa [#allocation3], 0
    %11 = vsyncpa [#allocation5], 0
    // Predicated region
    $region2: #{decoder_layer.12} parent=1 // pred_check
      _
    $region3: #{decoder_layer.12} parent=1 // pred_check_branch
      %13 = sbr.rel (0) target = $region5
    $region4: #{decoder_layer.12} parent=1 // pred_region
      _
    $region5: #{decoder_layer.12} parent=1 // pred_fallthru
      _
    // Predicated region
    $region6: #{decoder_layer.12} parent=1 // pred_check
      _
    $region7: #{decoder_layer.12} parent=1 // pred_check_branch
      %15 = sbr.rel (0) target = $region9
    $region8: #{decoder_layer.12} parent=1 // pred_region
      %17 = vsyncadd [#allocation3], 0
      %s19 = sshll.u32 %s1, 4
      %s20 = int_to_ptr.hbm [resolvable:$true] %s19
      %s21 = sshll.u32 [#allocation2], 4
      %s22 = int_to_ptr.vmem [resolvable:$true] %s21
      %24 = dma.hbm_to_vmem [thread:$0]  %s20, 16, %s22, [#allocation3]
    $region9: #{decoder_layer.12} parent=1 // pred_fallthru
      _
    // Predicated region
    $region10: #{decoder_layer.12} parent=1 // pred_check
      _
    $region11: #{decoder_layer.12} parent=1 // pred_check_branch
      %26 = sbr.rel (0) target = $region13
    $region12: #{decoder_layer.12} parent=1 // pred_region
      %28 = vsyncadd [#allocation5], 0
      %s30 = sshll.u32 %s2, 4
      %s31 = int_to_ptr.hbm [resolvable:$true] %s30
      %s32 = sshll.u32 [#allocation4], 4
      %s33 = int_to_ptr.vmem [resolvable:$true] %s32
      %35 = dma.hbm_to_vmem [thread:$0]  %s31, 16, %s33, [#allocation5]
    $region13: #{decoder_layer.12} parent=1 // pred_fallthru
      _
    // Predicated region
    $region14: #{decoder_layer.12} parent=1 // pred_check
      _
    $region15: #{decoder_layer.12} parent=1 // pred_check_branch
      %37 = sbr.rel (0) target = $region17
    $region16: #{decoder_layer.12} parent=1 // pred_region
      _
    $region17: #{decoder_layer.12} parent=1 // pred_fallthru
      _
    // Predicated region
    $region18: #{decoder_layer.12} parent=1 // pred_check
      _
    $region19: #{decoder_layer.12} parent=1 // pred_check_branch
      %39 = sbr.rel (0) target = $region21
    $region20: #{decoder_layer.12} parent=1 // pred_region
      %41 = vsyncadd [#allocation5], 0
      %s43 = sshll.u32 %s4, 4
      %s44 = int_to_ptr.hbm [resolvable:$true] %s43
      %s45 = sshll.u32 [#allocation6], 4
      %s46 = int_to_ptr.vmem [resolvable:$true] %s45
      %48 = dma.hbm_to_vmem [thread:$0]  %s44, 16, %s46, [#allocation5]
    $region21: #{decoder_layer.12} parent=1 // pred_fallthru
      _
    // Predicated region
    $region22: #{decoder_layer.12} parent=1 // pred_check
      _
    $region23: #{decoder_layer.12} parent=1 // pred_check_branch
      %50 = sbr.rel (0) target = $region25
    $region24: #{decoder_layer.12} parent=1 // pred_region
      %52 = dma.done [#allocation3], 16
    $region25: #{decoder_layer.12} parent=1 // pred_fallthru
      _
    // Predicated region
    $region26: #{decoder_layer.12} parent=1 // pred_check
      _
    $region27: #{decoder_layer.12} parent=1 // pred_check_branch
      %54 = sbr.rel (0) target = $region29
    $region28: #{decoder_layer.12} parent=1 // pred_region
      %56 = dma.done [#allocation5], 16
    $region29: #{decoder_layer.12} parent=1 // pred_fallthru
      _
    // Predicated region
    $region30: #{decoder_layer.12} parent=1 // pred_check
      _
    $region31: #{decoder_layer.12} parent=1 // pred_check_branch
      %58 = sbr.rel (0) target = $region33
    $region32: #{decoder_layer.12} parent=1 // pred_region
      %60 = dma.done [#allocation5], 16
    $region33: #{decoder_layer.12} parent=1 // pred_fallthru
      _
    %v62 = vld [vmem:[%s0] sm:$0xff]
    %v63 = vld [vmem:[%s0 + $0x8] sm:$0xff]
    %vm64 = vcmask 261120
    %v65 = vsel %vm64, %v62, 0.0
    %66 = vadd.xlane.f32.xlu0 %v65
    %v67 = vpop.xlane.xlu0 %66
    %v68 = vsel %vm64, %v63, 0.0
    %69 = vadd.xlane.f32.xlu0 %v68
    %v70 = vpop.xlane.xlu0 %69
    %v71 = vrcp.pop 32.0
    %v72 = vmul.f32 32.0, %v71
    %v73 = vsub.f32 1.0, %v72
    %v74 = vmul.f32 %v71, %v73
    %v75 = vadd.f32 %v71, %v74
    %vm76 = vweird.f32 %v71
    %v77 = vsel %vm76, %v71, %v75
    %v78 = vmul.f32 %v67, %v77
    %v79 = vmul.f32 %v70, %v77
    %v80 = vsub.f32 %v62, %v78
    %v81 = vsub.f32 %v63, %v79
    %v82 = vmul.f32 %v80, %v80
    %v83 = vmul.f32 %v81, %v81
    %v84 = vsel %vm64, %v82, 0.0
    %85 = vadd.xlane.f32.xlu0 %v84
    %v86 = vpop.xlane.xlu0 %85
    %v87 = vsel %vm64, %v83, 0.0
    %88 = vadd.xlane.f32.xlu0 %v87
    %v89 = vpop.xlane.xlu0 %88
    %v90 = vmul.f32 %v86, 0.032258064
    %v91 = vmul.f32 %v89, 0.032258064
    %v92 = vrsqrt.pop %v90
    %v93 = vmul.f32 %v92, %v90
    %v94 = vmul.f32 %v93, %v92
    %v95 = vmul.f32 0.5, %v94
    %v96 = vsub.f32 1.5, %v95
    %v97 = vmul.f32 %v92, %v96
    %v98 = vmul.f32 %v90, %v97
    %vm99 = vcmp.eq.f32.partialorder %v90, inf
    %v100 = vsel %vm99, %v90, %v98
    %vm101 = vcmp.eq.f32.partialorder %v90, 0.0
    %v102 = vand.u32 %v90, 2147483648
    %v103 = vsel %vm101, %v102, %v100
    %v104 = vrsqrt.pop %v91
    %v105 = vmul.f32 %v104, %v91
    %v106 = vmul.f32 %v105, %v104
    %v107 = vmul.f32 0.5, %v106
    %v108 = vsub.f32 1.5, %v107
    %v109 = vmul.f32 %v104, %v108
    %v110 = vmul.f32 %v91, %v109
    %vm111 = vcmp.eq.f32.partialorder %v91, inf
    %v112 = vsel %vm111, %v91, %v110
    %vm113 = vcmp.eq.f32.partialorder %v91, 0.0
    %v114 = vand.u32 %v91, 2147483648
    %v115 = vsel %vm113, %v114, %v112
    %v116 = vadd.f32 %v103, 1e-06
    %v117 = vadd.f32 %v115, 1e-06
    %v118 = vrcp.pop %v116
    %v119 = vrcp.pop %v117
    %v120 = vmul.f32 %v116, %v118
    %v121 = vmul.f32 %v117, %v119
    %v122 = vsub.f32 2.0, %v120
    %v123 = vsub.f32 2.0, %v121
    %v124 = vmul.f32 %v118, %v122
    %v125 = vmul.f32 %v119, %v123
    %v126 = vld [vmem:[#allocation2] sm:$0x1]
    %v128 = vperm.slane %v126, 0
    %v130 = vmul.f32 %v128, %v80
    %v131 = vmul.f32 %v128, %v81
    %v132 = vmul.f32 %v130, %v124
    %v133 = vmul.f32 %v131, %v125
    %v134 = vld [vmem:[#allocation4] sm:$0x1]
    %v136 = vperm.slane %v134, 0
    %v138 = vadd.f32 %v132, %v136
    %v139 = vadd.f32 %v133, %v136
    %v140 = vpack.c.bf16 %v139, %v138
    %v141 = vld [vmem:[%s3] sm:$0xf]
    %v142 = vld [vmem:[%s3 + $0x4] sm:$0xf]
    %v143 = vld [vmem:[%s3 + $0x8] sm:$0xf]
    %v144 = vld [vmem:[%s3 + $0xc] sm:$0xf]
    %v145 = vld [vmem:[#allocation6] sm:$0x1]
    %v147 = vperm.slane %v145, 0
    %v153 = vunpack.c.l.b16 %v141
    %v154 = vunpack.c.l.b16 %v142
    %v155 = vunpack.c.l.b16 %v143
    %v156 = vunpack.c.l.b16 %v144
    %v157 = vpack.c.b16 %v154, %v153
    %v158 = vpack.c.b16 %v156, %v155
    %v162 = vsel %vm64, %v140, 0
    %164 = vmatpush.bf16.msra.mxu0 0
    %165 = vmatpush.bf16.msra.mxu0 0
    %166 = vmatpush.bf16.msra.mxu0 0
    %167 = vmatpush.bf16.msra.mxu0 0
    %168 = vmatpush.bf16.msra.mxu0 0
    %169 = vmatpush.bf16.msra.mxu0 0
    %170 = vmatpush.bf16.msra.mxu0 %v158
    %171 = vmatpush.bf16.msra.mxu0 %v157
    %172 = vmatmul.bf16.gmra.mxu0 %v162
    %v173 = vpop.f32.mrf.mxu0
    %v174 = vadd.f32 %v147, %v173
    %v175 = vpop.f32.mrf.mxu0
    %v176 = vadd.f32 %v147, %v175
    %177 = vdwg.mxu0
    %v178 = vpack.c.bf16 %v174, %v174
    %v179 = vpack.c.bf16 %v176, %v176
    %vm180 = vcmask 257024
    %181 = vst.msk [vmem:[%s5] sm:$0xf] %vm180, %v178
    %182 = vst.msk [vmem:[%s5 + $0x4] sm:$0xf] %vm180, %v179
    // Predicated region
    $region34: #{decoder_layer.12} parent=1 // pred_check
      _
    $region35: #{decoder_layer.12} parent=1 // pred_check_branch
      %184 = sbr.rel (0) target = $region37
    $region36: #{decoder_layer.12} parent=1 // pred_region
      _
    $region37: #{decoder_layer.12} parent=1 // pred_fallthru
      _
    // Predicated region
    $region38: #{decoder_layer.12} parent=1 // pred_check
      _
    $region39: #{decoder_layer.12} parent=1 // pred_check_branch
      %186 = sbr.rel (0) target = $region41
    $region40: #{decoder_layer.12} parent=1 // pred_region
      _
    $region41: #{decoder_layer.12} parent=1 // pred_fallthru
      _
    %187 = vsyncpa [#allocation3], 1
    %188 = vsyncpa [#allocation5], 1

// kernel: decoder_layer.10
$region0: #{decoder_layer.10}
  #allocation0 [shape = 'u32[]', space=smem, size = 0x4, offset = 0x4, fixed_abs, tag = 'smem constant byte address 0x4 - core index']
  #allocation1 [shape = 'u32[72,128]{1,0:T(1,128)}', space=vmem, size = 0x9000, scoped, tag = 'internal scratch']
  %s0 = inlined_call_operand.vmem [shape: bf16[2,8,96], index: 0, kind: input, shape index: {}]
  %s1 = inlined_call_operand.hbm [shape: f32[2,8,8], index: 1, kind: input, shape index: {}]
  %s2 = inlined_call_operand.vmem [shape: bf16[2,8,32], index: 2, kind: output, shape index: {}]
  %s3 = sld [smem:[#allocation0]]
  $region45: #{decoder_layer.10} parent=0
    _
  %s5 = ssub.s32 1, %s3
  %s6 = scalar_select 0, %s5, %s3
  $region1: #{decoder_layer.10} parent=0
    #allocation2 [shape = 'u8[8192]{0}', space=vmem, size = 0x2000, scoped, tag = 'input window, operand 1']
    #allocation3 [shape = 's32[2]{0}', space=sflag, size = 0x8, scoped, tag = 'scoped memory for decoder_layer.10']
    %7 = vsyncpa [#allocation3], 0
    %s8 = scalar_lea.sflag [#allocation3], 1
    %9 = vsyncpa %s8, 0
    loop: start=0, step=1, limit=4
    $region2: #{decoder_layer.10} parent=1 // loop_pre_header
      _
    $region3: #{decoder_layer.10} parent=1 // loop_header
      %s11 = sphi 0, %s15
      %p12 = scmp.ge.s32.totalorder %s11, 4
      %s21 = sphi 0, %s23
      %s24 = sphi 0, %s21
      %s25 = sphi 0, %s24
      %s41 = sphi 0, %s25
      %s47 = sphi 0, %s49
      %s50 = sphi 0, %s47
      %s51 = sphi 0, %s50
      %s67 = sphi 0, %s51
      %s73 = sphi 0, %s75
      %s76 = sphi 0, %s73
      %s77 = sphi 0, %s76
      %s93 = sphi 0, %s77
    $region4: #{decoder_layer.10} parent=1 // loop_header_branch
      %14 = sbr.rel (%p12) target = $region8
    $region5: #{decoder_layer.10} parent=1 // loop_body
      %s16 = ssub.s32 %s11, 1
      %s17 = ssub.s32 %s11, 2
      %s18 = sadd.s32 %s11, 1
      %s19 = ssub.s32 %s11, %s18
      %p20 = scmp.eq.s32.totalorder %s19, 0
      %s22 = sadd.s32 %s21, 1
      %s23 = scalar_select %p20, %s21, %s22
      %p26 = pneg %p20
      %p27 = scmp.eq.s32.totalorder %s11, 1
      %p28 = por %p26, %p27
      %p29 = scmp.ne.s32.totalorder %s21, %s24
      %p30 = scmp.eq.s32.totalorder %s11, 0
      %p31 = por %p29, %p30
      %p32 = scmp.ne.s32.totalorder %s21, %s24
      %p33 = scmp.eq.s32.totalorder %s16, 1
      %p34 = por %p32, %p33
      %p35 = scmp.ne.s32.totalorder %s24, %s25
      %p36 = scmp.eq.s32.totalorder %s16, 0
      %p37 = por %p35, %p36
      %p38 = scmp.ne.s32.totalorder %s24, %s25
      %p39 = scmp.eq.s32.totalorder %s17, 1
      %p40 = por %p38, %p39
      %p42 = scmp.ne.s32.totalorder %s25, %s41
      %p43 = scmp.eq.s32.totalorder %s17, 0
      %p44 = por %p42, %p43
      %s45 = ssub.s32 %s11, %s18
      %p46 = scmp.eq.s32.totalorder %s45, 0
      %s48 = sadd.s32 %s47, 1
      %s49 = scalar_select %p46, %s47, %s48
      %p52 = pneg %p46
      %p53 = scmp.eq.s32.totalorder %s11, 1
      %p54 = por %p52, %p53
      %p55 = scmp.ne.s32.totalorder %s47, %s50
      %p56 = scmp.eq.s32.totalorder %s11, 0
      %p57 = por %p55, %p56
      %p58 = scmp.ne.s32.totalorder %s47, %s50
      %p59 = scmp.eq.s32.totalorder %s16, 1
      %p60 = por %p58, %p59
      %p61 = scmp.ne.s32.totalorder %s50, %s51
      %p62 = scmp.eq.s32.totalorder %s16, 0
      %p63 = por %p61, %p62
      %p64 = scmp.ne.s32.totalorder %s50, %s51
      %p65 = scmp.eq.s32.totalorder %s17, 1
      %p66 = por %p64, %p65
      %p68 = scmp.ne.s32.totalorder %s51, %s67
      %p69 = scmp.eq.s32.totalorder %s17, 0
      %p70 = por %p68, %p69
      %s71 = ssub.s32 %s11, %s18
      %p72 = scmp.eq.s32.totalorder %s71, 0
      %s74 = sadd.s32 %s73, 1
      %s75 = scalar_select %p72, %s73, %s74
      %p78 = pneg %p72
      %p79 = scmp.eq.s32.totalorder %s11, 1
      %p80 = por %p78, %p79
      %p81 = scmp.ne.s32.totalorder %s73, %s76
      %p82 = scmp.eq.s32.totalorder %s11, 0
      %p83 = por %p81, %p82
      %p84 = scmp.ne.s32.totalorder %s73, %s76
      %p85 = scmp.eq.s32.totalorder %s16, 1
      %p86 = por %p84, %p85
      %p87 = scmp.ne.s32.totalorder %s76, %s77
      %p88 = scmp.eq.s32.totalorder %s16, 0
      %p89 = por %p87, %p88
      %p90 = scmp.ne.s32.totalorder %s76, %s77
      %p91 = scmp.eq.s32.totalorder %s17, 1
      %p92 = por %p90, %p91
      %p94 = scmp.ne.s32.totalorder %s77, %s93
      %p95 = scmp.eq.s32.totalorder %s17, 0
      %p96 = por %p94, %p95
      %p97 = scmp.le.s32.totalorder 1, %s11
      %p98 = scmp.lt.s32.totalorder %s11, 3
      %p99 = pnand %p97, %p98
      %p100 = pneg %p99
      // Predicated region
      $region9: #{decoder_layer.10} parent=5 // pred_check
        _
      $region10: #{decoder_layer.10} parent=5 // pred_check_branch
        %102 = sbr.rel (%p99) target = $region12
      $region11: #{decoder_layer.10} parent=5 // pred_region
        %s103 = ssub.s32 %s11, 1
      $region12: #{decoder_layer.10} parent=5 // pred_fallthru
        _
      %p104 = scmp.lt.s32.totalorder %s11, 2
      // Predicated region
      $region13: #{decoder_layer.10} parent=5 // pred_check
        %p105 = pneg %p104
      $region14: #{decoder_layer.10} parent=5 // pred_check_branch
        %107 = sbr.rel (%p105) target = $region16
      $region15: #{decoder_layer.10} parent=5 // pred_region
        // Predicated region
        $region17: #{decoder_layer.10} parent=15 // pred_check
          %p108 = pneg %p31
        $region18: #{decoder_layer.10} parent=15 // pred_check_branch
          %110 = sbr.rel (%p108) target = $region20
        $region19: #{decoder_layer.10} parent=15 // pred_region
          %p111 = scmp.lt.s32.totalorder %s11, 1
          %s112 = scalar_select %p111, %s11, 1
          %s113 = smul.addr %s112, 4
          %s114 = scalar_lea.vmem %s0, %s113
        $region20: #{decoder_layer.10} parent=15 // pred_fallthru
          _
        // Predicated region
        $region21: #{decoder_layer.10} parent=15 // pred_check
          %p115 = pneg %p57
        $region22: #{decoder_layer.10} parent=15 // pred_check_branch
          %117 = sbr.rel (%p115) target = $region24
        $region23: #{decoder_layer.10} parent=15 // pred_region
          %s118 = sand.u32 %s47, 1
          %s119 = scalar_lea.sflag [#allocation3], %s118
          %s120 = sand.u32 %s47, 1
          %s121 = smul.addr %s120, 8
          %s122 = scalar_lea.vmem [#allocation2], %s121
          %124 = vsyncadd %s119, 0
          %s125 = smul.addr %s11, 8
          %s126 = scalar_lea.hbm %s1, %s125
          %s128 = sshll.u32 %s126, 4
          %s129 = int_to_ptr.hbm [resolvable:$true] %s128
          %s130 = sshll.u32 %s122, 4
          %s131 = int_to_ptr.vmem [resolvable:$true] %s130
          %133 = dma.hbm_to_vmem [thread:$0]  %s129, 128, %s131, %s119
        $region24: #{decoder_layer.10} parent=15 // pred_fallthru
          _
      $region16: #{decoder_layer.10} parent=5 // pred_fallthru
        _
      %p134 = scmp.le.s32.totalorder 1, %s11
      %p135 = scmp.lt.s32.totalorder %s11, 3
      %p136 = pnand %p134, %p135
      %p137 = pneg %p136
      // Predicated region
      $region25: #{decoder_layer.10} parent=5 // pred_check
        _
      $region26: #{decoder_layer.10} parent=5 // pred_check_branch
        %139 = sbr.rel (%p136) target = $region28
      $region27: #{decoder_layer.10} parent=5 // pred_region
        %s140 = ssub.s32 %s11, 1
        %s141 = sand.u32 %s50, 1
        %s142 = scalar_lea.sflag [#allocation3], %s141
        %s143 = sand.u32 %s50, 1
        %s144 = smul.addr %s143, 8
        %s145 = scalar_lea.vmem [#allocation2], %s144
        // Predicated region
        $region29: #{decoder_layer.10} parent=27 // pred_check
          %p146 = pneg %p63
        $region30: #{decoder_layer.10} parent=27 // pred_check_branch
          %148 = sbr.rel (%p146) target = $region32
        $region31: #{decoder_layer.10} parent=27 // pred_region
          %150 = dma.done %s142, 128
        $region32: #{decoder_layer.10} parent=27 // pred_fallthru
          _
        %p151 = scmp.lt.s32.totalorder %s16, 1
        %s152 = scalar_select %p151, %s16, 1
        %s153 = smul.addr %s152, 4
        %s154 = scalar_lea.vmem %s0, %s153
        %p155 = pneg %p37
        %p156 = pneg %p34
        %s157 = sand.u32 %s50, 1
        %s158 = scalar_lea.sflag [#allocation3], %s157
        %s159 = sand.u32 %s50, 1
        %s160 = smul.addr %s159, 8
        %s161 = scalar_lea.vmem [#allocation2], %s160
        %p162 = pneg %p63
        %p163 = pneg %p60
        %p164 = pneg %p89
        %p165 = pneg %p86
        %p166 = scmp.lt.s32.totalorder %s16, 1
        %s167 = scalar_select %p166, %s16, 1
        %s168 = smul.addr %s167, 4
        %s169 = scalar_lea.vmem %s2, %s168
        %p170 = scmp.lt.s32.totalorder %s16, 1
        %s171 = scalar_select %p170, %s16, 1
        %s172 = smul.addr %s171, 4
        %s173 = scalar_lea.vmem %s0, %s172
        %p174 = scmp.lt.s32.totalorder %s16, 1
        %s175 = scalar_select %p174, %s16, 1
        %s176 = smul.addr %s175, 4
        %s177 = scalar_lea.vmem %s2, %s176
        %v179 = vld [vmem:[%s173] sm:$0xf]
        %v180 = vld [vmem:[%s145] sm:$0xff]
        %v182 = vunpack.c.l.b16 %v179
        %v183 = vpack.c.b16 %v182, %v182
        %184 = vrot.lane.b32.xlu0 %v183, 96
        %v185 = vpop.permute.xlu0 %184
        %vm186 = vcmask 64512
        %v188 = vsel %vm186, %v179, 0
        %v191 = vsel %vm186, %v185, 0
        %193 = vmatpush.bf16.xpose.msra.mxu0 0
        %194 = vmatpush.bf16.xpose.msra.mxu0 0
        %195 = vmatpush.bf16.xpose.msra.mxu0 0
        %196 = vmatpush.bf16.xpose.msra.mxu0 0
        %197 = vmatpush.bf16.xpose.msra.mxu0 0
        %198 = vmatpush.bf16.xpose.msra.mxu0 0
        %199 = vmatpush.bf16.xpose.msra.mxu0 0
        %200 = vmatpush.bf16.xpose.msra.mxu0 %v191
        %201 = vmatmul.bf16.gmra.mxu0 %v188
        %v202 = vpop.f32.mrf.mxu0
        %v203 = vadd.f32 0.0, %v202
        %v204 = vpop.f32.mrf.mxu0
        %205 = vdwg.mxu0
        %v206 = vmul.f32 %v203, 0.35355338
        %vm207 = vcmp.eq.f32.partialorder %v180, 0.0
        %v208 = vsel %vm207, -0.0001, %v206
        %v209 = vsel %vm186, %v208, -inf
        %210 = vmax.xlane.f32.xlu0 %v209
        %v211 = vpop.xlane.xlu0 %210
        %v212 = vsub.f32 %v208, %v211
        %v213 = vmul.f32 %v212, 1.442695
        %v214 = vpow.pop %v213
        %v215 = vsel %vm186, %v214, 0.0
        %216 = vadd.xlane.f32.xlu0 %v215
        %v217 = vpop.xlane.xlu0 %216
        %v218 = vrcp.pop %v217
        %v219 = vmul.f32 %v217, %v218
        %v220 = vsub.f32 2.0, %v219
        %v221 = vmul.f32 %v218, %v220
        %v222 = vmul.f32 %v214, %v221
        %v223 = vpack.c.bf16 %v222, %v222
        %224 = vrot.lane.b32.xlu0 %v183, 64
        %v225 = vpop.permute.xlu0 %224
        %v227 = vsel %vm186, %v223, 0
        %vm229 = vcmask 1043456
        %v231 = vsel %vm229, %v225, 0
        %233 = vmatpush.bf16.msra.mxu0 0
        %234 = vmatpush.bf16.msra.mxu0 0
        %235 = vmatpush.bf16.msra.mxu0 0
        %236 = vmatpush.bf16.msra.mxu0 0
        %237 = vmatpush.bf16.msra.mxu0 0
        %238 = vmatpush.bf16.msra.mxu0 0
        %239 = vmatpush.bf16.msra.mxu0 0
        %240 = vmatpush.bf16.msra.mxu0 %v231
        %241 = vmatmul.bf16.gmra.mxu0 %v227
        %v242 = vpop.f32.mrf.mxu0
        %v243 = vadd.f32 0.0, %v242
        %v244 = vpop.f32.mrf.mxu0
        %245 = vdwg.mxu0
        %246 = vrot.lane.b32.xlu0 %v183, 120
        %v247 = vpop.permute.xlu0 %246
        %248 = vrot.lane.b32.xlu0 %v183, 88
        %v249 = vpop.permute.xlu0 %248
        %v251 = vsel %vm186, %v247, 0
        %v254 = vsel %vm186, %v249, 0
        %256 = vmatpush.bf16.xpose.msra.mxu0 0
        %257 = vmatpush.bf16.xpose.msra.mxu0 0
        %258 = vmatpush.bf16.xpose.msra.mxu0 0
        %259 = vmatpush.bf16.xpose.msra.mxu0 0
        %260 = vmatpush.bf16.xpose.msra.mxu0 0
        %261 = vmatpush.bf16.xpose.msra.mxu0 0
        %262 = vmatpush.bf16.xpose.msra.mxu0 0
        %263 = vmatpush.bf16.xpose.msra.mxu0 %v254
        %264 = vmatmul.bf16.gmra.mxu0 %v251
        %v265 = vpop.f32.mrf.mxu0
        %v266 = vadd.f32 0.0, %v265
        %v267 = vpop.f32.mrf.mxu0
        %268 = vdwg.mxu0
        %v269 = vmul.f32 %v266, 0.35355338
        %v270 = vsel %vm207, -0.0001, %v269
        %v271 = vsel %vm186, %v270, -inf
        %272 = vmax.xlane.f32.xlu0 %v271
        %v273 = vpop.xlane.xlu0 %272
        %v274 = vsub.f32 %v270, %v273
        %v275 = vmul.f32 %v274, 1.442695
        %v276 = vpow.pop %v275
        %v277 = vsel %vm186, %v276, 0.0
        %278 = vadd.xlane.f32.xlu0 %v277
        %v279 = vpop.xlane.xlu0 %278
        %v280 = vrcp.pop %v279
        %v281 = vmul.f32 %v279, %v280
        %v282 = vsub.f32 2.0, %v281
        %v283 = vmul.f32 %v280, %v282
        %v284 = vmul.f32 %v276, %v283
        %v285 = vpack.c.bf16 %v284, %v284
        %286 = vrot.lane.b32.xlu0 %v183, 56
        %v287 = vpop.permute.xlu0 %286
        %v289 = vsel %vm186, %v285, 0
        %v292 = vsel %vm229, %v287, 0
        %294 = vmatpush.bf16.msra.mxu0 0
        %295 = vmatpush.bf16.msra.mxu0 0
        %296 = vmatpush.bf16.msra.mxu0 0
        %297 = vmatpush.bf16.msra.mxu0 0
        %298 = vmatpush.bf16.msra.mxu0 0
        %299 = vmatpush.bf16.msra.mxu0 0
        %300 = vmatpush.bf16.msra.mxu0 0
        %301 = vmatpush.bf16.msra.mxu0 %v292
        %302 = vmatmul.bf16.gmra.mxu0 %v289
        %v303 = vpop.f32.mrf.mxu0
        %v304 = vadd.f32 0.0, %v303
        %v305 = vpop.f32.mrf.mxu0
        %306 = vdwg.mxu0
        %307 = vrot.lane.b32.xlu0 %v183, 112
        %v308 = vpop.permute.xlu0 %307
        %309 = vrot.lane.b32.xlu0 %v183, 80
        %v310 = vpop.permute.xlu0 %309
        %v312 = vsel %vm186, %v308, 0
        %v315 = vsel %vm186, %v310, 0
        %317 = vmatpush.bf16.xpose.msra.mxu0 0
        %318 = vmatpush.bf16.xpose.msra.mxu0 0
        %319 = vmatpush.bf16.xpose.msra.mxu0 0
        %320 = vmatpush.bf16.xpose.msra.mxu0 0
        %321 = vmatpush.bf16.xpose.msra.mxu0 0
        %322 = vmatpush.bf16.xpose.msra.mxu0 0
        %323 = vmatpush.bf16.xpose.msra.mxu0 0
        %324 = vmatpush.bf16.xpose.msra.mxu0 %v315
        %325 = vmatmul.bf16.gmra.mxu0 %v312
        %v326 = vpop.f32.mrf.mxu0
        %v327 = vadd.f32 0.0, %v326
        %v328 = vpop.f32.mrf.mxu0
        %329 = vdwg.mxu0
        %v330 = vmul.f32 %v327, 0.35355338
        %v331 = vsel %vm207, -0.0001, %v330
        %v332 = vsel %vm186, %v331, -inf
        %333 = vmax.xlane.f32.xlu0 %v332
        %v334 = vpop.xlane.xlu0 %333
        %v335 = vsub.f32 %v331, %v334
        %v336 = vmul.f32 %v335, 1.442695
        %v337 = vpow.pop %v336
        %v338 = vsel %vm186, %v337, 0.0
        %339 = vadd.xlane.f32.xlu0 %v338
        %v340 = vpop.xlane.xlu0 %339
        %v341 = vrcp.pop %v340
        %v342 = vmul.f32 %v340, %v341
        %v343 = vsub.f32 2.0, %v342
        %v344 = vmul.f32 %v341, %v343
        %v345 = vmul.f32 %v337, %v344
        %v346 = vpack.c.bf16 %v345, %v345
        %347 = vrot.lane.b32.xlu0 %v183, 48
        %v348 = vpop.permute.xlu0 %347
        %v350 = vsel %vm186, %v346, 0
        %v353 = vsel %vm229, %v348, 0
        %355 = vmatpush.bf16.msra.mxu0 0
        %356 = vmatpush.bf16.msra.mxu0 0
        %357 = vmatpush.bf16.msra.mxu0 0
        %358 = vmatpush.bf16.msra.mxu0 0
        %359 = vmatpush.bf16.msra.mxu0 0
        %360 = vmatpush.bf16.msra.mxu0 0
        %361 = vmatpush.bf16.msra.mxu0 0
        %362 = vmatpush.bf16.msra.mxu0 %v353
        %363 = vmatmul.bf16.gmra.mxu0 %v350
        %v364 = vpop.f32.mrf.mxu0
        %v365 = vadd.f32 0.0, %v364
        %v366 = vpop.f32.mrf.mxu0
        %367 = vdwg.mxu0
        %368 = vrot.lane.b32.xlu0 %v183, 104
        %v369 = vpop.permute.xlu0 %368
        %370 = vrot.lane.b32.xlu0 %v183, 72
        %v371 = vpop.permute.xlu0 %370
        %v373 = vsel %vm186, %v369, 0
        %v376 = vsel %vm186, %v371, 0
        %378 = vmatpush.bf16.xpose.msra.mxu0 0
        %379 = vmatpush.bf16.xpose.msra.mxu0 0
        %380 = vmatpush.bf16.xpose.msra.mxu0 0
        %381 = vmatpush.bf16.xpose.msra.mxu0 0
        %382 = vmatpush.bf16.xpose.msra.mxu0 0
        %383 = vmatpush.bf16.xpose.msra.mxu0 0
        %384 = vmatpush.bf16.xpose.msra.mxu0 0
        %385 = vmatpush.bf16.xpose.msra.mxu0 %v376
        %386 = vmatmul.bf16.gmra.mxu0 %v373
        %v387 = vpop.f32.mrf.mxu0
        %v388 = vadd.f32 0.0, %v387
        %v389 = vpop.f32.mrf.mxu0
        %390 = vdwg.mxu0
        %v391 = vmul.f32 %v388, 0.35355338
        %v392 = vsel %vm207, -0.0001, %v391
        %v393 = vsel %vm186, %v392, -inf
        %394 = vmax.xlane.f32.xlu0 %v393
        %v395 = vpop.xlane.xlu0 %394
        %v396 = vsub.f32 %v392, %v395
        %v397 = vmul.f32 %v396, 1.442695
        %v398 = vpow.pop %v397
        %v399 = vsel %vm186, %v398, 0.0
        %400 = vadd.xlane.f32.xlu0 %v399
        %v401 = vpop.xlane.xlu0 %400
        %v402 = vrcp.pop %v401
        %v403 = vmul.f32 %v401, %v402
        %v404 = vsub.f32 2.0, %v403
        %v405 = vmul.f32 %v402, %v404
        %v406 = vmul.f32 %v398, %v405
        %v407 = vpack.c.bf16 %v406, %v406
        %408 = vrot.lane.b32.xlu0 %v183, 40
        %v409 = vpop.permute.xlu0 %408
        %v411 = vsel %vm186, %v407, 0
        %v414 = vsel %vm229, %v409, 0
        %416 = vmatpush.bf16.msra.mxu0 0
        %417 = vmatpush.bf16.msra.mxu0 0
        %418 = vmatpush.bf16.msra.mxu0 0
        %419 = vmatpush.bf16.msra.mxu0 0
        %420 = vmatpush.bf16.msra.mxu0 0
        %421 = vmatpush.bf16.msra.mxu0 0
        %422 = vmatpush.bf16.msra.mxu0 0
        %423 = vmatpush.bf16.msra.mxu0 %v414
        %424 = vmatmul.bf16.gmra.mxu0 %v411
        %v425 = vpop.f32.mrf.mxu0
        %v426 = vadd.f32 0.0, %v425
        %v427 = vpop.f32.mrf.mxu0
        %428 = vdwg.mxu0
        %430 = vrot.lane.b32.xlu0 %v304, 8
        %v431 = vpop.permute.xlu0 %430
        %434 = vrot.lane.b32.xlu0 %v365, 16
        %v435 = vpop.permute.xlu0 %434
        %438 = vrot.lane.b32.xlu0 %v426, 24
        %v439 = vpop.permute.xlu0 %438
        %v441 = vsel %vm186, %v243, %v431
        %vm442 = vcmask 130048
        %v443 = vsel %vm442, %v441, %v435
        %vm444 = vcmask 195584
        %v445 = vsel %vm444, %v443, %v439
        %v446 = vpack.c.bf16 %v445, %v445
        %vm447 = vcmask 257024
        %448 = vst.msk [vmem:[%s177] sm:$0xf] %vm447, %v446
        %p449 = scmp.lt.s32.totalorder %s16, 1
        %s450 = scalar_select %p449, %s16, 1
        %s451 = smul.addr %s450, 4
        %s452 = scalar_lea.vmem %s2, %s451
        // Predicated region
        $region33: #{decoder_layer.10} parent=27 // pred_check
          %p453 = pneg %p86
        $region34: #{decoder_layer.10} parent=27 // pred_check_branch
          %455 = sbr.rel (%p453) target = $region36
        $region35: #{decoder_layer.10} parent=27 // pred_region
          _
        $region36: #{decoder_layer.10} parent=27 // pred_fallthru
          _
      $region28: #{decoder_layer.10} parent=5 // pred_fallthru
        _
      %p456 = scmp.le.s32.totalorder 2, %s11
      // Predicated region
      $region37: #{decoder_layer.10} parent=5 // pred_check
        %p457 = pneg %p456
      $region38: #{decoder_layer.10} parent=5 // pred_check_branch
        %459 = sbr.rel (%p457) target = $region40
      $region39: #{decoder_layer.10} parent=5 // pred_region
        %s460 = ssub.s32 %s11, 2
        // Predicated region
        $region41: #{decoder_layer.10} parent=39 // pred_check
          %p461 = pneg %p92
        $region42: #{decoder_layer.10} parent=39 // pred_check_branch
          %463 = sbr.rel (%p461) target = $region44
        $region43: #{decoder_layer.10} parent=39 // pred_region
          %p464 = scmp.lt.s32.totalorder %s17, 1
          %s465 = scalar_select %p464, %s17, 1
          %s466 = smul.addr %s465, 4
          %s467 = scalar_lea.vmem %s2, %s466
        $region44: #{decoder_layer.10} parent=39 // pred_fallthru
          _
      $region40: #{decoder_layer.10} parent=5 // pred_fallthru
        _
    $region6: #{decoder_layer.10} parent=1 // loop_footer
      %s15 = sadd.s32 1, %s11
    $region7: #{decoder_layer.10} parent=1 // loop_footer_branch
      %10 = sbr.rel target = $region3
    $region8: #{decoder_layer.10} parent=1 // loop_exit
      _
    %468 = vsyncpa [#allocation3], 1
    %s469 = scalar_lea.sflag [#allocation3], 1
    %470 = vsyncpa %s469, 1

// kernel: decoder_layer.15
$region0: #{decoder_layer.15}
  #allocation0 [shape = 'u32[]', space=smem, size = 0x4, offset = 0x4, fixed_abs, tag = 'smem constant byte address 0x4 - core index']
  #allocation1 [shape = 'u32[72,128]{1,0:T(1,128)}', space=vmem, size = 0x9000, scoped, tag = 'internal scratch']
  %s0 = inlined_call_operand.vmem [shape: bf16[16,32], index: 0, kind: input, shape index: {}]
  %s1 = inlined_call_operand.hbm [shape: bf16[32,32], index: 1, kind: input, shape index: {}]
  %s2 = inlined_call_operand.hbm [shape: f32[1,32], index: 2, kind: input, shape index: {}]
  %s3 = inlined_call_operand.vmem [shape: f32[16,32], index: 3, kind: input, shape index: {}]
  %s4 = inlined_call_operand.vmem [shape: f32[16,32], index: 4, kind: output, shape index: {}]
  %s5 = sld [smem:[#allocation0]]
  $region34: #{decoder_layer.15} parent=0
    _
  %s7 = ssub.s32 1, %s5
  %s8 = scalar_select 0, %s7, %s5
  $region1: #{decoder_layer.15} parent=0
    #allocation2 [shape = 'u8[8192]{0}', space=vmem, size = 0x2000, scoped, tag = 'input window, operand 1, single buffered']
    #allocation3 [shape = 's32[1]{0}', space=sflag, size = 0x4, scoped, tag = 'scoped memory for decoder_layer.15']
    #allocation4 [shape = 'u8[512]{0}', space=vmem, size = 0x400, scoped, tag = 'input window, operand 2, single buffered']
    #allocation5 [shape = 's32[1]{0}', space=sflag, size = 0x4, scoped, tag = 'scoped memory for decoder_layer.15']
    %9 = vsyncpa [#allocation3], 0
    %10 = vsyncpa [#allocation5], 0
    // Predicated region
    $region2: #{decoder_layer.15} parent=1 // pred_check
      _
    $region3: #{decoder_layer.15} parent=1 // pred_check_branch
      %12 = sbr.rel (0) target = $region5
    $region4: #{decoder_layer.15} parent=1 // pred_region
      _
    $region5: #{decoder_layer.15} parent=1 // pred_fallthru
      _
    // Predicated region
    $region6: #{decoder_layer.15} parent=1 // pred_check
      _
    $region7: #{decoder_layer.15} parent=1 // pred_check_branch
      %14 = sbr.rel (0) target = $region9
    $region8: #{decoder_layer.15} parent=1 // pred_region
      %16 = vsyncadd [#allocation3], 0
      %s17 = sshll.u32 %s1, 4
      %s18 = int_to_ptr.hbm [resolvable:$true] %s17
      %s19 = sshll.u32 [#allocation2], 4
      %s20 = int_to_ptr.vmem [resolvable:$true] %s19
      %25 = dma.hbm_to_vmem [thread:$0]  %s18, 256, %s20, [#allocation3], 64, 64, 4
    $region9: #{decoder_layer.15} parent=1 // pred_fallthru
      _
    // Predicated region
    $region10: #{decoder_layer.15} parent=1 // pred_check
      _
    $region11: #{decoder_layer.15} parent=1 // pred_check_branch
      %27 = sbr.rel (0) target = $region13
    $region12: #{decoder_layer.15} parent=1 // pred_region
      %29 = vsyncadd [#allocation5], 0
      %s31 = sshll.u32 %s2, 4
      %s32 = int_to_ptr.hbm [resolvable:$true] %s31
      %s33 = sshll.u32 [#allocation4], 4
      %s34 = int_to_ptr.vmem [resolvable:$true] %s33
      %36 = dma.hbm_to_vmem [thread:$0]  %s32, 16, %s34, [#allocation5]
    $region13: #{decoder_layer.15} parent=1 // pred_fallthru
      _
    // Predicated region
    $region14: #{decoder_layer.15} parent=1 // pred_check
      _
    $region15: #{decoder_layer.15} parent=1 // pred_check_branch
      %38 = sbr.rel (0) target = $region17
    $region16: #{decoder_layer.15} parent=1 // pred_region
      _
    $region17: #{decoder_layer.15} parent=1 // pred_fallthru
      _
    // Predicated region
    $region18: #{decoder_layer.15} parent=1 // pred_check
      _
    $region19: #{decoder_layer.15} parent=1 // pred_check_branch
      %40 = sbr.rel (0) target = $region21
    $region20: #{decoder_layer.15} parent=1 // pred_region
      %42 = dma.done [#allocation3], 256
    $region21: #{decoder_layer.15} parent=1 // pred_fallthru
      _
    // Predicated region
    $region22: #{decoder_layer.15} parent=1 // pred_check
      _
    $region23: #{decoder_layer.15} parent=1 // pred_check_branch
      %44 = sbr.rel (0) target = $region25
    $region24: #{decoder_layer.15} parent=1 // pred_region
      %46 = dma.done [#allocation5], 16
    $region25: #{decoder_layer.15} parent=1 // pred_fallthru
      _
    %v48 = vld [vmem:[%s0] sm:$0xf]
    %v49 = vld [vmem:[%s0 + $0x4] sm:$0xf]
    %v50 = vld [vmem:[#allocation2] sm:$0xf]
    %v51 = vld [vmem:[#allocation2 + $0x4] sm:$0xf]
    %v52 = vld [vmem:[#allocation2 + $0x8] sm:$0xf]
    %v53 = vld [vmem:[#allocation2 + $0xc] sm:$0xf]
    %v54 = vld [vmem:[#allocation4] sm:$0x1]
    %v56 = vperm.slane %v54, 0
    %v60 = vunpack.c.l.b16 %v48
    %v61 = vunpack.c.l.b16 %v49
    %v62 = vpack.c.b16 %v61, %v60
    %v67 = vunpack.c.l.b16 %v50
    %v68 = vunpack.c.l.b16 %v51
    %v69 = vunpack.c.l.b16 %v52
    %v70 = vunpack.c.l.b16 %v53
    %v71 = vpack.c.b16 %v68, %v67
    %v72 = vpack.c.b16 %v70, %v69
    %vm75 = vcmask 261120
    %v77 = vsel %vm75, %v62, 0
    %79 = vmatpush.bf16.msra.mxu0 0
    %80 = vmatpush.bf16.msra.mxu0 0
    %81 = vmatpush.bf16.msra.mxu0 0
    %82 = vmatpush.bf16.msra.mxu0 0
    %83 = vmatpush.bf16.msra.mxu0 0
    %84 = vmatpush.bf16.msra.mxu0 0
    %85 = vmatpush.bf16.msra.mxu0 %v72
    %86 = vmatpush.bf16.msra.mxu0 %v71
    %87 = vmatmul.bf16.gmra.mxu0 %v77
    %v88 = vpop.f32.mrf.mxu0
    %v89 = vadd.f32 %v56, %v88
    %v90 = vpop.f32.mrf.mxu0
    %v91 = vadd.f32 %v56, %v90
    %92 = vdwg.mxu0
    %v93 = vld [vmem:[%s3] sm:$0xff]
    %v94 = vld [vmem:[%s3 + $0x8] sm:$0xff]
    %v95 = vadd.f32 %v89, %v93
    %v96 = vadd.f32 %v91, %v94
    %97 = vst.msk [vmem:[%s4] sm:$0xff] %vm75, %v95
    %98 = vst.msk [vmem:[%s4 + $0x8] sm:$0xff] %vm75, %v96
    // Predicated region
    $region26: #{decoder_layer.15} parent=1 // pred_check
      _
    $region27: #{decoder_layer.15} parent=1 // pred_check_branch
      %100 = sbr.rel (0) target = $region29
    $region28: #{decoder_layer.15} parent=1 // pred_region
      _
    $region29: #{decoder_layer.15} parent=1 // pred_fallthru
      _
    // Predicated region
    $region30: #{decoder_layer.15} parent=1 // pred_check
      _
    $region31: #{decoder_layer.15} parent=1 // pred_check_branch
      %102 = sbr.rel (0) target = $region33
    $region32: #{decoder_layer.15} parent=1 // pred_region
      _
    $region33: #{decoder_layer.15} parent=1 // pred_fallthru
      _
    %103 = vsyncpa [#allocation3], 1
    %104 = vsyncpa [#allocation5], 1

// kernel: decoder_layer.13
$region0: #{decoder_layer.13}
  #allocation0 [shape = 'u32[]', space=smem, size = 0x4, offset = 0x4, fixed_abs, tag = 'smem constant byte address 0x4 - core index']
  #allocation1 [shape = 'u32[72,128]{1,0:T(1,128)}', space=vmem, size = 0x9000, scoped, tag = 'internal scratch']
  %s0 = inlined_call_operand.hbm [shape: f32[16,32], index: 0, kind: input, shape index: {}]
  %s1 = inlined_call_operand.hbm [shape: bf16[32,64], index: 1, kind: input, shape index: {}]
  %s2 = inlined_call_operand.hbm [shape: f32[1,64], index: 2, kind: input, shape index: {}]
  %s3 = inlined_call_operand.vmem [shape: bf16[16,64], index: 3, kind: output, shape index: {}]
  %s4 = sld [smem:[#allocation0]]
  $region34: #{decoder_layer.13} parent=0
    _
  %s6 = ssub.s32 1, %s4
  %s7 = scalar_select 0, %s6, %s4
  $region1: #{decoder_layer.13} parent=0
    #allocation2 [shape = 'u8[8192]{0}', space=vmem, size = 0x2000, scoped, tag = 'input window, operand 0, single buffered']
    #allocation3 [shape = 's32[1]{0}', space=sflag, size = 0x4, scoped, tag = 'scoped memory for decoder_layer.13']
    #allocation4 [shape = 'u8[8192]{0}', space=vmem, size = 0x2000, scoped, tag = 'input window, operand 1, single buffered']
    #allocation5 [shape = 's32[1]{0}', space=sflag, size = 0x4, scoped, tag = 'scoped memory for decoder_layer.13']
    #allocation6 [shape = 'u8[512]{0}', space=vmem, size = 0x400, scoped, tag = 'input window, operand 2, single buffered']
    %8 = vsyncpa [#allocation3], 0
    %9 = vsyncpa [#allocation5], 0
    // Predicated region
    $region2: #{decoder_layer.13} parent=1 // pred_check
      _
    $region3: #{decoder_layer.13} parent=1 // pred_check_branch
      %11 = sbr.rel (0) target = $region5
    $region4: #{decoder_layer.13} parent=1 // pred_region
      %13 = vsyncadd [#allocation3], 0
      %s14 = sshll.u32 %s0, 4
      %s15 = int_to_ptr.hbm [resolvable:$true] %s14
      %s16 = sshll.u32 [#allocation2], 4
      %s17 = int_to_ptr.vmem [resolvable:$true] %s16
      %22 = dma.hbm_to_vmem [thread:$0]  %s15, 256, %s17, [#allocation3], 128, 128, 8
    $region5: #{decoder_layer.13} parent=1 // pred_fallthru
      _
    // Predicated region
    $region6: #{decoder_layer.13} parent=1 // pred_check
      _
    $region7: #{decoder_layer.13} parent=1 // pred_check_branch
      %24 = sbr.rel (0) target = $region9
    $region8: #{decoder_layer.13} parent=1 // pred_region
      %26 = vsyncadd [#allocation5], 0
      %s27 = sshll.u32 %s1, 4
      %s28 = int_to_ptr.hbm [resolvable:$true] %s27
      %s29 = sshll.u32 [#allocation4], 4
      %s30 = int_to_ptr.vmem [resolvable:$true] %s29
      %35 = dma.hbm_to_vmem [thread:$0]  %s28, 256, %s30, [#allocation5], 64, 64, 4
    $region9: #{decoder_layer.13} parent=1 // pred_fallthru
      _
    // Predicated region
    $region10: #{decoder_layer.13} parent=1 // pred_check
      _
    $region11: #{decoder_layer.13} parent=1 // pred_check_branch
      %37 = sbr.rel (0) target = $region13
    $region12: #{decoder_layer.13} parent=1 // pred_region
      %39 = vsyncadd [#allocation5], 0
      %s41 = sshll.u32 %s2, 4
      %s42 = int_to_ptr.hbm [resolvable:$true] %s41
      %s43 = sshll.u32 [#allocation6], 4
      %s44 = int_to_ptr.vmem [resolvable:$true] %s43
      %46 = dma.hbm_to_vmem [thread:$0]  %s42, 16, %s44, [#allocation5]
    $region13: #{decoder_layer.13} parent=1 // pred_fallthru
      _
    // Predicated region
    $region14: #{decoder_layer.13} parent=1 // pred_check
      _
    $region15: #{decoder_layer.13} parent=1 // pred_check_branch
      %48 = sbr.rel (0) target = $region17
    $region16: #{decoder_layer.13} parent=1 // pred_region
      %50 = dma.done [#allocation3], 256
    $region17: #{decoder_layer.13} parent=1 // pred_fallthru
      _
    // Predicated region
    $region18: #{decoder_layer.13} parent=1 // pred_check
      _
    $region19: #{decoder_layer.13} parent=1 // pred_check_branch
      %52 = sbr.rel (0) target = $region21
    $region20: #{decoder_layer.13} parent=1 // pred_region
      %54 = dma.done [#allocation5], 256
    $region21: #{decoder_layer.13} parent=1 // pred_fallthru
      _
    // Predicated region
    $region22: #{decoder_layer.13} parent=1 // pred_check
      _
    $region23: #{decoder_layer.13} parent=1 // pred_check_branch
      %56 = sbr.rel (0) target = $region25
    $region24: #{decoder_layer.13} parent=1 // pred_region
      %58 = dma.done [#allocation5], 16
    $region25: #{decoder_layer.13} parent=1 // pred_fallthru
      _
    %v60 = vld [vmem:[#allocation2] sm:$0xff]
    %v61 = vld [vmem:[#allocation2 + $0x8] sm:$0xff]
    %v62 = vpack.c.bf16 %v61, %v60
    %v63 = vld [vmem:[#allocation4] sm:$0xf]
    %v64 = vld [vmem:[#allocation4 + $0x4] sm:$0xf]
    %v65 = vld [vmem:[#allocation4 + $0x8] sm:$0xf]
    %v66 = vld [vmem:[#allocation4 + $0xc] sm:$0xf]
    %v67 = vld [vmem:[#allocation6] sm:$0x1]
    %v69 = vperm.slane %v67, 0
    %v75 = vunpack.c.l.b16 %v63
    %v76 = vunpack.c.l.b16 %v64
    %v77 = vunpack.c.l.b16 %v65
    %v78 = vunpack.c.l.b16 %v66
    %v79 = vpack.c.b16 %v76, %v75
    %v80 = vpack.c.b16 %v78, %v77
    %vm83 = vcmask 261120
    %v85 = vsel %vm83, %v62, 0
    %87 = vmatpush.bf16.msra.mxu0 0
    %88 = vmatpush.bf16.msra.mxu0 0
    %89 = vmatpush.bf16.msra.mxu0 0
    %90 = vmatpush.bf16.msra.mxu0 0
    %91 = vmatpush.bf16.msra.mxu0 0
    %92 = vmatpush.bf16.msra.mxu0 0
    %93 = vmatpush.bf16.msra.mxu0 %v80
    %94 = vmatpush.bf16.msra.mxu0 %v79
    %95 = vmatmul.bf16.gmra.mxu0 %v85
    %v96 = vpop.f32.mrf.mxu0
    %v97 = vadd.f32 %v69, %v96
    %v98 = vpop.f32.mrf.mxu0
    %v99 = vadd.f32 %v69, %v98
    %100 = vdwg.mxu0
    %v101 = vpack.c.bf16 %v97, %v97
    %v102 = vpack.c.bf16 %v99, %v99
    %vm103 = vcmask 519168
    %104 = vst.msk [vmem:[%s3] sm:$0xf] %vm103, %v101
    %105 = vst.msk [vmem:[%s3 + $0x4] sm:$0xf] %vm103, %v102
    // Predicated region
    $region26: #{decoder_layer.13} parent=1 // pred_check
      _
    $region27: #{decoder_layer.13} parent=1 // pred_check_branch
      %107 = sbr.rel (0) target = $region29
    $region28: #{decoder_layer.13} parent=1 // pred_region
      _
    $region29: #{decoder_layer.13} parent=1 // pred_fallthru
      _
    // Predicated region
    $region30: #{decoder_layer.13} parent=1 // pred_check
      _
    $region31: #{decoder_layer.13} parent=1 // pred_check_branch
      %109 = sbr.rel (0) target = $region33
    $region32: #{decoder_layer.13} parent=1 // pred_region
      _
    $region33: #{decoder_layer.13} parent=1 // pred_fallthru
      _
    %110 = vsyncpa [#allocation3], 1
    %111 = vsyncpa [#allocation5], 1

// kernel: decoder_layer.16
$region0: #{decoder_layer.16}
  #allocation0 [shape = 'u32[]', space=smem, size = 0x4, offset = 0x4, fixed_abs, tag = 'smem constant byte address 0x4 - core index']
  #allocation1 [shape = 'u32[72,128]{1,0:T(1,128)}', space=vmem, size = 0x9000, scoped, tag = 'internal scratch']
  %s0 = inlined_call_operand.vmem [shape: f32[16,32], index: 0, kind: input, shape index: {}]
  %s1 = inlined_call_operand.hbm [shape: f32[1,32], index: 1, kind: input, shape index: {}]
  %s2 = inlined_call_operand.hbm [shape: f32[1,32], index: 2, kind: input, shape index: {}]
  %s3 = inlined_call_operand.hbm [shape: bf16[32,64], index: 3, kind: input, shape index: {}]
  %s4 = inlined_call_operand.hbm [shape: f32[1,64], index: 4, kind: input, shape index: {}]
  %s5 = inlined_call_operand.vmem [shape: bf16[16,64], index: 5, kind: output, shape index: {}]
  %s6 = sld [smem:[#allocation0]]
  $region46: #{decoder_layer.16} parent=0
    _
  %s8 = ssub.s32 1, %s6
  %s9 = scalar_select 0, %s8, %s6
  $region1: #{decoder_layer.16} parent=0
    #allocation2 [shape = 'u8[512]{0}', space=vmem, size = 0x400, scoped, tag = 'input window, operand 1, single buffered']
    #allocation3 [shape = 's32[1]{0}', space=sflag, size = 0x4, scoped, tag = 'scoped memory for decoder_layer.16']
    #allocation4 [shape = 'u8[512]{0}', space=vmem, size = 0x400, scoped, tag = 'input window, operand 2, single buffered']
    #allocation5 [shape = 's32[1]{0}', space=sflag, size = 0x4, scoped, tag = 'scoped memory for decoder_layer.16']
    #allocation6 [shape = 'u8[8192]{0}', space=vmem, size = 0x2000, scoped, tag = 'input window, operand 3, single buffered']
    #allocation7 [shape = 'u8[512]{0}', space=vmem, size = 0x400, scoped, tag = 'input window, operand 4, single buffered']
    #allocation8 [shape = 's32[1]{0}', space=sflag, size = 0x4, scoped, tag = 'scoped memory for decoder_layer.16']
    %10 = vsyncpa [#allocation3], 0
    %11 = vsyncpa [#allocation5], 0
    %12 = vsyncpa [#allocation8], 0
    // Predicated region
    $region2: #{decoder_layer.16} parent=1 // pred_check
      _
    $region3: #{decoder_layer.16} parent=1 // pred_check_branch
      %14 = sbr.rel (0) target = $region5
    $region4: #{decoder_layer.16} parent=1 // pred_region
      _
    $region5: #{decoder_layer.16} parent=1 // pred_fallthru
      _
    // Predicated region
    $region6: #{decoder_layer.16} parent=1 // pred_check
      _
    $region7: #{decoder_layer.16} parent=1 // pred_check_branch
      %16 = sbr.rel (0) target = $region9
    $region8: #{decoder_layer.16} parent=1 // pred_region
      %18 = vsyncadd [#allocation3], 0
      %s20 = sshll.u32 %s1, 4
      %s21 = int_to_ptr.hbm [resolvable:$true] %s20
      %s22 = sshll.u32 [#allocation2], 4
      %s23 = int_to_ptr.vmem [resolvable:$true] %s22
      %25 = dma.hbm_to_vmem [thread:$0]  %s21, 16, %s23, [#allocation3]
    $region9: #{decoder_layer.16} parent=1 // pred_fallthru
      _
    // Predicated region
    $region10: #{decoder_layer.16} parent=1 // pred_check
      _
    $region11: #{decoder_layer.16} parent=1 // pred_check_branch
      %27 = sbr.rel (0) target = $region13
    $region12: #{decoder_layer.16} parent=1 // pred_region
      %29 = vsyncadd [#allocation5], 0
      %s31 = sshll.u32 %s2, 4
      %s32 = int_to_ptr.hbm [resolvable:$true] %s31
      %s33 = sshll.u32 [#allocation4], 4
      %s34 = int_to_ptr.vmem [resolvable:$true] %s33
      %36 = dma.hbm_to_vmem [thread:$0]  %s32, 16, %s34, [#allocation5]
    $region13: #{decoder_layer.16} parent=1 // pred_fallthru
      _
    // Predicated region
    $region14: #{decoder_layer.16} parent=1 // pred_check
      _
    $region15: #{decoder_layer.16} parent=1 // pred_check_branch
      %38 = sbr.rel (0) target = $region17
    $region16: #{decoder_layer.16} parent=1 // pred_region
      %40 = vsyncadd [#allocation5], 0
      %s41 = sshll.u32 %s3, 4
      %s42 = int_to_ptr.hbm [resolvable:$true] %s41
      %s43 = sshll.u32 [#allocation6], 4
      %s44 = int_to_ptr.vmem [resolvable:$true] %s43
      %49 = dma.hbm_to_vmem [thread:$0]  %s42, 256, %s44, [#allocation5], 64, 64, 4
    $region17: #{decoder_layer.16} parent=1 // pred_fallthru
      _
    // Predicated region
    $region18: #{decoder_layer.16} parent=1 // pred_check
      _
    $region19: #{decoder_layer.16} parent=1 // pred_check_branch
      %51 = sbr.rel (0) target = $region21
    $region20: #{decoder_layer.16} parent=1 // pred_region
      %53 = vsyncadd [#allocation8], 0
      %s55 = sshll.u32 %s4, 4
      %s56 = int_to_ptr.hbm [resolvable:$true] %s55
      %s57 = sshll.u32 [#allocation7], 4
      %s58 = int_to_ptr.vmem [resolvable:$true] %s57
      %60 = dma.hbm_to_vmem [thread:$0]  %s56, 16, %s58, [#allocation8]
    $region21: #{decoder_layer.16} parent=1 // pred_fallthru
      _
    // Predicated region
    $region22: #{decoder_layer.16} parent=1 // pred_check
      _
    $region23: #{decoder_layer.16} parent=1 // pred_check_branch
      %62 = sbr.rel (0) target = $region25
    $region24: #{decoder_layer.16} parent=1 // pred_region
      %64 = dma.done [#allocation3], 16
    $region25: #{decoder_layer.16} parent=1 // pred_fallthru
      _
    // Predicated region
    $region26: #{decoder_layer.16} parent=1 // pred_check
      _
    $region27: #{decoder_layer.16} parent=1 // pred_check_branch
      %66 = sbr.rel (0) target = $region29
    $region28: #{decoder_layer.16} parent=1 // pred_region
      %68 = dma.done [#allocation5], 16
    $region29: #{decoder_layer.16} parent=1 // pred_fallthru
      _
    // Predicated region
    $region30: #{decoder_layer.16} parent=1 // pred_check
      _
    $region31: #{decoder_layer.16} parent=1 // pred_check_branch
      %70 = sbr.rel (0) target = $region33
    $region32: #{decoder_layer.16} parent=1 // pred_region
      %72 = dma.done [#allocation5], 256
    $region33: #{decoder_layer.16} parent=1 // pred_fallthru
      _
    // Predicated region
    $region34: #{decoder_layer.16} parent=1 // pred_check
      _
    $region35: #{decoder_layer.16} parent=1 // pred_check_branch
      %74 = sbr.rel (0) target = $region37
    $region36: #{decoder_layer.16} parent=1 // pred_region
      %76 = dma.done [#allocation8], 16
    $region37: #{decoder_layer.16} parent=1 // pred_fallthru
      _
    %v78 = vld [vmem:[%s0] sm:$0xff]
    %v79 = vld [vmem:[%s0 + $0x8] sm:$0xff]
    %vm80 = vcmask 261120
    %v81 = vsel %vm80, %v78, 0.0
    %82 = vadd.xlane.f32.xlu0 %v81
    %v83 = vpop.xlane.xlu0 %82
    %v84 = vsel %vm80, %v79, 0.0
    %85 = vadd.xlane.f32.xlu0 %v84
    %v86 = vpop.xlane.xlu0 %85
    %v87 = vrcp.pop 32.0
    %v88 = vmul.f32 32.0, %v87
    %v89 = vsub.f32 1.0, %v88
    %v90 = vmul.f32 %v87, %v89
    %v91 = vadd.f32 %v87, %v90
    %vm92 = vweird.f32 %v87
    %v93 = vsel %vm92, %v87, %v91
    %v94 = vmul.f32 %v83, %v93
    %v95 = vmul.f32 %v86, %v93
    %v96 = vsub.f32 %v78, %v94
    %v97 = vsub.f32 %v79, %v95
    %v98 = vmul.f32 %v96, %v96
    %v99 = vmul.f32 %v97, %v97
    %v100 = vsel %vm80, %v98, 0.0
    %101 = vadd.xlane.f32.xlu0 %v100
    %v102 = vpop.xlane.xlu0 %101
    %v103 = vsel %vm80, %v99, 0.0
    %104 = vadd.xlane.f32.xlu0 %v103
    %v105 = vpop.xlane.xlu0 %104
    %v106 = vmul.f32 %v102, 0.032258064
    %v107 = vmul.f32 %v105, 0.032258064
    %v108 = vrsqrt.pop %v106
    %v109 = vmul.f32 %v108, %v106
    %v110 = vmul.f32 %v109, %v108
    %v111 = vmul.f32 0.5, %v110
    %v112 = vsub.f32 1.5, %v111
    %v113 = vmul.f32 %v108, %v112
    %v114 = vmul.f32 %v106, %v113
    %vm115 = vcmp.eq.f32.partialorder %v106, inf
    %v116 = vsel %vm115, %v106, %v114
    %vm117 = vcmp.eq.f32.partialorder %v106, 0.0
    %v118 = vand.u32 %v106, 2147483648
    %v119 = vsel %vm117, %v118, %v116
    %v120 = vrsqrt.pop %v107
    %v121 = vmul.f32 %v120, %v107
    %v122 = vmul.f32 %v121, %v120
    %v123 = vmul.f32 0.5, %v122
    %v124 = vsub.f32 1.5, %v123
    %v125 = vmul.f32 %v120, %v124
    %v126 = vmul.f32 %v107, %v125
    %vm127 = vcmp.eq.f32.partialorder %v107, inf
    %v128 = vsel %vm127, %v107, %v126
    %vm129 = vcmp.eq.f32.partialorder %v107, 0.0
    %v130 = vand.u32 %v107, 2147483648
    %v131 = vsel %vm129, %v130, %v128
    %v132 = vadd.f32 %v119, 1e-06
    %v133 = vadd.f32 %v131, 1e-06
    %v134 = vrcp.pop %v132
    %v135 = vrcp.pop %v133
    %v136 = vmul.f32 %v132, %v134
    %v137 = vmul.f32 %v133, %v135
    %v138 = vsub.f32 2.0, %v136
    %v139 = vsub.f32 2.0, %v137
    %v140 = vmul.f32 %v134, %v138
    %v141 = vmul.f32 %v135, %v139
    %v142 = vld [vmem:[#allocation2] sm:$0x1]
    %v144 = vperm.slane %v142, 0
    %v146 = vmul.f32 %v144, %v96
    %v147 = vmul.f32 %v144, %v97
    %v148 = vmul.f32 %v146, %v140
    %v149 = vmul.f32 %v147, %v141
    %v150 = vld [vmem:[#allocation4] sm:$0x1]
    %v152 = vperm.slane %v150, 0
    %v154 = vadd.f32 %v148, %v152
    %v155 = vadd.f32 %v149, %v152
    %v156 = vpack.c.bf16 %v155, %v154
    %v157 = vld [vmem:[#allocation6] sm:$0xf]
    %v158 = vld [vmem:[#allocation6 + $0x4] sm:$0xf]
    %v159 = vld [vmem:[#allocation6 + $0x8] sm:$0xf]
    %v160 = vld [vmem:[#allocation6 + $0xc] sm:$0xf]
    %v161 = vld [vmem:[#allocation7] sm:$0x1]
    %v163 = vperm.slane %v161, 0
    %v169 = vunpack.c.l.b16 %v157
    %v170 = vunpack.c.l.b16 %v158
    %v171 = vunpack.c.l.b16 %v159
    %v172 = vunpack.c.l.b16 %v160
    %v173 = vpack.c.b16 %v170, %v169
    %v174 = vpack.c.b16 %v172, %v171
    %v178 = vsel %vm80, %v156, 0
    %180 = vmatpush.bf16.msra.mxu0 0
    %181 = vmatpush.bf16.msra.mxu0 0
    %182 = vmatpush.bf16.msra.mxu0 0
    %183 = vmatpush.bf16.msra.mxu0 0
    %184 = vmatpush.bf16.msra.mxu0 0
    %185 = vmatpush.bf16.msra.mxu0 0
    %186 = vmatpush.bf16.msra.mxu0 %v174
    %187 = vmatpush.bf16.msra.mxu0 %v173
    %188 = vmatmul.bf16.gmra.mxu0 %v178
    %v189 = vpop.f32.mrf.mxu0
    %v190 = vadd.f32 %v163, %v189
    %v191 = vpop.f32.mrf.mxu0
    %v192 = vadd.f32 %v163, %v191
    %193 = vdwg.mxu0
    %v194 = vmax.f32 %v190, 0.0
    %v195 = vmax.f32 %v192, 0.0
    %v196 = vpack.c.bf16 %v194, %v194
    %v197 = vpack.c.bf16 %v195, %v195
    %vm198 = vcmask 519168
    %199 = vst.msk [vmem:[%s5] sm:$0xf] %vm198, %v196
    %200 = vst.msk [vmem:[%s5 + $0x4] sm:$0xf] %vm198, %v197
    // Predicated region
    $region38: #{decoder_layer.16} parent=1 // pred_check
      _
    $region39: #{decoder_layer.16} parent=1 // pred_check_branch
      %202 = sbr.rel (0) target = $region41
    $region40: #{decoder_layer.16} parent=1 // pred_region
      _
    $region41: #{decoder_layer.16} parent=1 // pred_fallthru
      _
    // Predicated region
    $region42: #{decoder_layer.16} parent=1 // pred_check
      _
    $region43: #{decoder_layer.16} parent=1 // pred_check_branch
      %204 = sbr.rel (0) target = $region45
    $region44: #{decoder_layer.16} parent=1 // pred_region
      _
    $region45: #{decoder_layer.16} parent=1 // pred_fallthru
      _
    %205 = vsyncpa [#allocation3], 1
    %206 = vsyncpa [#allocation5], 1
    %207 = vsyncpa [#allocation8], 1

// kernel: decoder_layer.14
$region0: #{decoder_layer.14}
  #allocation0 [shape = 'u32[]', space=smem, size = 0x4, offset = 0x4, fixed_abs, tag = 'smem constant byte address 0x4 - core index']
  #allocation1 [shape = 'u32[72,128]{1,0:T(1,128)}', space=vmem, size = 0x9000, scoped, tag = 'internal scratch']
  %s0 = inlined_call_operand.vmem [shape: bf16[2,8,32], index: 0, kind: input, shape index: {}]
  %s1 = inlined_call_operand.vmem [shape: bf16[2,8,64], index: 1, kind: input, shape index: {}]
  %s2 = inlined_call_operand.hbm [shape: f32[2,1,8], index: 2, kind: input, shape index: {}]
  %s3 = inlined_call_operand.vmem [shape: bf16[2,8,32], index: 3, kind: output, shape index: {}]
  %s4 = sld [smem:[#allocation0]]
  $region49: #{decoder_layer.14} parent=0
    _
  %s6 = ssub.s32 1, %s4
  %s7 = scalar_select 0, %s6, %s4
  $region1: #{decoder_layer.14} parent=0
    #allocation2 [shape = 'u8[1024]{0}', space=vmem, size = 0x400, scoped, tag = 'input window, operand 2']
    #allocation3 [shape = 's32[2]{0}', space=sflag, size = 0x8, scoped, tag = 'scoped memory for decoder_layer.14']
    %8 = vsyncpa [#allocation3], 0
    %s9 = scalar_lea.sflag [#allocation3], 1
    %10 = vsyncpa %s9, 0
    loop: start=0, step=1, limit=4
    $region2: #{decoder_layer.14} parent=1 // loop_pre_header
      _
    $region3: #{decoder_layer.14} parent=1 // loop_header
      %s12 = sphi 0, %s16
      %p13 = scmp.ge.s32.totalorder %s12, 4
      %s22 = sphi 0, %s24
      %s25 = sphi 0, %s22
      %s26 = sphi 0, %s25
      %s42 = sphi 0, %s26
      %s48 = sphi 0, %s50
      %s51 = sphi 0, %s48
      %s52 = sphi 0, %s51
      %s68 = sphi 0, %s52
      %s74 = sphi 0, %s76
      %s77 = sphi 0, %s74
      %s78 = sphi 0, %s77
      %s94 = sphi 0, %s78
      %s100 = sphi 0, %s102
      %s103 = sphi 0, %s100
      %s104 = sphi 0, %s103
      %s120 = sphi 0, %s104
    $region4: #{decoder_layer.14} parent=1 // loop_header_branch
      %15 = sbr.rel (%p13) target = $region8
    $region5: #{decoder_layer.14} parent=1 // loop_body
      %s17 = ssub.s32 %s12, 1
      %s18 = ssub.s32 %s12, 2
      %s19 = sadd.s32 %s12, 1
      %s20 = ssub.s32 %s12, %s19
      %p21 = scmp.eq.s32.totalorder %s20, 0
      %s23 = sadd.s32 %s22, 1
      %s24 = scalar_select %p21, %s22, %s23
      %p27 = pneg %p21
      %p28 = scmp.eq.s32.totalorder %s12, 1
      %p29 = por %p27, %p28
      %p30 = scmp.ne.s32.totalorder %s22, %s25
      %p31 = scmp.eq.s32.totalorder %s12, 0
      %p32 = por %p30, %p31
      %p33 = scmp.ne.s32.totalorder %s22, %s25
      %p34 = scmp.eq.s32.totalorder %s17, 1
      %p35 = por %p33, %p34
      %p36 = scmp.ne.s32.totalorder %s25, %s26
      %p37 = scmp.eq.s32.totalorder %s17, 0
      %p38 = por %p36, %p37
      %p39 = scmp.ne.s32.totalorder %s25, %s26
      %p40 = scmp.eq.s32.totalorder %s18, 1
      %p41 = por %p39, %p40
      %p43 = scmp.ne.s32.totalorder %s26, %s42
      %p44 = scmp.eq.s32.totalorder %s18, 0
      %p45 = por %p43, %p44
      %s46 = ssub.s32 %s12, %s19
      %p47 = scmp.eq.s32.totalorder %s46, 0
      %s49 = sadd.s32 %s48, 1
      %s50 = scalar_select %p47, %s48, %s49
      %p53 = pneg %p47
      %p54 = scmp.eq.s32.totalorder %s12, 1
      %p55 = por %p53, %p54
      %p56 = scmp.ne.s32.totalorder %s48, %s51
      %p57 = scmp.eq.s32.totalorder %s12, 0
      %p58 = por %p56, %p57
      %p59 = scmp.ne.s32.totalorder %s48, %s51
      %p60 = scmp.eq.s32.totalorder %s17, 1
      %p61 = por %p59, %p60
      %p62 = scmp.ne.s32.totalorder %s51, %s52
      %p63 = scmp.eq.s32.totalorder %s17, 0
      %p64 = por %p62, %p63
      %p65 = scmp.ne.s32.totalorder %s51, %s52
      %p66 = scmp.eq.s32.totalorder %s18, 1
      %p67 = por %p65, %p66
      %p69 = scmp.ne.s32.totalorder %s52, %s68
      %p70 = scmp.eq.s32.totalorder %s18, 0
      %p71 = por %p69, %p70
      %s72 = ssub.s32 %s12, %s19
      %p73 = scmp.eq.s32.totalorder %s72, 0
      %s75 = sadd.s32 %s74, 1
      %s76 = scalar_select %p73, %s74, %s75
      %p79 = pneg %p73
      %p80 = scmp.eq.s32.totalorder %s12, 1
      %p81 = por %p79, %p80
      %p82 = scmp.ne.s32.totalorder %s74, %s77
      %p83 = scmp.eq.s32.totalorder %s12, 0
      %p84 = por %p82, %p83
      %p85 = scmp.ne.s32.totalorder %s74, %s77
      %p86 = scmp.eq.s32.totalorder %s17, 1
      %p87 = por %p85, %p86
      %p88 = scmp.ne.s32.totalorder %s77, %s78
      %p89 = scmp.eq.s32.totalorder %s17, 0
      %p90 = por %p88, %p89
      %p91 = scmp.ne.s32.totalorder %s77, %s78
      %p92 = scmp.eq.s32.totalorder %s18, 1
      %p93 = por %p91, %p92
      %p95 = scmp.ne.s32.totalorder %s78, %s94
      %p96 = scmp.eq.s32.totalorder %s18, 0
      %p97 = por %p95, %p96
      %s98 = ssub.s32 %s12, %s19
      %p99 = scmp.eq.s32.totalorder %s98, 0
      %s101 = sadd.s32 %s100, 1
      %s102 = scalar_select %p99, %s100, %s101
      %p105 = pneg %p99
      %p106 = scmp.eq.s32.totalorder %s12, 1
      %p107 = por %p105, %p106
      %p108 = scmp.ne.s32.totalorder %s100, %s103
      %p109 = scmp.eq.s32.totalorder %s12, 0
      %p110 = por %p108, %p109
      %p111 = scmp.ne.s32.totalorder %s100, %s103
      %p112 = scmp.eq.s32.totalorder %s17, 1
      %p113 = por %p111, %p112
      %p114 = scmp.ne.s32.totalorder %s103, %s104
      %p115 = scmp.eq.s32.totalorder %s17, 0
      %p116 = por %p114, %p115
      %p117 = scmp.ne.s32.totalorder %s103, %s104
      %p118 = scmp.eq.s32.totalorder %s18, 1
      %p119 = por %p117, %p118
      %p121 = scmp.ne.s32.totalorder %s104, %s120
      %p122 = scmp.eq.s32.totalorder %s18, 0
      %p123 = por %p121, %p122
      %p124 = scmp.le.s32.totalorder 1, %s12
      %p125 = scmp.lt.s32.totalorder %s12, 3
      %p126 = pnand %p124, %p125
      %p127 = pneg %p126
      // Predicated region
      $region9: #{decoder_layer.14} parent=5 // pred_check
        _
      $region10: #{decoder_layer.14} parent=5 // pred_check_branch
        %129 = sbr.rel (%p126) target = $region12
      $region11: #{decoder_layer.14} parent=5 // pred_region
        %s130 = ssub.s32 %s12, 1
      $region12: #{decoder_layer.14} parent=5 // pred_fallthru
        _
      %p131 = scmp.lt.s32.totalorder %s12, 2
      // Predicated region
      $region13: #{decoder_layer.14} parent=5 // pred_check
        %p132 = pneg %p131
      $region14: #{decoder_layer.14} parent=5 // pred_check_branch
        %134 = sbr.rel (%p132) target = $region16
      $region15: #{decoder_layer.14} parent=5 // pred_region
        // Predicated region
        $region17: #{decoder_layer.14} parent=15 // pred_check
          %p135 = pneg %p32
        $region18: #{decoder_layer.14} parent=15 // pred_check_branch
          %137 = sbr.rel (%p135) target = $region20
        $region19: #{decoder_layer.14} parent=15 // pred_region
          %p138 = scmp.lt.s32.totalorder %s12, 1
          %s139 = scalar_select %p138, %s12, 1
          %s140 = smul.addr %s139, 4
          %s141 = scalar_lea.vmem %s0, %s140
        $region20: #{decoder_layer.14} parent=15 // pred_fallthru
          _
        // Predicated region
        $region21: #{decoder_layer.14} parent=15 // pred_check
          %p142 = pneg %p58
        $region22: #{decoder_layer.14} parent=15 // pred_check_branch
          %144 = sbr.rel (%p142) target = $region24
        $region23: #{decoder_layer.14} parent=15 // pred_region
          %p145 = scmp.lt.s32.totalorder %s12, 1
          %s146 = scalar_select %p145, %s12, 1
          %s147 = smul.addr %s146, 4
          %s148 = scalar_lea.vmem %s1, %s147
        $region24: #{decoder_layer.14} parent=15 // pred_fallthru
          _
        // Predicated region
        $region25: #{decoder_layer.14} parent=15 // pred_check
          %p149 = pneg %p84
        $region26: #{decoder_layer.14} parent=15 // pred_check_branch
          %151 = sbr.rel (%p149) target = $region28
        $region27: #{decoder_layer.14} parent=15 // pred_region
          %s152 = sand.u32 %s74, 1
          %s153 = scalar_lea.sflag [#allocation3], %s152
          %s154 = sand.u32 %s74, 1
          %s155 = scalar_lea.vmem [#allocation2], %s154
          %157 = vsyncadd %s153, 0
          %s158 = scalar_lea.hbm %s2, %s12
          %s160 = sshll.u32 %s158, 4
          %s161 = int_to_ptr.hbm [resolvable:$true] %s160
          %s162 = sshll.u32 %s155, 4
          %s163 = int_to_ptr.vmem [resolvable:$true] %s162
          %165 = dma.hbm_to_vmem [thread:$0]  %s161, 16, %s163, %s153
        $region28: #{decoder_layer.14} parent=15 // pred_fallthru
          _
      $region16: #{decoder_layer.14} parent=5 // pred_fallthru
        _
      %p166 = scmp.le.s32.totalorder 1, %s12
      %p167 = scmp.lt.s32.totalorder %s12, 3
      %p168 = pnand %p166, %p167
      %p169 = pneg %p168
      // Predicated region
      $region29: #{decoder_layer.14} parent=5 // pred_check
        _
      $region30: #{decoder_layer.14} parent=5 // pred_check_branch
        %171 = sbr.rel (%p168) target = $region32
      $region31: #{decoder_layer.14} parent=5 // pred_region
        %s172 = ssub.s32 %s12, 1
        %s173 = sand.u32 %s77, 1
        %s174 = scalar_lea.sflag [#allocation3], %s173
        %s175 = sand.u32 %s77, 1
        %s176 = scalar_lea.vmem [#allocation2], %s175
        // Predicated region
        $region33: #{decoder_layer.14} parent=31 // pred_check
          %p177 = pneg %p90
        $region34: #{decoder_layer.14} parent=31 // pred_check_branch
          %179 = sbr.rel (%p177) target = $region36
        $region35: #{decoder_layer.14} parent=31 // pred_region
          %181 = dma.done %s174, 16
        $region36: #{decoder_layer.14} parent=31 // pred_fallthru
          _
        %p182 = scmp.lt.s32.totalorder %s17, 1
        %s183 = scalar_select %p182, %s17, 1
        %s184 = smul.addr %s183, 4
        %s185 = scalar_lea.vmem %s0, %s184
        %p186 = pneg %p38
        %p187 = pneg %p35
        %p188 = scmp.lt.s32.totalorder %s17, 1
        %s189 = scalar_select %p188, %s17, 1
        %s190 = smul.addr %s189, 4
        %s191 = scalar_lea.vmem %s1, %s190
        %p192 = pneg %p64
        %p193 = pneg %p61
        %s194 = sand.u32 %s77, 1
        %s195 = scalar_lea.sflag [#allocation3], %s194
        %s196 = sand.u32 %s77, 1
        %s197 = scalar_lea.vmem [#allocation2], %s196
        %p198 = pneg %p90
        %p199 = pneg %p87
        %p200 = pneg %p116
        %p201 = pneg %p113
        %p202 = scmp.lt.s32.totalorder %s17, 1
        %s203 = scalar_select %p202, %s17, 1
        %s204 = smul.addr %s203, 4
        %s205 = scalar_lea.vmem %s3, %s204
        %p206 = scmp.lt.s32.totalorder %s17, 1
        %s207 = scalar_select %p206, %s17, 1
        %s208 = smul.addr %s207, 4
        %s209 = scalar_lea.vmem %s0, %s208
        %p210 = scmp.lt.s32.totalorder %s17, 1
        %s211 = scalar_select %p210, %s17, 1
        %s212 = smul.addr %s211, 4
        %s213 = scalar_lea.vmem %s1, %s212
        %p214 = scmp.lt.s32.totalorder %s17, 1
        %s215 = scalar_select %p214, %s17, 1
        %s216 = smul.addr %s215, 4
        %s217 = scalar_lea.vmem %s3, %s216
        %v219 = vld [vmem:[%s213] sm:$0xf]
        %v220 = vld [vmem:[%s209] sm:$0xf]
        %v221 = vld [vmem:[%s176] sm:$0x1]
        %vm222 = vcmask 64512
        %v224 = vsel %vm222, %v220, 0
        %v227 = vsel %vm222, %v219, 0
        %229 = vmatpush.bf16.xpose.msra.mxu0 0
        %230 = vmatpush.bf16.xpose.msra.mxu0 0
        %231 = vmatpush.bf16.xpose.msra.mxu0 0
        %232 = vmatpush.bf16.xpose.msra.mxu0 0
        %233 = vmatpush.bf16.xpose.msra.mxu0 0
        %234 = vmatpush.bf16.xpose.msra.mxu0 0
        %235 = vmatpush.bf16.xpose.msra.mxu0 0
        %236 = vmatpush.bf16.xpose.msra.mxu0 %v227
        %237 = vmatmul.bf16.gmra.mxu0 %v224
        %v238 = vpop.f32.mrf.mxu0
        %v239 = vadd.f32 0.0, %v238
        %v240 = vpop.f32.mrf.mxu0
        %241 = vdwg.mxu0
        %v242 = vmul.f32 %v239, 0.35355338
        %vm243 = vcmp.eq.f32.partialorder %v221, 0.0
        %v244 = vsel %vm243, 1, 0
        %v245 = vperm.slane %v244, 0
        %vm246 = vcmp.eq.s32.totalorder %v245, 1
        %v247 = vsel %vm246, -0.0001, %v242
        %v248 = vsel %vm222, %v247, -inf
        %249 = vmax.xlane.f32.xlu0 %v248
        %v250 = vpop.xlane.xlu0 %249
        %v251 = vsub.f32 %v247, %v250
        %v252 = vmul.f32 %v251, 1.442695
        %v253 = vpow.pop %v252
        %v254 = vsel %vm222, %v253, 0.0
        %255 = vadd.xlane.f32.xlu0 %v254
        %v256 = vpop.xlane.xlu0 %255
        %v257 = vrcp.pop %v256
        %v258 = vmul.f32 %v256, %v257
        %v259 = vsub.f32 2.0, %v258
        %v260 = vmul.f32 %v257, %v259
        %v261 = vmul.f32 %v253, %v260
        %v262 = vpack.c.bf16 %v261, %v261
        %v264 = vunpack.c.l.b16 %v219
        %v265 = vpack.c.b16 %v264, %v264
        %266 = vrot.lane.b32.xlu0 %v265, 96
        %v267 = vpop.permute.xlu0 %266
        %v269 = vsel %vm222, %v262, 0
        %vm271 = vcmask 1043456
        %v273 = vsel %vm271, %v267, 0
        %275 = vmatpush.bf16.msra.mxu0 0
        %276 = vmatpush.bf16.msra.mxu0 0
        %277 = vmatpush.bf16.msra.mxu0 0
        %278 = vmatpush.bf16.msra.mxu0 0
        %279 = vmatpush.bf16.msra.mxu0 0
        %280 = vmatpush.bf16.msra.mxu0 0
        %281 = vmatpush.bf16.msra.mxu0 0
        %282 = vmatpush.bf16.msra.mxu0 %v273
        %283 = vmatmul.bf16.gmra.mxu0 %v269
        %v284 = vpop.f32.mrf.mxu0
        %v285 = vadd.f32 0.0, %v284
        %v286 = vpop.f32.mrf.mxu0
        %287 = vdwg.mxu0
        %v289 = vunpack.c.l.b16 %v220
        %v290 = vpack.c.b16 %v289, %v289
        %291 = vrot.lane.b32.xlu0 %v290, 120
        %v292 = vpop.permute.xlu0 %291
        %293 = vrot.lane.b32.xlu0 %v265, 120
        %v294 = vpop.permute.xlu0 %293
        %v296 = vsel %vm222, %v292, 0
        %v299 = vsel %vm222, %v294, 0
        %301 = vmatpush.bf16.xpose.msra.mxu0 0
        %302 = vmatpush.bf16.xpose.msra.mxu0 0
        %303 = vmatpush.bf16.xpose.msra.mxu0 0
        %304 = vmatpush.bf16.xpose.msra.mxu0 0
        %305 = vmatpush.bf16.xpose.msra.mxu0 0
        %306 = vmatpush.bf16.xpose.msra.mxu0 0
        %307 = vmatpush.bf16.xpose.msra.mxu0 0
        %308 = vmatpush.bf16.xpose.msra.mxu0 %v299
        %309 = vmatmul.bf16.gmra.mxu0 %v296
        %v310 = vpop.f32.mrf.mxu0
        %v311 = vadd.f32 0.0, %v310
        %v312 = vpop.f32.mrf.mxu0
        %313 = vdwg.mxu0
        %v314 = vmul.f32 %v311, 0.35355338
        %v315 = vsel %vm246, -0.0001, %v314
        %v316 = vsel %vm222, %v315, -inf
        %317 = vmax.xlane.f32.xlu0 %v316
        %v318 = vpop.xlane.xlu0 %317
        %v319 = vsub.f32 %v315, %v318
        %v320 = vmul.f32 %v319, 1.442695
        %v321 = vpow.pop %v320
        %v322 = vsel %vm222, %v321, 0.0
        %323 = vadd.xlane.f32.xlu0 %v322
        %v324 = vpop.xlane.xlu0 %323
        %v325 = vrcp.pop %v324
        %v326 = vmul.f32 %v324, %v325
        %v327 = vsub.f32 2.0, %v326
        %v328 = vmul.f32 %v325, %v327
        %v329 = vmul.f32 %v321, %v328
        %v330 = vpack.c.bf16 %v329, %v329
        %331 = vrot.lane.b32.xlu0 %v265, 88
        %v332 = vpop.permute.xlu0 %331
        %v334 = vsel %vm222, %v330, 0
        %v337 = vsel %vm271, %v332, 0
        %339 = vmatpush.bf16.msra.mxu0 0
        %340 = vmatpush.bf16.msra.mxu0 0
        %341 = vmatpush.bf16.msra.mxu0 0
        %342 = vmatpush.bf16.msra.mxu0 0
        %343 = vmatpush.bf16.msra.mxu0 0
        %344 = vmatpush.bf16.msra.mxu0 0
        %345 = vmatpush.bf16.msra.mxu0 0
        %346 = vmatpush.bf16.msra.mxu0 %v337
        %347 = vmatmul.bf16.gmra.mxu0 %v334
        %v348 = vpop.f32.mrf.mxu0
        %v349 = vadd.f32 0.0, %v348
        %v350 = vpop.f32.mrf.mxu0
        %351 = vdwg.mxu0
        %352 = vrot.lane.b32.xlu0 %v290, 112
        %v353 = vpop.permute.xlu0 %352
        %354 = vrot.lane.b32.xlu0 %v265, 112
        %v355 = vpop.permute.xlu0 %354
        %v357 = vsel %vm222, %v353, 0
        %v360 = vsel %vm222, %v355, 0
        %362 = vmatpush.bf16.xpose.msra.mxu0 0
        %363 = vmatpush.bf16.xpose.msra.mxu0 0
        %364 = vmatpush.bf16.xpose.msra.mxu0 0
        %365 = vmatpush.bf16.xpose.msra.mxu0 0
        %366 = vmatpush.bf16.xpose.msra.mxu0 0
        %367 = vmatpush.bf16.xpose.msra.mxu0 0
        %368 = vmatpush.bf16.xpose.msra.mxu0 0
        %369 = vmatpush.bf16.xpose.msra.mxu0 %v360
        %370 = vmatmul.bf16.gmra.mxu0 %v357
        %v371 = vpop.f32.mrf.mxu0
        %v372 = vadd.f32 0.0, %v371
        %v373 = vpop.f32.mrf.mxu0
        %374 = vdwg.mxu0
        %v375 = vmul.f32 %v372, 0.35355338
        %v376 = vsel %vm246, -0.0001, %v375
        %v377 = vsel %vm222, %v376, -inf
        %378 = vmax.xlane.f32.xlu0 %v377
        %v379 = vpop.xlane.xlu0 %378
        %v380 = vsub.f32 %v376, %v379
        %v381 = vmul.f32 %v380, 1.442695
        %v382 = vpow.pop %v381
        %v383 = vsel %vm222, %v382, 0.0
        %384 = vadd.xlane.f32.xlu0 %v383
        %v385 = vpop.xlane.xlu0 %384
        %v386 = vrcp.pop %v385
        %v387 = vmul.f32 %v385, %v386
        %v388 = vsub.f32 2.0, %v387
        %v389 = vmul.f32 %v386, %v388
        %v390 = vmul.f32 %v382, %v389
        %v391 = vpack.c.bf16 %v390, %v390
        %392 = vrot.lane.b32.xlu0 %v265, 80
        %v393 = vpop.permute.xlu0 %392
        %v395 = vsel %vm222, %v391, 0
        %v398 = vsel %vm271, %v393, 0
        %400 = vmatpush.bf16.msra.mxu0 0
        %401 = vmatpush.bf16.msra.mxu0 0
        %402 = vmatpush.bf16.msra.mxu0 0
        %403 = vmatpush.bf16.msra.mxu0 0
        %404 = vmatpush.bf16.msra.mxu0 0
        %405 = vmatpush.bf16.msra.mxu0 0
        %406 = vmatpush.bf16.msra.mxu0 0
        %407 = vmatpush.bf16.msra.mxu0 %v398
        %408 = vmatmul.bf16.gmra.mxu0 %v395
        %v409 = vpop.f32.mrf.mxu0
        %v410 = vadd.f32 0.0, %v409
        %v411 = vpop.f32.mrf.mxu0
        %412 = vdwg.mxu0
        %413 = vrot.lane.b32.xlu0 %v290, 104
        %v414 = vpop.permute.xlu0 %413
        %415 = vrot.lane.b32.xlu0 %v265, 104
        %v416 = vpop.permute.xlu0 %415
        %v418 = vsel %vm222, %v414, 0
        %v421 = vsel %vm222, %v416, 0
        %423 = vmatpush.bf16.xpose.msra.mxu0 0
        %424 = vmatpush.bf16.xpose.msra.mxu0 0
        %425 = vmatpush.bf16.xpose.msra.mxu0 0
        %426 = vmatpush.bf16.xpose.msra.mxu0 0
        %427 = vmatpush.bf16.xpose.msra.mxu0 0
        %428 = vmatpush.bf16.xpose.msra.mxu0 0
        %429 = vmatpush.bf16.xpose.msra.mxu0 0
        %430 = vmatpush.bf16.xpose.msra.mxu0 %v421
        %431 = vmatmul.bf16.gmra.mxu0 %v418
        %v432 = vpop.f32.mrf.mxu0
        %v433 = vadd.f32 0.0, %v432
        %v434 = vpop.f32.mrf.mxu0
        %435 = vdwg.mxu0
        %v436 = vmul.f32 %v433, 0.35355338
        %v437 = vsel %vm246, -0.0001, %v436
        %v438 = vsel %vm222, %v437, -inf
        %439 = vmax.xlane.f32.xlu0 %v438
        %v440 = vpop.xlane.xlu0 %439
        %v441 = vsub.f32 %v437, %v440
        %v442 = vmul.f32 %v441, 1.442695
        %v443 = vpow.pop %v442
        %v444 = vsel %vm222, %v443, 0.0
        %445 = vadd.xlane.f32.xlu0 %v444
        %v446 = vpop.xlane.xlu0 %445
        %v447 = vrcp.pop %v446
        %v448 = vmul.f32 %v446, %v447
        %v449 = vsub.f32 2.0, %v448
        %v450 = vmul.f32 %v447, %v449
        %v451 = vmul.f32 %v443, %v450
        %v452 = vpack.c.bf16 %v451, %v451
        %453 = vrot.lane.b32.xlu0 %v265, 72
        %v454 = vpop.permute.xlu0 %453
        %v456 = vsel %vm222, %v452, 0
        %v459 = vsel %vm271, %v454, 0
        %461 = vmatpush.bf16.msra.mxu0 0
        %462 = vmatpush.bf16.msra.mxu0 0
        %463 = vmatpush.bf16.msra.mxu0 0
        %464 = vmatpush.bf16.msra.mxu0 0
        %465 = vmatpush.bf16.msra.mxu0 0
        %466 = vmatpush.bf16.msra.mxu0 0
        %467 = vmatpush.bf16.msra.mxu0 0
        %468 = vmatpush.bf16.msra.mxu0 %v459
        %469 = vmatmul.bf16.gmra.mxu0 %v456
        %v470 = vpop.f32.mrf.mxu0
        %v471 = vadd.f32 0.0, %v470
        %v472 = vpop.f32.mrf.mxu0
        %473 = vdwg.mxu0
        %475 = vrot.lane.b32.xlu0 %v349, 8
        %v476 = vpop.permute.xlu0 %475
        %479 = vrot.lane.b32.xlu0 %v410, 16
        %v480 = vpop.permute.xlu0 %479
        %483 = vrot.lane.b32.xlu0 %v471, 24
        %v484 = vpop.permute.xlu0 %483
        %v486 = vsel %vm222, %v285, %v476
        %vm487 = vcmask 130048
        %v488 = vsel %vm487, %v486, %v480
        %vm489 = vcmask 195584
        %v490 = vsel %vm489, %v488, %v484
        %v491 = vpack.c.bf16 %v490, %v490
        %vm492 = vcmask 257024
        %493 = vst.msk [vmem:[%s217] sm:$0xf] %vm492, %v491
        %p494 = scmp.lt.s32.totalorder %s17, 1
        %s495 = scalar_select %p494, %s17, 1
        %s496 = smul.addr %s495, 4
        %s497 = scalar_lea.vmem %s3, %s496
        // Predicated region
        $region37: #{decoder_layer.14} parent=31 // pred_check
          %p498 = pneg %p113
        $region38: #{decoder_layer.14} parent=31 // pred_check_branch
          %500 = sbr.rel (%p498) target = $region40
        $region39: #{decoder_layer.14} parent=31 // pred_region
          _
        $region40: #{decoder_layer.14} parent=31 // pred_fallthru
          _
      $region32: #{decoder_layer.14} parent=5 // pred_fallthru
        _
      %p501 = scmp.le.s32.totalorder 2, %s12
      // Predicated region
      $region41: #{decoder_layer.14} parent=5 // pred_check
        %p502 = pneg %p501
      $region42: #{decoder_layer.14} parent=5 // pred_check_branch
        %504 = sbr.rel (%p502) target = $region44
      $region43: #{decoder_layer.14} parent=5 // pred_region
        %s505 = ssub.s32 %s12, 2
        // Predicated region
        $region45: #{decoder_layer.14} parent=43 // pred_check
          %p506 = pneg %p119
        $region46: #{decoder_layer.14} parent=43 // pred_check_branch
          %508 = sbr.rel (%p506) target = $region48
        $region47: #{decoder_layer.14} parent=43 // pred_region
          %p509 = scmp.lt.s32.totalorder %s18, 1
          %s510 = scalar_select %p509, %s18, 1
          %s511 = smul.addr %s510, 4
          %s512 = scalar_lea.vmem %s3, %s511
        $region48: #{decoder_layer.14} parent=43 // pred_fallthru
          _
      $region44: #{decoder_layer.14} parent=5 // pred_fallthru
        _
    $region6: #{decoder_layer.14} parent=1 // loop_footer
      %s16 = sadd.s32 1, %s12
    $region7: #{decoder_layer.14} parent=1 // loop_footer_branch
      %11 = sbr.rel target = $region3
    $region8: #{decoder_layer.14} parent=1 // loop_exit
      _
    %513 = vsyncpa [#allocation3], 1
    %s514 = scalar_lea.sflag [#allocation3], 1
    %515 = vsyncpa %s514, 1

// kernel: decoder_layer.17
$region0: #{decoder_layer.17}
  #allocation0 [shape = 'u32[]', space=smem, size = 0x4, offset = 0x4, fixed_abs, tag = 'smem constant byte address 0x4 - core index']
  #allocation1 [shape = 'u32[72,128]{1,0:T(1,128)}', space=vmem, size = 0x9000, scoped, tag = 'internal scratch']
  %s0 = inlined_call_operand.vmem [shape: bf16[16,64], index: 0, kind: input, shape index: {}]
  %s1 = inlined_call_operand.vmem [shape: bf16[64,32], index: 1, kind: input, shape index: {}]
  %s2 = inlined_call_operand.vmem [shape: f32[1,32], index: 2, kind: input, shape index: {}]
  %s3 = inlined_call_operand.vmem [shape: f32[16,32], index: 3, kind: input, shape index: {}]
  %s4 = inlined_call_operand.hbm [shape: f32[16,32], index: 4, kind: output, shape index: {}]
  %s5 = sld [smem:[#allocation0]]
  $region26: #{decoder_layer.17} parent=0
    _
  %s7 = ssub.s32 1, %s5
  %s8 = scalar_select 0, %s7, %s5
  $region1: #{decoder_layer.17} parent=0
    #allocation2 [shape = 'u8[8192]{0}', space=vmem, size = 0x2000, scoped, tag = 'output window, operand 0, single buffered']
    #allocation3 [shape = 's32[1]{0}', space=sflag, size = 0x4, scoped, tag = 'scoped memory for decoder_layer.17']
    %9 = vsyncpa [#allocation3], 0
    // Predicated region
    $region2: #{decoder_layer.17} parent=1 // pred_check
      _
    $region3: #{decoder_layer.17} parent=1 // pred_check_branch
      %11 = sbr.rel (0) target = $region5
    $region4: #{decoder_layer.17} parent=1 // pred_region
      _
    $region5: #{decoder_layer.17} parent=1 // pred_fallthru
      _
    // Predicated region
    $region6: #{decoder_layer.17} parent=1 // pred_check
      _
    $region7: #{decoder_layer.17} parent=1 // pred_check_branch
      %13 = sbr.rel (0) target = $region9
    $region8: #{decoder_layer.17} parent=1 // pred_region
      _
    $region9: #{decoder_layer.17} parent=1 // pred_fallthru
      _
    // Predicated region
    $region10: #{decoder_layer.17} parent=1 // pred_check
      _
    $region11: #{decoder_layer.17} parent=1 // pred_check_branch
      %15 = sbr.rel (0) target = $region13
    $region12: #{decoder_layer.17} parent=1 // pred_region
      _
    $region13: #{decoder_layer.17} parent=1 // pred_fallthru
      _
    // Predicated region
    $region14: #{decoder_layer.17} parent=1 // pred_check
      _
    $region15: #{decoder_layer.17} parent=1 // pred_check_branch
      %17 = sbr.rel (0) target = $region17
    $region16: #{decoder_layer.17} parent=1 // pred_region
      _
    $region17: #{decoder_layer.17} parent=1 // pred_fallthru
      _
    %v19 = vld [vmem:[%s0] sm:$0xf]
    %v20 = vld [vmem:[%s0 + $0x4] sm:$0xf]
    %v21 = vld [vmem:[%s1] sm:$0xf]
    %v22 = vld [vmem:[%s1 + $0x4] sm:$0xf]
    %v23 = vld [vmem:[%s1 + $0x8] sm:$0xf]
    %v24 = vld [vmem:[%s1 + $0xc] sm:$0xf]
    %v25 = vld [vmem:[%s1 + $0x10] sm:$0xf]
    %v26 = vld [vmem:[%s1 + $0x14] sm:$0xf]
    %v27 = vld [vmem:[%s1 + $0x18] sm:$0xf]
    %v28 = vld [vmem:[%s1 + $0x1c] sm:$0xf]
    %v29 = vld [vmem:[%s2] sm:$0x1]
    %v31 = vperm.slane %v29, 0
    %v35 = vunpack.c.l.b16 %v19
    %v36 = vunpack.c.l.b16 %v20
    %v37 = vpack.c.b16 %v36, %v35
    %v46 = vunpack.c.l.b16 %v21
    %v47 = vunpack.c.l.b16 %v22
    %v48 = vunpack.c.l.b16 %v23
    %v49 = vunpack.c.l.b16 %v24
    %v50 = vunpack.c.l.b16 %v25
    %v51 = vunpack.c.l.b16 %v26
    %v52 = vunpack.c.l.b16 %v27
    %v53 = vunpack.c.l.b16 %v28
    %v54 = vpack.c.b16 %v47, %v46
    %v55 = vpack.c.b16 %v49, %v48
    %v56 = vpack.c.b16 %v51, %v50
    %v57 = vpack.c.b16 %v53, %v52
    %vm62 = vcmask 523264
    %v64 = vsel %vm62, %v37, 0
    %66 = vmatpush.bf16.msra.mxu0 0
    %67 = vmatpush.bf16.msra.mxu0 0
    %68 = vmatpush.bf16.msra.mxu0 0
    %69 = vmatpush.bf16.msra.mxu0 0
    %70 = vmatpush.bf16.msra.mxu0 %v57
    %71 = vmatpush.bf16.msra.mxu0 %v56
    %72 = vmatpush.bf16.msra.mxu0 %v55
    %73 = vmatpush.bf16.msra.mxu0 %v54
    %74 = vmatmul.bf16.gmra.mxu0 %v64
    %v75 = vpop.f32.mrf.mxu0
    %v76 = vadd.f32 %v31, %v75
    %v77 = vpop.f32.mrf.mxu0
    %v78 = vadd.f32 %v31, %v77
    %79 = vdwg.mxu0
    %v80 = vld [vmem:[%s3] sm:$0xff]
    %v81 = vld [vmem:[%s3 + $0x8] sm:$0xff]
    %v82 = vadd.f32 %v76, %v80
    %v83 = vadd.f32 %v78, %v81
    %vm84 = vcmask 261120
    %85 = vst.msk [vmem:[#allocation2] sm:$0xff] %vm84, %v82
    %86 = vst.msk [vmem:[#allocation2 + $0x8] sm:$0xff] %vm84, %v83
    // Predicated region
    $region18: #{decoder_layer.17} parent=1 // pred_check
      _
    $region19: #{decoder_layer.17} parent=1 // pred_check_branch
      %88 = sbr.rel (0) target = $region21
    $region20: #{decoder_layer.17} parent=1 // pred_region
      %90 = vsyncadd [#allocation3], 0
      %s91 = sshll.u32 [#allocation2], 4
      %s92 = int_to_ptr.vmem [resolvable:$true] %s91
      %s93 = sshll.u32 %s4, 4
      %s94 = int_to_ptr.hbm [resolvable:$true] %s93
      %99 = dma.vmem_to_hbm [thread:$0]  %s92, 256, %s94, [#allocation3], 128, 128, 8
    $region21: #{decoder_layer.17} parent=1 // pred_fallthru
      _
    // Predicated region
    $region22: #{decoder_layer.17} parent=1 // pred_check
      _
    $region23: #{decoder_layer.17} parent=1 // pred_check_branch
      %101 = sbr.rel (0) target = $region25
    $region24: #{decoder_layer.17} parent=1 // pred_region
      %103 = dma.done [#allocation3], 256
    $region25: #{decoder_layer.17} parent=1 // pred_fallthru
      _
    %104 = vsyncpa [#allocation3], 1

</llo_original>
